<compile_context>
chip_gen: v5e
topology: v5e:2x2
jax: 0.10.0
libtpu: 0.0.40
codegen_flags: <defaults>
</compile_context>

<pallas_src>
import functools

import jax
import jax.numpy as jnp
from jax.experimental import pallas as pl
from jax.experimental.pallas import tpu as pltpu


# ----------------------------------------------------------------------------
# Fused ResidualGroup kernel: one grid step == one batch element, everything in
# VMEM, activation layout (H, W*C) (lane dense).
# ----------------------------------------------------------------------------
def _rg_kernel(x_ref, conv_w_ref, conv_b_ref, alpha_ref,
               ca_w1_ref, ca_b1_ref, ca_w2_ref, ca_b2_ref, o_ref,
               *, H, W, C, K, n_resblocks):
    f32 = jnp.float32
    WC = W * C
    pad = K // 2

    # Row-shift selection matrices (dy = ky - pad), built once from 2-D iota.
    # (sel @ act)[h, :] = act[h + dy, :], with zero rows at the H boundary,
    # i.e. the vertical zero padding of the conv comes for free.
    hh = jax.lax.broadcasted_iota(jnp.int32, (H, H), 0)
    hp = jax.lax.broadcasted_iota(jnp.int32, (H, H), 1)
    row_sel = []
    for ky in range(K):
        dy = ky - pad
        row_sel.append(None if dy == 0 else (hp == hh + dy).astype(f32))

    def conv3x3(act, layer):
        # Stack the K row-shifted copies along lanes (offsets are multiples of
        # WC = 256 -> aligned concat), then a single bf16 MXU matmul against the
        # banded im2col weight: contraction K*W*C = 768, output W*C = 256 lanes.
        pieces = []
        for ky in range(K):
            sel = row_sel[ky]
            pieces.append(act if sel is None
                          else jnp.dot(sel, act, preferred_element_type=f32))
        a_stack = jnp.concatenate(pieces, axis=1).astype(jnp.bfloat16)
        out = jnp.dot(a_stack, conv_w_ref[layer],
                      preferred_element_type=f32)          # (H, WC) f32
        return out + conv_b_ref[layer]                      # bias replicated (1, WC)

    def group_reduce(v, op):
        # Reduce across the W lane-groups (stride C) with a full cyclic tree of
        # lane rotations; the result is the per-channel reduction replicated
        # into every lane group.  Being a full cycle, the rotate direction
        # convention does not affect the result.
        sh = C
        while sh < WC:
            v = op(v, pltpu.roll(v, shift=sh, axis=1))
            sh *= 2
        return v

    x = x_ref[0]                                            # (H, WC) f32
    act = x
    for bi in range(n_resblocks):                           # RCAB blocks
        skip = act
        h1 = jnp.maximum(conv3x3(act, 2 * bi), 0.0)
        h2 = conv3x3(h1, 2 * bi + 1)

        # ---- CALayer_Mixone: alpha*avgpool + (1-alpha)*maxpool, 2 tiny FCs ----
        colsum = jnp.sum(h2, axis=0, keepdims=True)         # (1, WC) sublane reduce
        colmax = jnp.max(h2, axis=0, keepdims=True)         # (1, WC)
        avg = group_reduce(colsum, jnp.add) * (1.0 / (H * W))
        mx = group_reduce(colmax, jnp.maximum)
        a = alpha_ref[bi]                                    # scalar from SMEM
        y = a * avg + (1.0 - a) * mx                         # per-channel, replicated

        # 1x1 convs on the VPU: broadcast-multiply + lane/sublane reduce.
        z = jnp.sum(ca_w1_ref[bi] * y, axis=1, keepdims=True) + ca_b1_ref[bi]   # (Cr, 1)
        z = jnp.maximum(z, 0.0)
        g = jnp.sum(ca_w2_ref[bi] * z, axis=0, keepdims=True) + ca_b2_ref[bi]   # (1, WC)
        gate = jax.nn.sigmoid(g)

        act = h2 * gate + skip                               # RCAB residual

    out = conv3x3(act, 2 * n_resblocks) + x                  # tail conv + group skip
    o_ref[0] = out.astype(o_ref.dtype)


# ----------------------------------------------------------------------------
# Wrapper: pack parameters into lane-dense, matmul-ready form and launch.
# ----------------------------------------------------------------------------
def _banded_conv_weight(w4, W, pad):
    """(K,K,Cin,Cout) -> (K*W*Cin, W*Cout) banded im2col weight.

    Row (ky*W + w_in)*Cin + ci, column w*Cout + co holds w4[ky, w_in-w+pad, ci, co]
    when that horizontal tap exists, else 0; so one matmul against the K
    row-shifted activation copies realizes the 'same' KxK conv (horizontal zero
    padding is implicit in the band).
    """
    K, _, Cin, Cout = w4.shape
    kx = jnp.arange(K)
    wo = jnp.arange(W)
    wi = jnp.arange(W)
    sel = (wi[None, None, :] == (wo[None, :, None] + kx[:, None, None] - pad))
    sel = sel.astype(w4.dtype)                               # (K, W_out, W_in)
    band = jnp.einsum("xwv,yxic->yviwc", sel, w4)            # (K, W_in, Cin, W_out, Cout)
    return band.reshape(K * W * Cin, W * Cout)


@jax.jit
def residual_group_forward(x, params):
    N, H, W, C = x.shape
    K = params["tail_w"].shape[0]
    pad = K // 2
    nb = len(params["blocks"])
    Cr = params["blocks"][0]["ca_w1"].shape[1]
    WC = W * C
    L = 2 * nb + 1
    assert W & (W - 1) == 0, "lane group-reduce assumes W is a power of two"
    assert (H % 8 == 0) and (WC % 128 == 0), "activation tile must be (8,128) aligned"

    conv_ws, conv_bs = [], []
    for blk in params["blocks"]:
        conv_ws += [blk["w1"], blk["w2"]]
        conv_bs += [blk["b1"], blk["b2"]]
    conv_ws.append(params["tail_w"])
    conv_bs.append(params["tail_b"])

    conv_w = jnp.stack([_banded_conv_weight(w, W, pad) for w in conv_ws])
    conv_w = conv_w.astype(jnp.bfloat16)                                        # (L, K*W*C, WC)
    conv_b = jnp.stack([jnp.tile(b.reshape(1, C), (1, W)) for b in conv_bs])    # (L, 1, WC)

    alpha = jnp.concatenate([blk["alpha"] for blk in params["blocks"]])         # (nb,)
    ca_w1 = jnp.stack([jnp.tile(blk["ca_w1"].T, (1, W)) / W
                       for blk in params["blocks"]])                            # (nb, Cr, WC)
    ca_b1 = jnp.stack([blk["ca_b1"].reshape(Cr, 1) for blk in params["blocks"]])        # (nb, Cr, 1)
    ca_w2 = jnp.stack([jnp.tile(blk["ca_w2"], (1, W)) for blk in params["blocks"]])     # (nb, Cr, WC)
    ca_b2 = jnp.stack([jnp.tile(blk["ca_b2"].reshape(1, C), (1, W))
                       for blk in params["blocks"]])                            # (nb, 1, WC)

    x_flat = x.reshape(N, H, WC)      # lane-dense view; pure contiguous reshape

    kern = functools.partial(_rg_kernel, H=H, W=W, C=C, K=K, n_resblocks=nb)

    out_flat = pl.pallas_call(
        kern,
        out_shape=jax.ShapeDtypeStruct((N, H, WC), x.dtype),
        grid=(N,),
        in_specs=[
            pl.BlockSpec((1, H, WC), lambda n: (n, 0, 0)),             # x
            pl.BlockSpec((L, K * W * C, WC), lambda n: (0, 0, 0)),     # banded conv weights (bf16)
            pl.BlockSpec((L, 1, WC), lambda n: (0, 0, 0)),             # conv biases (replicated)
            pl.BlockSpec(memory_space=pltpu.MemorySpace.SMEM),         # alpha (nb,) scalars
            pl.BlockSpec((nb, Cr, WC), lambda n: (0, 0, 0)),           # CA W1 (replicated, /W)
            pl.BlockSpec((nb, Cr, 1), lambda n: (0, 0, 0)),            # CA b1
            pl.BlockSpec((nb, Cr, WC), lambda n: (0, 0, 0)),           # CA W2 (replicated)
            pl.BlockSpec((nb, 1, WC), lambda n: (0, 0, 0)),            # CA b2 (replicated)
        ],
        out_specs=pl.BlockSpec((1, H, WC), lambda n: (n, 0, 0)),
        compiler_params=pltpu.CompilerParams(
            dimension_semantics=("parallel",),
            vmem_limit_bytes=48 * 1024 * 1024),
    )(x_flat, conv_w, conv_b, alpha, ca_w1, ca_b1, ca_w2, ca_b2)

    return out_flat.reshape(N, H, W, C)


# ----------------------------------------------------------------------------
# Parameter init (NHWC / HWIO conventions) and pure-JAX reference.
# ----------------------------------------------------------------------------
def init_params(key, n_feat, reduction, kernel_size, n_resblocks):
    C, Cr, K = n_feat, n_feat // reduction, kernel_size
    blocks = []
    for _ in range(n_resblocks):
        key, *ks = jax.random.split(key, 8)
        blocks.append(dict(
            w1=(jax.random.normal(ks[0], (K, K, C, C), jnp.float32) * 0.08),
            b1=(jax.random.normal(ks[1], (1, C), jnp.float32) * 0.01),
            w2=(jax.random.normal(ks[2], (K, K, C, C), jnp.float32) * 0.08),
            b2=(jax.random.normal(ks[3], (1, C), jnp.float32) * 0.01),
            alpha=jnp.array([0.75], jnp.float32),   # PyTorch inits 1.0; 0.75 exercises both pools
            ca_w1=(jax.random.normal(ks[4], (C, Cr), jnp.float32) * 0.2),
            ca_b1=(jax.random.normal(ks[5], (1, Cr), jnp.float32) * 0.01),
            ca_w2=(jax.random.normal(ks[6], (Cr, C), jnp.float32) * 0.2),
            ca_b2=jnp.zeros((1, C), jnp.float32),
        ))
    key, k1, k2 = jax.random.split(key, 3)
    tail_w = jax.random.normal(k1, (K, K, C, C), jnp.float32) * 0.08
    tail_b = jax.random.normal(k2, (1, C), jnp.float32) * 0.01
    return dict(blocks=blocks, tail_w=tail_w, tail_b=tail_b)


def _conv_ref(x, w, b):
    y = jax.lax.conv_general_dilated(
        x, w, window_strides=(1, 1), padding="SAME",
        dimension_numbers=("NHWC", "HWIO", "NHWC"),
        precision=jax.lax.Precision.HIGHEST)
    return y + b.reshape(1, 1, 1, -1)


def residual_group_ref(x, params):
    res = x
    for blk in params["blocks"]:
        inp = res
        h = jnp.maximum(_conv_ref(res, blk["w1"], blk["b1"]), 0.0)
        h = _conv_ref(h, blk["w2"], blk["b2"])
        a = blk["alpha"][0]
        y = a * jnp.mean(h, axis=(1, 2), keepdims=True) \
            + (1.0 - a) * jnp.max(h, axis=(1, 2), keepdims=True)
        z = jnp.maximum(
            jnp.einsum("nijc,cd->nijd", y, blk["ca_w1"], precision="highest")
            + blk["ca_b1"].reshape(1, 1, 1, -1), 0.0)
        s = jax.nn.sigmoid(
            jnp.einsum("nijd,dc->nijc", z, blk["ca_w2"], precision="highest")
            + blk["ca_b2"].reshape(1, 1, 1, -1))
        res = h * s + inp
    return _conv_ref(res, params["tail_w"], params["tail_b"]) + x


if __name__ == "__main__":
    # NHWC (2, 16, 16, 16): n_feat=16, reduction=4, kernel_size=3, 2 RCABs.
    N, C, H, W = 2, 16, 16, 16
    reduction, kernel_size, n_resblocks = 4, 3, 2

    key = jax.random.PRNGKey(0)
    kx, kp = jax.random.split(key)
    x = jax.random.normal(kx, (N, H, W, C), jnp.float32)
    params = init_params(kp, C, reduction, kernel_size, n_resblocks)

    out = jax.block_until_ready(residual_group_forward(x, params))
    ref = jax.block_until_ready(residual_group_ref(x, params))

    assert out.shape == (N, H, W, C) and out.dtype == jnp.float32
    err = float(jnp.max(jnp.abs(out - ref)))
    # Conv matmuls run with bf16 MXU inputs (f32 accumulate), so compare against
    # the f32 reference with a tolerance that still catches structural bugs.
    assert err < 1e-1, f"max abs error too large: {err}"
    print("KERNEL_OK")
</pallas_src>

<mosaic_0001>
module attributes {stable_mosaic.version = 11 : i64} {
  func.func @_rg_kernel(%arg0: i32, %arg1: memref<1x16x256xf32, #tpu.memory_space<vmem>>, %arg2: memref<5x768x256xbf16, #tpu.memory_space<vmem>>, %arg3: memref<5x1x256xf32, #tpu.memory_space<vmem>>, %arg4: memref<2xf32, #tpu.memory_space<smem>>, %arg5: memref<2x4x256xf32, #tpu.memory_space<vmem>>, %arg6: memref<2x4x1xf32, #tpu.memory_space<vmem>>, %arg7: memref<2x4x256xf32, #tpu.memory_space<vmem>>, %arg8: memref<2x1x256xf32, #tpu.memory_space<vmem>>, %arg9: memref<1x16x256xf32, #tpu.memory_space<vmem>>) attributes {dimension_semantics = [#tpu.dimension_semantics<parallel>], iteration_bounds = array<i64: 2>, scalar_prefetch = 0 : i64, scratch_operands = 0 : i64, tpu.core_type = #tpu.core_type<tc>, window_params = [{transform_indices = @transform_0, window_bounds = array<i64: 1, 16, 256>}, {pipeline_mode = #tpu.pipeline_mode<synchronous>, transform_indices = @transform_1, window_bounds = array<i64: 5, 768, 256>}, {pipeline_mode = #tpu.pipeline_mode<synchronous>, transform_indices = @transform_2, window_bounds = array<i64: 5, 1, 256>}, {transform_indices = @transform_3, window_bounds = array<i64: 2>}, {pipeline_mode = #tpu.pipeline_mode<synchronous>, transform_indices = @transform_4, window_bounds = array<i64: 2, 4, 256>}, {pipeline_mode = #tpu.pipeline_mode<synchronous>, transform_indices = @transform_5, window_bounds = array<i64: 2, 4, 1>}, {pipeline_mode = #tpu.pipeline_mode<synchronous>, transform_indices = @transform_6, window_bounds = array<i64: 2, 4, 256>}, {pipeline_mode = #tpu.pipeline_mode<synchronous>, transform_indices = @transform_7, window_bounds = array<i64: 2, 1, 256>}, {transform_indices = @transform_8, window_bounds = array<i64: 1, 16, 256>}]} {
    %0 = tpu.iota {dimensions = array<i32: 0>} : vector<16x16xi32>
    %1 = tpu.iota {dimensions = array<i32: 1>} : vector<16x16xi32>
    %c-1_i32 = arith.constant -1 : i32
    %2 = vector.broadcast %c-1_i32 : i32 to vector<16x16xi32>
    %3 = arith.addi %0, %2 : vector<16x16xi32>
    %4 = arith.cmpi eq, %1, %3 : vector<16x16xi32>
    %5 = arith.extui %4 : vector<16x16xi1> to vector<16x16xi32>
    %6 = arith.sitofp %5 : vector<16x16xi32> to vector<16x16xf32>
    %c1_i32 = arith.constant 1 : i32
    %7 = vector.broadcast %c1_i32 : i32 to vector<16x16xi32>
    %8 = arith.addi %0, %7 : vector<16x16xi32>
    %9 = arith.cmpi eq, %1, %8 : vector<16x16xi32>
    %10 = arith.extui %9 : vector<16x16xi1> to vector<16x16xi32>
    %11 = arith.sitofp %10 : vector<16x16xi32> to vector<16x16xf32>
    %c0 = arith.constant 0 : index
    %c0_0 = arith.constant 0 : index
    %c0_1 = arith.constant 0 : index
    %12 = vector.load %arg1[%c0, %c0_0, %c0_1] : memref<1x16x256xf32, #tpu.memory_space<vmem>>, vector<1x16x256xf32>
    %13 = vector.shape_cast %12 : vector<1x16x256xf32> to vector<16x256xf32>
    %cst = arith.constant dense<0.000000e+00> : vector<16x256xf32>
    %14 = tpu.matmul %6, %13, %cst {dimension_numbers = #tpu.dot_dimension_numbers<[1], [0], [0], [1], [0, 0, 1, 1], [], []>} : vector<16x16xf32>, vector<16x256xf32>, vector<16x256xf32> -> vector<16x256xf32>
    %cst_2 = arith.constant dense<0.000000e+00> : vector<16x256xf32>
    %15 = tpu.matmul %11, %13, %cst_2 {dimension_numbers = #tpu.dot_dimension_numbers<[1], [0], [0], [1], [0, 0, 1, 1], [], []>} : vector<16x16xf32>, vector<16x256xf32>, vector<16x256xf32> -> vector<16x256xf32>
    %16 = tpu.concatenate %14, %13, %15 in 1 : vector<16x256xf32>, vector<16x256xf32>, vector<16x256xf32> -> vector<16x768xf32>
    %17 = arith.truncf %16 : vector<16x768xf32> to vector<16x768xbf16>
    %c0_3 = arith.constant 0 : index
    %c0_4 = arith.constant 0 : index
    %c0_5 = arith.constant 0 : index
    %18 = vector.load %arg2[%c0_3, %c0_4, %c0_5] : memref<5x768x256xbf16, #tpu.memory_space<vmem>>, vector<1x768x256xbf16>
    %19 = vector.shape_cast %18 : vector<1x768x256xbf16> to vector<768x256xbf16>
    %cst_6 = arith.constant dense<0.000000e+00> : vector<16x256xf32>
    %20 = tpu.matmul %17, %19, %cst_6 {dimension_numbers = #tpu.dot_dimension_numbers<[1], [0], [0], [1], [0, 0, 1, 1], [], []>} : vector<16x768xbf16>, vector<768x256xbf16>, vector<16x256xf32> -> vector<16x256xf32>
    %c0_7 = arith.constant 0 : index
    %c0_8 = arith.constant 0 : index
    %c0_9 = arith.constant 0 : index
    %21 = vector.load %arg3[%c0_7, %c0_8, %c0_9] : memref<5x1x256xf32, #tpu.memory_space<vmem>>, vector<1x1x256xf32>
    %22 = vector.shape_cast %21 : vector<1x1x256xf32> to vector<1x256xf32>
    %23 = vector.broadcast %22 : vector<1x256xf32> to vector<16x256xf32>
    %24 = arith.addf %20, %23 : vector<16x256xf32>
    %cst_10 = arith.constant 0.000000e+00 : f32
    %25 = vector.broadcast %cst_10 : f32 to vector<16x256xf32>
    %26 = arith.maximumf %24, %25 : vector<16x256xf32>
    %cst_11 = arith.constant dense<0.000000e+00> : vector<16x256xf32>
    %27 = tpu.matmul %6, %26, %cst_11 {dimension_numbers = #tpu.dot_dimension_numbers<[1], [0], [0], [1], [0, 0, 1, 1], [], []>} : vector<16x16xf32>, vector<16x256xf32>, vector<16x256xf32> -> vector<16x256xf32>
    %cst_12 = arith.constant dense<0.000000e+00> : vector<16x256xf32>
    %28 = tpu.matmul %11, %26, %cst_12 {dimension_numbers = #tpu.dot_dimension_numbers<[1], [0], [0], [1], [0, 0, 1, 1], [], []>} : vector<16x16xf32>, vector<16x256xf32>, vector<16x256xf32> -> vector<16x256xf32>
    %29 = tpu.concatenate %27, %26, %28 in 1 : vector<16x256xf32>, vector<16x256xf32>, vector<16x256xf32> -> vector<16x768xf32>
    %30 = arith.truncf %29 : vector<16x768xf32> to vector<16x768xbf16>
    %c1 = arith.constant 1 : index
    %c0_13 = arith.constant 0 : index
    %c0_14 = arith.constant 0 : index
    %31 = vector.load %arg2[%c1, %c0_13, %c0_14] : memref<5x768x256xbf16, #tpu.memory_space<vmem>>, vector<1x768x256xbf16>
    %32 = vector.shape_cast %31 : vector<1x768x256xbf16> to vector<768x256xbf16>
    %cst_15 = arith.constant dense<0.000000e+00> : vector<16x256xf32>
    %33 = tpu.matmul %30, %32, %cst_15 {dimension_numbers = #tpu.dot_dimension_numbers<[1], [0], [0], [1], [0, 0, 1, 1], [], []>} : vector<16x768xbf16>, vector<768x256xbf16>, vector<16x256xf32> -> vector<16x256xf32>
    %c1_16 = arith.constant 1 : index
    %c0_17 = arith.constant 0 : index
    %c0_18 = arith.constant 0 : index
    %34 = vector.load %arg3[%c1_16, %c0_17, %c0_18] : memref<5x1x256xf32, #tpu.memory_space<vmem>>, vector<1x1x256xf32>
    %35 = vector.shape_cast %34 : vector<1x1x256xf32> to vector<1x256xf32>
    %36 = vector.broadcast %35 : vector<1x256xf32> to vector<16x256xf32>
    %37 = arith.addf %33, %36 : vector<16x256xf32>
    %cst_19 = arith.constant dense<0.000000e+00> : vector<256xf32>
    %38 = vector.multi_reduction <add>, %37, %cst_19 [0] : vector<16x256xf32> to vector<256xf32>
    %39 = vector.shape_cast %38 : vector<256xf32> to vector<1x256xf32>
    %cst_20 = arith.constant dense<0xFF800000> : vector<256xf32>
    %40 = vector.multi_reduction <maximumf>, %37, %cst_20 [0] : vector<16x256xf32> to vector<256xf32>
    %41 = vector.shape_cast %40 : vector<256xf32> to vector<1x256xf32>
    %c16_i32 = arith.constant 16 : i32
    %42 = tpu.dynamic_rotate %39 by %c16_i32 dim 1 : vector<1x256xf32>, i32 -> vector<1x256xf32>
    %43 = arith.addf %39, %42 : vector<1x256xf32>
    %c32_i32 = arith.constant 32 : i32
    %44 = tpu.dynamic_rotate %43 by %c32_i32 dim 1 : vector<1x256xf32>, i32 -> vector<1x256xf32>
    %45 = arith.addf %43, %44 : vector<1x256xf32>
    %c64_i32 = arith.constant 64 : i32
    %46 = tpu.dynamic_rotate %45 by %c64_i32 dim 1 : vector<1x256xf32>, i32 -> vector<1x256xf32>
    %47 = arith.addf %45, %46 : vector<1x256xf32>
    %c128_i32 = arith.constant 128 : i32
    %48 = tpu.dynamic_rotate %47 by %c128_i32 dim 1 : vector<1x256xf32>, i32 -> vector<1x256xf32>
    %49 = arith.addf %47, %48 : vector<1x256xf32>
    %cst_21 = arith.constant 3.906250e-03 : f32
    %50 = vector.broadcast %cst_21 : f32 to vector<1x256xf32>
    %51 = arith.mulf %49, %50 : vector<1x256xf32>
    %c16_i32_22 = arith.constant 16 : i32
    %52 = tpu.dynamic_rotate %41 by %c16_i32_22 dim 1 : vector<1x256xf32>, i32 -> vector<1x256xf32>
    %53 = arith.maximumf %41, %52 : vector<1x256xf32>
    %c32_i32_23 = arith.constant 32 : i32
    %54 = tpu.dynamic_rotate %53 by %c32_i32_23 dim 1 : vector<1x256xf32>, i32 -> vector<1x256xf32>
    %55 = arith.maximumf %53, %54 : vector<1x256xf32>
    %c64_i32_24 = arith.constant 64 : i32
    %56 = tpu.dynamic_rotate %55 by %c64_i32_24 dim 1 : vector<1x256xf32>, i32 -> vector<1x256xf32>
    %57 = arith.maximumf %55, %56 : vector<1x256xf32>
    %c128_i32_25 = arith.constant 128 : i32
    %58 = tpu.dynamic_rotate %57 by %c128_i32_25 dim 1 : vector<1x256xf32>, i32 -> vector<1x256xf32>
    %59 = arith.maximumf %57, %58 : vector<1x256xf32>
    %c0_26 = arith.constant 0 : index
    %60 = memref.load %arg4[%c0_26] : memref<2xf32, #tpu.memory_space<smem>>
    %61 = vector.broadcast %60 : f32 to vector<1x256xf32>
    %62 = arith.mulf %61, %51 : vector<1x256xf32>
    %cst_27 = arith.constant 1.000000e+00 : f32
    %63 = arith.subf %cst_27, %60 : f32
    %64 = vector.broadcast %63 : f32 to vector<1x256xf32>
    %65 = arith.mulf %64, %59 : vector<1x256xf32>
    %66 = arith.addf %62, %65 : vector<1x256xf32>
    %c0_28 = arith.constant 0 : index
    %c0_29 = arith.constant 0 : index
    %c0_30 = arith.constant 0 : index
    %67 = vector.load %arg5[%c0_28, %c0_29, %c0_30] : memref<2x4x256xf32, #tpu.memory_space<vmem>>, vector<1x4x256xf32>
    %68 = vector.shape_cast %67 : vector<1x4x256xf32> to vector<4x256xf32>
    %69 = vector.broadcast %66 : vector<1x256xf32> to vector<4x256xf32>
    %70 = arith.mulf %68, %69 : vector<4x256xf32>
    %cst_31 = arith.constant dense<0.000000e+00> : vector<4xf32>
    %71 = vector.multi_reduction <add>, %70, %cst_31 [1] : vector<4x256xf32> to vector<4xf32>
    %72 = vector.shape_cast %71 : vector<4xf32> to vector<4x1xf32>
    %c0_32 = arith.constant 0 : index
    %c0_33 = arith.constant 0 : index
    %c0_34 = arith.constant 0 : index
    %73 = vector.load %arg6[%c0_32, %c0_33, %c0_34] : memref<2x4x1xf32, #tpu.memory_space<vmem>>, vector<1x4x1xf32>
    %74 = vector.shape_cast %73 : vector<1x4x1xf32> to vector<4x1xf32>
    %75 = arith.addf %72, %74 : vector<4x1xf32>
    %cst_35 = arith.constant 0.000000e+00 : f32
    %76 = vector.broadcast %cst_35 : f32 to vector<4x1xf32>
    %77 = arith.maximumf %75, %76 : vector<4x1xf32>
    %c0_36 = arith.constant 0 : index
    %c0_37 = arith.constant 0 : index
    %c0_38 = arith.constant 0 : index
    %78 = vector.load %arg7[%c0_36, %c0_37, %c0_38] : memref<2x4x256xf32, #tpu.memory_space<vmem>>, vector<1x4x256xf32>
    %79 = vector.shape_cast %78 : vector<1x4x256xf32> to vector<4x256xf32>
    %80 = vector.broadcast %77 : vector<4x1xf32> to vector<4x256xf32>
    %81 = arith.mulf %79, %80 : vector<4x256xf32>
    %cst_39 = arith.constant dense<0.000000e+00> : vector<256xf32>
    %82 = vector.multi_reduction <add>, %81, %cst_39 [0] : vector<4x256xf32> to vector<256xf32>
    %83 = vector.shape_cast %82 : vector<256xf32> to vector<1x256xf32>
    %c0_40 = arith.constant 0 : index
    %c0_41 = arith.constant 0 : index
    %c0_42 = arith.constant 0 : index
    %84 = vector.load %arg8[%c0_40, %c0_41, %c0_42] : memref<2x1x256xf32, #tpu.memory_space<vmem>>, vector<1x1x256xf32>
    %85 = vector.shape_cast %84 : vector<1x1x256xf32> to vector<1x256xf32>
    %86 = arith.addf %83, %85 : vector<1x256xf32>
    %87 = arith.negf %86 : vector<1x256xf32>
    %88 = math.exp %87 : vector<1x256xf32>
    %cst_43 = arith.constant 1.000000e+00 : f32
    %89 = vector.broadcast %cst_43 : f32 to vector<1x256xf32>
    %90 = arith.addf %89, %88 : vector<1x256xf32>
    %91 = arith.divf %89, %90 : vector<1x256xf32>
    %92 = vector.broadcast %91 : vector<1x256xf32> to vector<16x256xf32>
    %93 = arith.mulf %37, %92 : vector<16x256xf32>
    %94 = arith.addf %93, %13 : vector<16x256xf32>
    %cst_44 = arith.constant dense<0.000000e+00> : vector<16x256xf32>
    %95 = tpu.matmul %6, %94, %cst_44 {dimension_numbers = #tpu.dot_dimension_numbers<[1], [0], [0], [1], [0, 0, 1, 1], [], []>} : vector<16x16xf32>, vector<16x256xf32>, vector<16x256xf32> -> vector<16x256xf32>
    %cst_45 = arith.constant dense<0.000000e+00> : vector<16x256xf32>
    %96 = tpu.matmul %11, %94, %cst_45 {dimension_numbers = #tpu.dot_dimension_numbers<[1], [0], [0], [1], [0, 0, 1, 1], [], []>} : vector<16x16xf32>, vector<16x256xf32>, vector<16x256xf32> -> vector<16x256xf32>
    %97 = tpu.concatenate %95, %94, %96 in 1 : vector<16x256xf32>, vector<16x256xf32>, vector<16x256xf32> -> vector<16x768xf32>
    %98 = arith.truncf %97 : vector<16x768xf32> to vector<16x768xbf16>
    %c2 = arith.constant 2 : index
    %c0_46 = arith.constant 0 : index
    %c0_47 = arith.constant 0 : index
    %99 = vector.load %arg2[%c2, %c0_46, %c0_47] : memref<5x768x256xbf16, #tpu.memory_space<vmem>>, vector<1x768x256xbf16>
    %100 = vector.shape_cast %99 : vector<1x768x256xbf16> to vector<768x256xbf16>
    %cst_48 = arith.constant dense<0.000000e+00> : vector<16x256xf32>
    %101 = tpu.matmul %98, %100, %cst_48 {dimension_numbers = #tpu.dot_dimension_numbers<[1], [0], [0], [1], [0, 0, 1, 1], [], []>} : vector<16x768xbf16>, vector<768x256xbf16>, vector<16x256xf32> -> vector<16x256xf32>
    %c2_49 = arith.constant 2 : index
    %c0_50 = arith.constant 0 : index
    %c0_51 = arith.constant 0 : index
    %102 = vector.load %arg3[%c2_49, %c0_50, %c0_51] : memref<5x1x256xf32, #tpu.memory_space<vmem>>, vector<1x1x256xf32>
    %103 = vector.shape_cast %102 : vector<1x1x256xf32> to vector<1x256xf32>
    %104 = vector.broadcast %103 : vector<1x256xf32> to vector<16x256xf32>
    %105 = arith.addf %101, %104 : vector<16x256xf32>
    %cst_52 = arith.constant 0.000000e+00 : f32
    %106 = vector.broadcast %cst_52 : f32 to vector<16x256xf32>
    %107 = arith.maximumf %105, %106 : vector<16x256xf32>
    %cst_53 = arith.constant dense<0.000000e+00> : vector<16x256xf32>
    %108 = tpu.matmul %6, %107, %cst_53 {dimension_numbers = #tpu.dot_dimension_numbers<[1], [0], [0], [1], [0, 0, 1, 1], [], []>} : vector<16x16xf32>, vector<16x256xf32>, vector<16x256xf32> -> vector<16x256xf32>
    %cst_54 = arith.constant dense<0.000000e+00> : vector<16x256xf32>
    %109 = tpu.matmul %11, %107, %cst_54 {dimension_numbers = #tpu.dot_dimension_numbers<[1], [0], [0], [1], [0, 0, 1, 1], [], []>} : vector<16x16xf32>, vector<16x256xf32>, vector<16x256xf32> -> vector<16x256xf32>
    %110 = tpu.concatenate %108, %107, %109 in 1 : vector<16x256xf32>, vector<16x256xf32>, vector<16x256xf32> -> vector<16x768xf32>
    %111 = arith.truncf %110 : vector<16x768xf32> to vector<16x768xbf16>
    %c3 = arith.constant 3 : index
    %c0_55 = arith.constant 0 : index
    %c0_56 = arith.constant 0 : index
    %112 = vector.load %arg2[%c3, %c0_55, %c0_56] : memref<5x768x256xbf16, #tpu.memory_space<vmem>>, vector<1x768x256xbf16>
    %113 = vector.shape_cast %112 : vector<1x768x256xbf16> to vector<768x256xbf16>
    %cst_57 = arith.constant dense<0.000000e+00> : vector<16x256xf32>
    %114 = tpu.matmul %111, %113, %cst_57 {dimension_numbers = #tpu.dot_dimension_numbers<[1], [0], [0], [1], [0, 0, 1, 1], [], []>} : vector<16x768xbf16>, vector<768x256xbf16>, vector<16x256xf32> -> vector<16x256xf32>
    %c3_58 = arith.constant 3 : index
    %c0_59 = arith.constant 0 : index
    %c0_60 = arith.constant 0 : index
    %115 = vector.load %arg3[%c3_58, %c0_59, %c0_60] : memref<5x1x256xf32, #tpu.memory_space<vmem>>, vector<1x1x256xf32>
    %116 = vector.shape_cast %115 : vector<1x1x256xf32> to vector<1x256xf32>
    %117 = vector.broadcast %116 : vector<1x256xf32> to vector<16x256xf32>
    %118 = arith.addf %114, %117 : vector<16x256xf32>
    %cst_61 = arith.constant dense<0.000000e+00> : vector<256xf32>
    %119 = vector.multi_reduction <add>, %118, %cst_61 [0] : vector<16x256xf32> to vector<256xf32>
    %120 = vector.shape_cast %119 : vector<256xf32> to vector<1x256xf32>
    %cst_62 = arith.constant dense<0xFF800000> : vector<256xf32>
    %121 = vector.multi_reduction <maximumf>, %118, %cst_62 [0] : vector<16x256xf32> to vector<256xf32>
    %122 = vector.shape_cast %121 : vector<256xf32> to vector<1x256xf32>
    %c16_i32_63 = arith.constant 16 : i32
    %123 = tpu.dynamic_rotate %120 by %c16_i32_63 dim 1 : vector<1x256xf32>, i32 -> vector<1x256xf32>
    %124 = arith.addf %120, %123 : vector<1x256xf32>
    %c32_i32_64 = arith.constant 32 : i32
    %125 = tpu.dynamic_rotate %124 by %c32_i32_64 dim 1 : vector<1x256xf32>, i32 -> vector<1x256xf32>
    %126 = arith.addf %124, %125 : vector<1x256xf32>
    %c64_i32_65 = arith.constant 64 : i32
    %127 = tpu.dynamic_rotate %126 by %c64_i32_65 dim 1 : vector<1x256xf32>, i32 -> vector<1x256xf32>
    %128 = arith.addf %126, %127 : vector<1x256xf32>
    %c128_i32_66 = arith.constant 128 : i32
    %129 = tpu.dynamic_rotate %128 by %c128_i32_66 dim 1 : vector<1x256xf32>, i32 -> vector<1x256xf32>
    %130 = arith.addf %128, %129 : vector<1x256xf32>
    %cst_67 = arith.constant 3.906250e-03 : f32
    %131 = vector.broadcast %cst_67 : f32 to vector<1x256xf32>
    %132 = arith.mulf %130, %131 : vector<1x256xf32>
    %c16_i32_68 = arith.constant 16 : i32
    %133 = tpu.dynamic_rotate %122 by %c16_i32_68 dim 1 : vector<1x256xf32>, i32 -> vector<1x256xf32>
    %134 = arith.maximumf %122, %133 : vector<1x256xf32>
    %c32_i32_69 = arith.constant 32 : i32
    %135 = tpu.dynamic_rotate %134 by %c32_i32_69 dim 1 : vector<1x256xf32>, i32 -> vector<1x256xf32>
    %136 = arith.maximumf %134, %135 : vector<1x256xf32>
    %c64_i32_70 = arith.constant 64 : i32
    %137 = tpu.dynamic_rotate %136 by %c64_i32_70 dim 1 : vector<1x256xf32>, i32 -> vector<1x256xf32>
    %138 = arith.maximumf %136, %137 : vector<1x256xf32>
    %c128_i32_71 = arith.constant 128 : i32
    %139 = tpu.dynamic_rotate %138 by %c128_i32_71 dim 1 : vector<1x256xf32>, i32 -> vector<1x256xf32>
    %140 = arith.maximumf %138, %139 : vector<1x256xf32>
    %c1_72 = arith.constant 1 : index
    %141 = memref.load %arg4[%c1_72] : memref<2xf32, #tpu.memory_space<smem>>
    %142 = vector.broadcast %141 : f32 to vector<1x256xf32>
    %143 = arith.mulf %142, %132 : vector<1x256xf32>
    %cst_73 = arith.constant 1.000000e+00 : f32
    %144 = arith.subf %cst_73, %141 : f32
    %145 = vector.broadcast %144 : f32 to vector<1x256xf32>
    %146 = arith.mulf %145, %140 : vector<1x256xf32>
    %147 = arith.addf %143, %146 : vector<1x256xf32>
    %c1_74 = arith.constant 1 : index
    %c0_75 = arith.constant 0 : index
    %c0_76 = arith.constant 0 : index
    %148 = vector.load %arg5[%c1_74, %c0_75, %c0_76] : memref<2x4x256xf32, #tpu.memory_space<vmem>>, vector<1x4x256xf32>
    %149 = vector.shape_cast %148 : vector<1x4x256xf32> to vector<4x256xf32>
    %150 = vector.broadcast %147 : vector<1x256xf32> to vector<4x256xf32>
    %151 = arith.mulf %149, %150 : vector<4x256xf32>
    %cst_77 = arith.constant dense<0.000000e+00> : vector<4xf32>
    %152 = vector.multi_reduction <add>, %151, %cst_77 [1] : vector<4x256xf32> to vector<4xf32>
    %153 = vector.shape_cast %152 : vector<4xf32> to vector<4x1xf32>
    %c1_78 = arith.constant 1 : index
    %c0_79 = arith.constant 0 : index
    %c0_80 = arith.constant 0 : index
    %154 = vector.load %arg6[%c1_78, %c0_79, %c0_80] : memref<2x4x1xf32, #tpu.memory_space<vmem>>, vector<1x4x1xf32>
    %155 = vector.shape_cast %154 : vector<1x4x1xf32> to vector<4x1xf32>
    %156 = arith.addf %153, %155 : vector<4x1xf32>
    %cst_81 = arith.constant 0.000000e+00 : f32
    %157 = vector.broadcast %cst_81 : f32 to vector<4x1xf32>
    %158 = arith.maximumf %156, %157 : vector<4x1xf32>
    %c1_82 = arith.constant 1 : index
    %c0_83 = arith.constant 0 : index
    %c0_84 = arith.constant 0 : index
    %159 = vector.load %arg7[%c1_82, %c0_83, %c0_84] : memref<2x4x256xf32, #tpu.memory_space<vmem>>, vector<1x4x256xf32>
    %160 = vector.shape_cast %159 : vector<1x4x256xf32> to vector<4x256xf32>
    %161 = vector.broadcast %158 : vector<4x1xf32> to vector<4x256xf32>
    %162 = arith.mulf %160, %161 : vector<4x256xf32>
    %cst_85 = arith.constant dense<0.000000e+00> : vector<256xf32>
    %163 = vector.multi_reduction <add>, %162, %cst_85 [0] : vector<4x256xf32> to vector<256xf32>
    %164 = vector.shape_cast %163 : vector<256xf32> to vector<1x256xf32>
    %c1_86 = arith.constant 1 : index
    %c0_87 = arith.constant 0 : index
    %c0_88 = arith.constant 0 : index
    %165 = vector.load %arg8[%c1_86, %c0_87, %c0_88] : memref<2x1x256xf32, #tpu.memory_space<vmem>>, vector<1x1x256xf32>
    %166 = vector.shape_cast %165 : vector<1x1x256xf32> to vector<1x256xf32>
    %167 = arith.addf %164, %166 : vector<1x256xf32>
    %168 = arith.negf %167 : vector<1x256xf32>
    %169 = math.exp %168 : vector<1x256xf32>
    %cst_89 = arith.constant 1.000000e+00 : f32
    %170 = vector.broadcast %cst_89 : f32 to vector<1x256xf32>
    %171 = arith.addf %170, %169 : vector<1x256xf32>
    %172 = arith.divf %170, %171 : vector<1x256xf32>
    %173 = vector.broadcast %172 : vector<1x256xf32> to vector<16x256xf32>
    %174 = arith.mulf %118, %173 : vector<16x256xf32>
    %175 = arith.addf %174, %94 : vector<16x256xf32>
    %cst_90 = arith.constant dense<0.000000e+00> : vector<16x256xf32>
    %176 = tpu.matmul %6, %175, %cst_90 {dimension_numbers = #tpu.dot_dimension_numbers<[1], [0], [0], [1], [0, 0, 1, 1], [], []>} : vector<16x16xf32>, vector<16x256xf32>, vector<16x256xf32> -> vector<16x256xf32>
    %cst_91 = arith.constant dense<0.000000e+00> : vector<16x256xf32>
    %177 = tpu.matmul %11, %175, %cst_91 {dimension_numbers = #tpu.dot_dimension_numbers<[1], [0], [0], [1], [0, 0, 1, 1], [], []>} : vector<16x16xf32>, vector<16x256xf32>, vector<16x256xf32> -> vector<16x256xf32>
    %178 = tpu.concatenate %176, %175, %177 in 1 : vector<16x256xf32>, vector<16x256xf32>, vector<16x256xf32> -> vector<16x768xf32>
    %179 = arith.truncf %178 : vector<16x768xf32> to vector<16x768xbf16>
    %c4 = arith.constant 4 : index
    %c0_92 = arith.constant 0 : index
    %c0_93 = arith.constant 0 : index
    %180 = vector.load %arg2[%c4, %c0_92, %c0_93] : memref<5x768x256xbf16, #tpu.memory_space<vmem>>, vector<1x768x256xbf16>
    %181 = vector.shape_cast %180 : vector<1x768x256xbf16> to vector<768x256xbf16>
    %cst_94 = arith.constant dense<0.000000e+00> : vector<16x256xf32>
    %182 = tpu.matmul %179, %181, %cst_94 {dimension_numbers = #tpu.dot_dimension_numbers<[1], [0], [0], [1], [0, 0, 1, 1], [], []>} : vector<16x768xbf16>, vector<768x256xbf16>, vector<16x256xf32> -> vector<16x256xf32>
    %c4_95 = arith.constant 4 : index
    %c0_96 = arith.constant 0 : index
    %c0_97 = arith.constant 0 : index
    %183 = vector.load %arg3[%c4_95, %c0_96, %c0_97] : memref<5x1x256xf32, #tpu.memory_space<vmem>>, vector<1x1x256xf32>
    %184 = vector.shape_cast %183 : vector<1x1x256xf32> to vector<1x256xf32>
    %185 = vector.broadcast %184 : vector<1x256xf32> to vector<16x256xf32>
    %186 = arith.addf %182, %185 : vector<16x256xf32>
    %187 = arith.addf %186, %13 : vector<16x256xf32>
    %c0_98 = arith.constant 0 : index
    %c0_99 = arith.constant 0 : index
    %c0_100 = arith.constant 0 : index
    %188 = vector.load %arg9[%c0_98, %c0_99, %c0_100] : memref<1x16x256xf32, #tpu.memory_space<vmem>>, vector<1x16x256xf32>
    %189 = vector.shape_cast %188 : vector<1x16x256xf32> to vector<16x256xf32>
    %190 = vector.shape_cast %187 : vector<16x256xf32> to vector<1x16x256xf32>
    tpu.vector_store %arg9[%c0_98, %c0_99, %c0_100], %190 {strides = array<i32>} : memref<1x16x256xf32, #tpu.memory_space<vmem>>, vector<1x16x256xf32>,
    return
  }
  func.func @transform_0(%arg0: i32) -> (i32, i32, i32) {
    %c0_i32 = arith.constant 0 : i32
    %c0_i32_0 = arith.constant 0 : i32
    %c0_i32_1 = arith.constant 0 : i32
    return %arg0, %c0_i32, %c0_i32_0 : i32, i32, i32
  }
  func.func @transform_1(%arg0: i32) -> (i32, i32, i32) {
    %c0_i32 = arith.constant 0 : i32
    %c0_i32_0 = arith.constant 0 : i32
    %c0_i32_1 = arith.constant 0 : i32
    %c0_i32_2 = arith.constant 0 : i32
    return %c0_i32, %c0_i32_0, %c0_i32_1 : i32, i32, i32
  }
  func.func @transform_2(%arg0: i32) -> (i32, i32, i32) {
    %c0_i32 = arith.constant 0 : i32
    %c0_i32_0 = arith.constant 0 : i32
    %c0_i32_1 = arith.constant 0 : i32
    %c0_i32_2 = arith.constant 0 : i32
    return %c0_i32, %c0_i32_0, %c0_i32_1 : i32, i32, i32
  }
  func.func @transform_3(%arg0: i32) -> i32 {
    %c0_i32 = arith.constant 0 : i32
    %c0_i32_0 = arith.constant 0 : i32
    return %c0_i32 : i32
  }
  func.func @transform_4(%arg0: i32) -> (i32, i32, i32) {
    %c0_i32 = arith.constant 0 : i32
    %c0_i32_0 = arith.constant 0 : i32
    %c0_i32_1 = arith.constant 0 : i32
    %c0_i32_2 = arith.constant 0 : i32
    return %c0_i32, %c0_i32_0, %c0_i32_1 : i32, i32, i32
  }
  func.func @transform_5(%arg0: i32) -> (i32, i32, i32) {
    %c0_i32 = arith.constant 0 : i32
    %c0_i32_0 = arith.constant 0 : i32
    %c0_i32_1 = arith.constant 0 : i32
    %c0_i32_2 = arith.constant 0 : i32
    return %c0_i32, %c0_i32_0, %c0_i32_1 : i32, i32, i32
  }
  func.func @transform_6(%arg0: i32) -> (i32, i32, i32) {
    %c0_i32 = arith.constant 0 : i32
    %c0_i32_0 = arith.constant 0 : i32
    %c0_i32_1 = arith.constant 0 : i32
    %c0_i32_2 = arith.constant 0 : i32
    return %c0_i32, %c0_i32_0, %c0_i32_1 : i32, i32, i32
  }
  func.func @transform_7(%arg0: i32) -> (i32, i32, i32) {
    %c0_i32 = arith.constant 0 : i32
    %c0_i32_0 = arith.constant 0 : i32
    %c0_i32_1 = arith.constant 0 : i32
    %c0_i32_2 = arith.constant 0 : i32
    return %c0_i32, %c0_i32_0, %c0_i32_1 : i32, i32, i32
  }
  func.func @transform_8(%arg0: i32) -> (i32, i32, i32) {
    %c0_i32 = arith.constant 0 : i32
    %c0_i32_0 = arith.constant 0 : i32
    %c0_i32_1 = arith.constant 0 : i32
    return %arg0, %c0_i32, %c0_i32_0 : i32, i32, i32
  }
}

</mosaic_0001>

<llo_original>
// kernel: residual_group_forward.1
$region0: #{residual_group_forward.1}
  #allocation0 [shape = 'u32[]', space=smem, size = 0x4, offset = 0x4, fixed_abs, tag = 'smem constant byte address 0x4 - core index']
  #allocation1 [shape = 'u32[72,128]{1,0:T(1,128)}', space=vmem, size = 0x9000, scoped, tag = 'internal scratch']
  %s0 = inlined_call_operand.vmem [shape: f32[2,16,256], index: 0, kind: input, shape index: {}]
  %s1 = inlined_call_operand.vmem [shape: bf16[5,768,256], index: 1, kind: input, shape index: {}]
  %s2 = inlined_call_operand.vmem [shape: f32[5,1,256], index: 2, kind: input, shape index: {}]
  %s3 = inlined_call_operand.vmem [shape: f32[2], index: 3, kind: input, shape index: {}]
  %s4 = inlined_call_operand.vmem [shape: f32[2,4,256], index: 4, kind: input, shape index: {}]
  %s5 = inlined_call_operand.vmem [shape: f32[2,4,1], index: 5, kind: input, shape index: {}]
  %s6 = inlined_call_operand.vmem [shape: f32[2,4,256], index: 6, kind: input, shape index: {}]
  %s7 = inlined_call_operand.vmem [shape: f32[2,1,256], index: 7, kind: input, shape index: {}]
  %s8 = inlined_call_operand.vmem [shape: f32[2,16,256], index: 8, kind: output, shape index: {}]
  %s9 = sld [smem:[#allocation0]]
  $region69: #{residual_group_forward.1} parent=0
    _
  %s11 = ssub.s32 1, %s9
  %s12 = scalar_select 0, %s11, %s9
  $region1: #{residual_group_forward.1} parent=0
    #allocation2 [shape = 'u8[512]{0}', space=smem, size = 0x200, scoped, tag = 'input window, operand 3, single buffered']
    #allocation3 [shape = 's32[2]{0}', space=sflag, size = 0x8, scoped, tag = 'scoped memory for residual_group_forward.1']
    %13 = vsyncpa [#allocation3], 0
    loop: start=0, step=1, limit=4
    $region2: #{residual_group_forward.1} parent=1 // loop_pre_header
      _
    $region3: #{residual_group_forward.1} parent=1 // loop_header
      %s15 = sphi 0, %s19
      %p16 = scmp.ge.s32.totalorder %s15, 4
      %s25 = sphi 0, %s27
      %s28 = sphi 0, %s25
      %s29 = sphi 0, %s28
      %s45 = sphi 0, %s29
      %s49 = sphi 0, %s49
      %s51 = sphi 0, %s49
      %s52 = sphi 0, %s51
      %s66 = sphi 0, %s52
      %s70 = sphi 0, %s70
      %s72 = sphi 0, %s70
      %s73 = sphi 0, %s72
      %s87 = sphi 0, %s73
      %s91 = sphi 0, %s91
      %s93 = sphi 0, %s91
      %s94 = sphi 0, %s93
      %s108 = sphi 0, %s94
      %s112 = sphi 0, %s112
      %s114 = sphi 0, %s112
      %s115 = sphi 0, %s114
      %s129 = sphi 0, %s115
      %s133 = sphi 0, %s133
      %s135 = sphi 0, %s133
      %s136 = sphi 0, %s135
      %s150 = sphi 0, %s136
      %s154 = sphi 0, %s154
      %s156 = sphi 0, %s154
      %s157 = sphi 0, %s156
      %s171 = sphi 0, %s157
      %s175 = sphi 0, %s175
      %s177 = sphi 0, %s175
      %s178 = sphi 0, %s177
      %s192 = sphi 0, %s178
      %s198 = sphi 0, %s200
      %s201 = sphi 0, %s198
      %s202 = sphi 0, %s201
      %s218 = sphi 0, %s202
    $region4: #{residual_group_forward.1} parent=1 // loop_header_branch
      %18 = sbr.rel (%p16) target = $region8
    $region5: #{residual_group_forward.1} parent=1 // loop_body
      %s20 = ssub.s32 %s15, 1
      %s21 = ssub.s32 %s15, 2
      %s22 = sadd.s32 %s15, 1
      %s23 = ssub.s32 %s15, %s22
      %p24 = scmp.eq.s32.totalorder %s23, 0
      %s26 = sadd.s32 %s25, 1
      %s27 = scalar_select %p24, %s25, %s26
      %p30 = pneg %p24
      %p31 = scmp.eq.s32.totalorder %s15, 1
      %p32 = por %p30, %p31
      %p33 = scmp.ne.s32.totalorder %s25, %s28
      %p34 = scmp.eq.s32.totalorder %s15, 0
      %p35 = por %p33, %p34
      %p36 = scmp.ne.s32.totalorder %s25, %s28
      %p37 = scmp.eq.s32.totalorder %s20, 1
      %p38 = por %p36, %p37
      %p39 = scmp.ne.s32.totalorder %s28, %s29
      %p40 = scmp.eq.s32.totalorder %s20, 0
      %p41 = por %p39, %p40
      %p42 = scmp.ne.s32.totalorder %s28, %s29
      %p43 = scmp.eq.s32.totalorder %s21, 1
      %p44 = por %p42, %p43
      %p46 = scmp.ne.s32.totalorder %s29, %s45
      %p47 = scmp.eq.s32.totalorder %s21, 0
      %p48 = por %p46, %p47
      %s50 = sadd.s32 %s49, 1
      %p53 = scmp.eq.s32.totalorder %s15, 1
      %p54 = scmp.ne.s32.totalorder %s49, %s51
      %p55 = scmp.eq.s32.totalorder %s15, 0
      %p56 = por %p54, %p55
      %p57 = scmp.ne.s32.totalorder %s49, %s51
      %p58 = scmp.eq.s32.totalorder %s20, 1
      %p59 = por %p57, %p58
      %p60 = scmp.ne.s32.totalorder %s51, %s52
      %p61 = scmp.eq.s32.totalorder %s20, 0
      %p62 = por %p60, %p61
      %p63 = scmp.ne.s32.totalorder %s51, %s52
      %p64 = scmp.eq.s32.totalorder %s21, 1
      %p65 = por %p63, %p64
      %p67 = scmp.ne.s32.totalorder %s52, %s66
      %p68 = scmp.eq.s32.totalorder %s21, 0
      %p69 = por %p67, %p68
      %s71 = sadd.s32 %s70, 1
      %p74 = scmp.eq.s32.totalorder %s15, 1
      %p75 = scmp.ne.s32.totalorder %s70, %s72
      %p76 = scmp.eq.s32.totalorder %s15, 0
      %p77 = por %p75, %p76
      %p78 = scmp.ne.s32.totalorder %s70, %s72
      %p79 = scmp.eq.s32.totalorder %s20, 1
      %p80 = por %p78, %p79
      %p81 = scmp.ne.s32.totalorder %s72, %s73
      %p82 = scmp.eq.s32.totalorder %s20, 0
      %p83 = por %p81, %p82
      %p84 = scmp.ne.s32.totalorder %s72, %s73
      %p85 = scmp.eq.s32.totalorder %s21, 1
      %p86 = por %p84, %p85
      %p88 = scmp.ne.s32.totalorder %s73, %s87
      %p89 = scmp.eq.s32.totalorder %s21, 0
      %p90 = por %p88, %p89
      %s92 = sadd.s32 %s91, 1
      %p95 = scmp.eq.s32.totalorder %s15, 1
      %p96 = scmp.ne.s32.totalorder %s91, %s93
      %p97 = scmp.eq.s32.totalorder %s15, 0
      %p98 = por %p96, %p97
      %p99 = scmp.ne.s32.totalorder %s91, %s93
      %p100 = scmp.eq.s32.totalorder %s20, 1
      %p101 = por %p99, %p100
      %p102 = scmp.ne.s32.totalorder %s93, %s94
      %p103 = scmp.eq.s32.totalorder %s20, 0
      %p104 = por %p102, %p103
      %p105 = scmp.ne.s32.totalorder %s93, %s94
      %p106 = scmp.eq.s32.totalorder %s21, 1
      %p107 = por %p105, %p106
      %p109 = scmp.ne.s32.totalorder %s94, %s108
      %p110 = scmp.eq.s32.totalorder %s21, 0
      %p111 = por %p109, %p110
      %s113 = sadd.s32 %s112, 1
      %p116 = scmp.eq.s32.totalorder %s15, 1
      %p117 = scmp.ne.s32.totalorder %s112, %s114
      %p118 = scmp.eq.s32.totalorder %s15, 0
      %p119 = por %p117, %p118
      %p120 = scmp.ne.s32.totalorder %s112, %s114
      %p121 = scmp.eq.s32.totalorder %s20, 1
      %p122 = por %p120, %p121
      %p123 = scmp.ne.s32.totalorder %s114, %s115
      %p124 = scmp.eq.s32.totalorder %s20, 0
      %p125 = por %p123, %p124
      %p126 = scmp.ne.s32.totalorder %s114, %s115
      %p127 = scmp.eq.s32.totalorder %s21, 1
      %p128 = por %p126, %p127
      %p130 = scmp.ne.s32.totalorder %s115, %s129
      %p131 = scmp.eq.s32.totalorder %s21, 0
      %p132 = por %p130, %p131
      %s134 = sadd.s32 %s133, 1
      %p137 = scmp.eq.s32.totalorder %s15, 1
      %p138 = scmp.ne.s32.totalorder %s133, %s135
      %p139 = scmp.eq.s32.totalorder %s15, 0
      %p140 = por %p138, %p139
      %p141 = scmp.ne.s32.totalorder %s133, %s135
      %p142 = scmp.eq.s32.totalorder %s20, 1
      %p143 = por %p141, %p142
      %p144 = scmp.ne.s32.totalorder %s135, %s136
      %p145 = scmp.eq.s32.totalorder %s20, 0
      %p146 = por %p144, %p145
      %p147 = scmp.ne.s32.totalorder %s135, %s136
      %p148 = scmp.eq.s32.totalorder %s21, 1
      %p149 = por %p147, %p148
      %p151 = scmp.ne.s32.totalorder %s136, %s150
      %p152 = scmp.eq.s32.totalorder %s21, 0
      %p153 = por %p151, %p152
      %s155 = sadd.s32 %s154, 1
      %p158 = scmp.eq.s32.totalorder %s15, 1
      %p159 = scmp.ne.s32.totalorder %s154, %s156
      %p160 = scmp.eq.s32.totalorder %s15, 0
      %p161 = por %p159, %p160
      %p162 = scmp.ne.s32.totalorder %s154, %s156
      %p163 = scmp.eq.s32.totalorder %s20, 1
      %p164 = por %p162, %p163
      %p165 = scmp.ne.s32.totalorder %s156, %s157
      %p166 = scmp.eq.s32.totalorder %s20, 0
      %p167 = por %p165, %p166
      %p168 = scmp.ne.s32.totalorder %s156, %s157
      %p169 = scmp.eq.s32.totalorder %s21, 1
      %p170 = por %p168, %p169
      %p172 = scmp.ne.s32.totalorder %s157, %s171
      %p173 = scmp.eq.s32.totalorder %s21, 0
      %p174 = por %p172, %p173
      %s176 = sadd.s32 %s175, 1
      %p179 = scmp.eq.s32.totalorder %s15, 1
      %p180 = scmp.ne.s32.totalorder %s175, %s177
      %p181 = scmp.eq.s32.totalorder %s15, 0
      %p182 = por %p180, %p181
      %p183 = scmp.ne.s32.totalorder %s175, %s177
      %p184 = scmp.eq.s32.totalorder %s20, 1
      %p185 = por %p183, %p184
      %p186 = scmp.ne.s32.totalorder %s177, %s178
      %p187 = scmp.eq.s32.totalorder %s20, 0
      %p188 = por %p186, %p187
      %p189 = scmp.ne.s32.totalorder %s177, %s178
      %p190 = scmp.eq.s32.totalorder %s21, 1
      %p191 = por %p189, %p190
      %p193 = scmp.ne.s32.totalorder %s178, %s192
      %p194 = scmp.eq.s32.totalorder %s21, 0
      %p195 = por %p193, %p194
      %s196 = ssub.s32 %s15, %s22
      %p197 = scmp.eq.s32.totalorder %s196, 0
      %s199 = sadd.s32 %s198, 1
      %s200 = scalar_select %p197, %s198, %s199
      %p203 = pneg %p197
      %p204 = scmp.eq.s32.totalorder %s15, 1
      %p205 = por %p203, %p204
      %p206 = scmp.ne.s32.totalorder %s198, %s201
      %p207 = scmp.eq.s32.totalorder %s15, 0
      %p208 = por %p206, %p207
      %p209 = scmp.ne.s32.totalorder %s198, %s201
      %p210 = scmp.eq.s32.totalorder %s20, 1
      %p211 = por %p209, %p210
      %p212 = scmp.ne.s32.totalorder %s201, %s202
      %p213 = scmp.eq.s32.totalorder %s20, 0
      %p214 = por %p212, %p213
      %p215 = scmp.ne.s32.totalorder %s201, %s202
      %p216 = scmp.eq.s32.totalorder %s21, 1
      %p217 = por %p215, %p216
      %p219 = scmp.ne.s32.totalorder %s202, %s218
      %p220 = scmp.eq.s32.totalorder %s21, 0
      %p221 = por %p219, %p220
      %p222 = scmp.le.s32.totalorder 1, %s15
      %p223 = scmp.lt.s32.totalorder %s15, 3
      %p224 = pnand %p222, %p223
      %p225 = pneg %p224
      // Predicated region
      $region9: #{residual_group_forward.1} parent=5 // pred_check
        _
      $region10: #{residual_group_forward.1} parent=5 // pred_check_branch
        %227 = sbr.rel (%p224) target = $region12
      $region11: #{residual_group_forward.1} parent=5 // pred_region
        %s228 = ssub.s32 %s15, 1
        // Predicated region
        $region13: #{residual_group_forward.1} parent=11 // pred_check
          %p229 = pneg %p62
        $region14: #{residual_group_forward.1} parent=11 // pred_check_branch
          %231 = sbr.rel (%p229) target = $region16
        $region15: #{residual_group_forward.1} parent=11 // pred_region
          _
        $region16: #{residual_group_forward.1} parent=11 // pred_fallthru
          _
        // Predicated region
        $region17: #{residual_group_forward.1} parent=11 // pred_check
          %p232 = pneg %p83
        $region18: #{residual_group_forward.1} parent=11 // pred_check_branch
          %234 = sbr.rel (%p232) target = $region20
        $region19: #{residual_group_forward.1} parent=11 // pred_region
          _
        $region20: #{residual_group_forward.1} parent=11 // pred_fallthru
          _
        // Predicated region
        $region21: #{residual_group_forward.1} parent=11 // pred_check
          %p235 = pneg %p104
        $region22: #{residual_group_forward.1} parent=11 // pred_check_branch
          %237 = sbr.rel (%p235) target = $region24
        $region23: #{residual_group_forward.1} parent=11 // pred_region
          %239 = vsyncadd [#allocation3], 0
          %s241 = sshll.u32 %s3, 4
          %s242 = int_to_ptr.vmem [resolvable:$true] %s241
          %244 = dma.vmem_to_smem %s242, 16, [#allocation2], [#allocation3]
        $region24: #{residual_group_forward.1} parent=11 // pred_fallthru
          _
        // Predicated region
        $region25: #{residual_group_forward.1} parent=11 // pred_check
          %p245 = pneg %p125
        $region26: #{residual_group_forward.1} parent=11 // pred_check_branch
          %247 = sbr.rel (%p245) target = $region28
        $region27: #{residual_group_forward.1} parent=11 // pred_region
          _
        $region28: #{residual_group_forward.1} parent=11 // pred_fallthru
          _
        // Predicated region
        $region29: #{residual_group_forward.1} parent=11 // pred_check
          %p248 = pneg %p146
        $region30: #{residual_group_forward.1} parent=11 // pred_check_branch
          %250 = sbr.rel (%p248) target = $region32
        $region31: #{residual_group_forward.1} parent=11 // pred_region
          _
        $region32: #{residual_group_forward.1} parent=11 // pred_fallthru
          _
        // Predicated region
        $region33: #{residual_group_forward.1} parent=11 // pred_check
          %p251 = pneg %p167
        $region34: #{residual_group_forward.1} parent=11 // pred_check_branch
          %253 = sbr.rel (%p251) target = $region36
        $region35: #{residual_group_forward.1} parent=11 // pred_region
          _
        $region36: #{residual_group_forward.1} parent=11 // pred_fallthru
          _
        // Predicated region
        $region37: #{residual_group_forward.1} parent=11 // pred_check
          %p254 = pneg %p188
        $region38: #{residual_group_forward.1} parent=11 // pred_check_branch
          %256 = sbr.rel (%p254) target = $region40
        $region39: #{residual_group_forward.1} parent=11 // pred_region
          _
        $region40: #{residual_group_forward.1} parent=11 // pred_fallthru
          _
      $region12: #{residual_group_forward.1} parent=5 // pred_fallthru
        _
      %p257 = scmp.lt.s32.totalorder %s15, 2
      // Predicated region
      $region41: #{residual_group_forward.1} parent=5 // pred_check
        %p258 = pneg %p257
      $region42: #{residual_group_forward.1} parent=5 // pred_check_branch
        %260 = sbr.rel (%p258) target = $region44
      $region43: #{residual_group_forward.1} parent=5 // pred_region
        // Predicated region
        $region45: #{residual_group_forward.1} parent=43 // pred_check
          %p261 = pneg %p35
        $region46: #{residual_group_forward.1} parent=43 // pred_check_branch
          %263 = sbr.rel (%p261) target = $region48
        $region47: #{residual_group_forward.1} parent=43 // pred_region
          %p264 = scmp.lt.s32.totalorder %s15, 1
          %s265 = scalar_select %p264, %s15, 1
          %s266 = smul.addr %s265, 4
          %s267 = smul.addr %s266, 8
          %s268 = scalar_lea.vmem %s0, %s267
        $region48: #{residual_group_forward.1} parent=43 // pred_fallthru
          _
      $region44: #{residual_group_forward.1} parent=5 // pred_fallthru
        _
      %p269 = scmp.le.s32.totalorder 1, %s15
      %p270 = scmp.lt.s32.totalorder %s15, 3
      %p271 = pnand %p269, %p270
      %p272 = pneg %p271
      // Predicated region
      $region49: #{residual_group_forward.1} parent=5 // pred_check
        _
      $region50: #{residual_group_forward.1} parent=5 // pred_check_branch
        %274 = sbr.rel (%p271) target = $region52
      $region51: #{residual_group_forward.1} parent=5 // pred_region
        %s275 = ssub.s32 %s15, 1
        // Predicated region
        $region53: #{residual_group_forward.1} parent=51 // pred_check
          %p276 = pneg %p104
        $region54: #{residual_group_forward.1} parent=51 // pred_check_branch
          %278 = sbr.rel (%p276) target = $region56
        $region55: #{residual_group_forward.1} parent=51 // pred_region
          %280 = dma.done [#allocation3], 16
        $region56: #{residual_group_forward.1} parent=51 // pred_fallthru
          _
        %281 = sfence
        %p282 = scmp.lt.s32.totalorder %s20, 1
        %s283 = scalar_select %p282, %s20, 1
        %s284 = smul.addr %s283, 4
        %s285 = smul.addr %s284, 8
        %s286 = scalar_lea.vmem %s0, %s285
        %p287 = pneg %p41
        %p288 = pneg %p38
        %p289 = pneg %p62
        %p290 = pneg %p59
        %p291 = pneg %p83
        %p292 = pneg %p80
        %p293 = pneg %p104
        %p294 = pneg %p101
        %p295 = pneg %p125
        %p296 = pneg %p122
        %p297 = pneg %p146
        %p298 = pneg %p143
        %p299 = pneg %p167
        %p300 = pneg %p164
        %p301 = pneg %p188
        %p302 = pneg %p185
        %p303 = pneg %p214
        %p304 = pneg %p211
        %p305 = scmp.lt.s32.totalorder %s20, 1
        %s306 = scalar_select %p305, %s20, 1
        %s307 = smul.addr %s306, 4
        %s308 = smul.addr %s307, 8
        %s309 = scalar_lea.vmem %s8, %s308
        %p310 = scmp.lt.s32.totalorder %s20, 1
        %s311 = scalar_select %p310, %s20, 1
        %s312 = smul.addr %s311, 4
        %s313 = smul.addr %s312, 8
        %s314 = scalar_lea.vmem %s0, %s313
        %p315 = scmp.lt.s32.totalorder %s20, 1
        %s316 = scalar_select %p315, %s20, 1
        %s317 = smul.addr %s316, 4
        %s318 = smul.addr %s317, 8
        %s319 = scalar_lea.vmem %s8, %s318
        %v320 = vlaneseq
        %v321 = vshrl.u32 %v320, 7
        %v322 = vadd.s32 %v321, 8
        %v323 = vlaneseq
        %v324 = vand.u32 %v323, 127
        %v325 = vadd.s32 %v321, 4294967295
        %v326 = vadd.s32 %v322, 4294967295
        %vm327 = vcmp.eq.s32.totalorder %v324, %v325
        %vm328 = vcmp.eq.s32.totalorder %v324, %v326
        %v329 = vsel %vm327, 1, 0
        %v330 = vsel %vm328, 1, 0
        %v331 = vcvt.s32.f32 %v329
        %v332 = vcvt.s32.f32 %v330
        %v333 = vadd.s32 %v321, 1
        %v334 = vadd.s32 %v322, 1
        %vm335 = vcmp.eq.s32.totalorder %v324, %v333
        %vm336 = vcmp.eq.s32.totalorder %v324, %v334
        %v337 = vsel %vm335, 1, 0
        %v338 = vsel %vm336, 1, 0
        %v339 = vcvt.s32.f32 %v337
        %v340 = vcvt.s32.f32 %v338
        %v341 = vld [vmem:[%s314] sm:$0xff]
        %v342 = vld [vmem:[%s314 + $0x8] sm:$0xff]
        %v343 = vld [vmem:[%s314 + $0x10] sm:$0xff]
        %v344 = vld [vmem:[%s314 + $0x18] sm:$0xff]
        %vm345 = vcmask 130048
        %v347 = vsel %vm345, %v331, 0
        %v350 = vsel %vm345, %v332, 0
        %352 = vmatpush.msra.mxu0 0.0
        %353 = vmatpush.msra.mxu0 0.0
        %354 = vmatpush.msra.mxu0 0.0
        %355 = vmatpush.msra.mxu0 0.0
        %356 = vmatpush.msra.mxu0 0.0
        %357 = vmatpush.msra.mxu0 0.0
        %358 = vmatpush.msra.mxu0 0.0
        %359 = vmatpush.msra.mxu0 0.0
        %360 = vmatpush.msra.mxu0 0.0
        %361 = vmatpush.msra.mxu0 0.0
        %362 = vmatpush.msra.mxu0 0.0
        %363 = vmatpush.msra.mxu0 0.0
        %364 = vmatpush.msra.mxu0 0.0
        %365 = vmatpush.msra.mxu0 0.0
        %366 = vmatpush.msra.mxu0 %v343
        %367 = vmatpush.msra.mxu0 %v341
        %368 = vmatmul.f32.gmra.mxu0 %v347
        %v369 = vpop.f32.mrf.mxu0
        %v370 = vadd.f32 0.0, %v369
        %371 = vmatmul.f32.gmra.mxu0 %v350
        %v372 = vpop.f32.mrf.mxu0
        %v373 = vadd.f32 0.0, %v372
        %374 = vdwg.mxu0
        %375 = vmatpush.msra.mxu0 0.0
        %376 = vmatpush.msra.mxu0 0.0
        %377 = vmatpush.msra.mxu0 0.0
        %378 = vmatpush.msra.mxu0 0.0
        %379 = vmatpush.msra.mxu0 0.0
        %380 = vmatpush.msra.mxu0 0.0
        %381 = vmatpush.msra.mxu0 0.0
        %382 = vmatpush.msra.mxu0 0.0
        %383 = vmatpush.msra.mxu0 0.0
        %384 = vmatpush.msra.mxu0 0.0
        %385 = vmatpush.msra.mxu0 0.0
        %386 = vmatpush.msra.mxu0 0.0
        %387 = vmatpush.msra.mxu0 0.0
        %388 = vmatpush.msra.mxu0 0.0
        %389 = vmatpush.msra.mxu0 %v344
        %390 = vmatpush.msra.mxu0 %v342
        %391 = vmatmul.f32.gmra.mxu0 %v347
        %v392 = vpop.f32.mrf.mxu0
        %v393 = vadd.f32 0.0, %v392
        %394 = vmatmul.f32.gmra.mxu0 %v350
        %v395 = vpop.f32.mrf.mxu0
        %v396 = vadd.f32 0.0, %v395
        %397 = vdwg.mxu0
        %v399 = vsel %vm345, %v339, 0
        %v402 = vsel %vm345, %v340, 0
        %404 = vmatpush.msra.mxu0 0.0
        %405 = vmatpush.msra.mxu0 0.0
        %406 = vmatpush.msra.mxu0 0.0
        %407 = vmatpush.msra.mxu0 0.0
        %408 = vmatpush.msra.mxu0 0.0
        %409 = vmatpush.msra.mxu0 0.0
        %410 = vmatpush.msra.mxu0 0.0
        %411 = vmatpush.msra.mxu0 0.0
        %412 = vmatpush.msra.mxu0 0.0
        %413 = vmatpush.msra.mxu0 0.0
        %414 = vmatpush.msra.mxu0 0.0
        %415 = vmatpush.msra.mxu0 0.0
        %416 = vmatpush.msra.mxu0 0.0
        %417 = vmatpush.msra.mxu0 0.0
        %418 = vmatpush.msra.mxu0 %v343
        %419 = vmatpush.msra.mxu0 %v341
        %420 = vmatmul.f32.gmra.mxu0 %v399
        %v421 = vpop.f32.mrf.mxu0
        %v422 = vadd.f32 0.0, %v421
        %423 = vmatmul.f32.gmra.mxu0 %v402
        %v424 = vpop.f32.mrf.mxu0
        %v425 = vadd.f32 0.0, %v424
        %426 = vdwg.mxu0
        %427 = vmatpush.msra.mxu0 0.0
        %428 = vmatpush.msra.mxu0 0.0
        %429 = vmatpush.msra.mxu0 0.0
        %430 = vmatpush.msra.mxu0 0.0
        %431 = vmatpush.msra.mxu0 0.0
        %432 = vmatpush.msra.mxu0 0.0
        %433 = vmatpush.msra.mxu0 0.0
        %434 = vmatpush.msra.mxu0 0.0
        %435 = vmatpush.msra.mxu0 0.0
        %436 = vmatpush.msra.mxu0 0.0
        %437 = vmatpush.msra.mxu0 0.0
        %438 = vmatpush.msra.mxu0 0.0
        %439 = vmatpush.msra.mxu0 0.0
        %440 = vmatpush.msra.mxu0 0.0
        %441 = vmatpush.msra.mxu0 %v344
        %442 = vmatpush.msra.mxu0 %v342
        %443 = vmatmul.f32.gmra.mxu0 %v399
        %v444 = vpop.f32.mrf.mxu0
        %v445 = vadd.f32 0.0, %v444
        %446 = vmatmul.f32.gmra.mxu0 %v402
        %v447 = vpop.f32.mrf.mxu0
        %v448 = vadd.f32 0.0, %v447
        %449 = vdwg.mxu0
        %v450 = vpack.c.bf16 %v373, %v370
        %v451 = vpack.c.bf16 %v396, %v393
        %v452 = vpack.c.bf16 %v343, %v341
        %v453 = vpack.c.bf16 %v344, %v342
        %v454 = vpack.c.bf16 %v425, %v422
        %v455 = vpack.c.bf16 %v448, %v445
        %v456 = vld [vmem:[%s1] sm:$0xff]
        %v457 = vld [vmem:[%s1 + $0x8] sm:$0xff]
        %v458 = vld [vmem:[%s1 + $0x10] sm:$0xff]
        %v459 = vld [vmem:[%s1 + $0x18] sm:$0xff]
        %v460 = vld [vmem:[%s1 + $0x20] sm:$0xff]
        %v461 = vld [vmem:[%s1 + $0x28] sm:$0xff]
        %v462 = vld [vmem:[%s1 + $0x30] sm:$0xff]
        %v463 = vld [vmem:[%s1 + $0x38] sm:$0xff]
        %v464 = vld [vmem:[%s1 + $0x40] sm:$0xff]
        %v465 = vld [vmem:[%s1 + $0x48] sm:$0xff]
        %v466 = vld [vmem:[%s1 + $0x50] sm:$0xff]
        %v467 = vld [vmem:[%s1 + $0x58] sm:$0xff]
        %v468 = vld [vmem:[%s1 + $0x60] sm:$0xff]
        %v469 = vld [vmem:[%s1 + $0x68] sm:$0xff]
        %v470 = vld [vmem:[%s1 + $0x70] sm:$0xff]
        %v471 = vld [vmem:[%s1 + $0x78] sm:$0xff]
        %v472 = vld [vmem:[%s1 + $0x80] sm:$0xff]
        %v473 = vld [vmem:[%s1 + $0x88] sm:$0xff]
        %v474 = vld [vmem:[%s1 + $0x90] sm:$0xff]
        %v475 = vld [vmem:[%s1 + $0x98] sm:$0xff]
        %v476 = vld [vmem:[%s1 + $0xa0] sm:$0xff]
        %v477 = vld [vmem:[%s1 + $0xa8] sm:$0xff]
        %v478 = vld [vmem:[%s1 + $0xb0] sm:$0xff]
        %v479 = vld [vmem:[%s1 + $0xb8] sm:$0xff]
        %v480 = vld [vmem:[%s1 + $0xc0] sm:$0xff]
        %v481 = vld [vmem:[%s1 + $0xc8] sm:$0xff]
        %v482 = vld [vmem:[%s1 + $0xd0] sm:$0xff]
        %v483 = vld [vmem:[%s1 + $0xd8] sm:$0xff]
        %v484 = vld [vmem:[%s1 + $0xe0] sm:$0xff]
        %v485 = vld [vmem:[%s1 + $0xe8] sm:$0xff]
        %v486 = vld [vmem:[%s1 + $0xf0] sm:$0xff]
        %v487 = vld [vmem:[%s1 + $0xf8] sm:$0xff]
        %v488 = vld [vmem:[%s1 + $0x100] sm:$0xff]
        %v489 = vld [vmem:[%s1 + $0x108] sm:$0xff]
        %v490 = vld [vmem:[%s1 + $0x110] sm:$0xff]
        %v491 = vld [vmem:[%s1 + $0x118] sm:$0xff]
        %v492 = vld [vmem:[%s1 + $0x120] sm:$0xff]
        %v493 = vld [vmem:[%s1 + $0x128] sm:$0xff]
        %v494 = vld [vmem:[%s1 + $0x130] sm:$0xff]
        %v495 = vld [vmem:[%s1 + $0x138] sm:$0xff]
        %v496 = vld [vmem:[%s1 + $0x140] sm:$0xff]
        %v497 = vld [vmem:[%s1 + $0x148] sm:$0xff]
        %v498 = vld [vmem:[%s1 + $0x150] sm:$0xff]
        %v499 = vld [vmem:[%s1 + $0x158] sm:$0xff]
        %v500 = vld [vmem:[%s1 + $0x160] sm:$0xff]
        %v501 = vld [vmem:[%s1 + $0x168] sm:$0xff]
        %v502 = vld [vmem:[%s1 + $0x170] sm:$0xff]
        %v503 = vld [vmem:[%s1 + $0x178] sm:$0xff]
        %v504 = vld [vmem:[%s1 + $0x180] sm:$0xff]
        %v505 = vld [vmem:[%s1 + $0x188] sm:$0xff]
        %v506 = vld [vmem:[%s1 + $0x190] sm:$0xff]
        %v507 = vld [vmem:[%s1 + $0x198] sm:$0xff]
        %v508 = vld [vmem:[%s1 + $0x1a0] sm:$0xff]
        %v509 = vld [vmem:[%s1 + $0x1a8] sm:$0xff]
        %v510 = vld [vmem:[%s1 + $0x1b0] sm:$0xff]
        %v511 = vld [vmem:[%s1 + $0x1b8] sm:$0xff]
        %v512 = vld [vmem:[%s1 + $0x1c0] sm:$0xff]
        %v513 = vld [vmem:[%s1 + $0x1c8] sm:$0xff]
        %v514 = vld [vmem:[%s1 + $0x1d0] sm:$0xff]
        %v515 = vld [vmem:[%s1 + $0x1d8] sm:$0xff]
        %v516 = vld [vmem:[%s1 + $0x1e0] sm:$0xff]
        %v517 = vld [vmem:[%s1 + $0x1e8] sm:$0xff]
        %v518 = vld [vmem:[%s1 + $0x1f0] sm:$0xff]
        %v519 = vld [vmem:[%s1 + $0x1f8] sm:$0xff]
        %v520 = vld [vmem:[%s1 + $0x200] sm:$0xff]
        %v521 = vld [vmem:[%s1 + $0x208] sm:$0xff]
        %v522 = vld [vmem:[%s1 + $0x210] sm:$0xff]
        %v523 = vld [vmem:[%s1 + $0x218] sm:$0xff]
        %v524 = vld [vmem:[%s1 + $0x220] sm:$0xff]
        %v525 = vld [vmem:[%s1 + $0x228] sm:$0xff]
        %v526 = vld [vmem:[%s1 + $0x230] sm:$0xff]
        %v527 = vld [vmem:[%s1 + $0x238] sm:$0xff]
        %v528 = vld [vmem:[%s1 + $0x240] sm:$0xff]
        %v529 = vld [vmem:[%s1 + $0x248] sm:$0xff]
        %v530 = vld [vmem:[%s1 + $0x250] sm:$0xff]
        %v531 = vld [vmem:[%s1 + $0x258] sm:$0xff]
        %v532 = vld [vmem:[%s1 + $0x260] sm:$0xff]
        %v533 = vld [vmem:[%s1 + $0x268] sm:$0xff]
        %v534 = vld [vmem:[%s1 + $0x270] sm:$0xff]
        %v535 = vld [vmem:[%s1 + $0x278] sm:$0xff]
        %v536 = vld [vmem:[%s1 + $0x280] sm:$0xff]
        %v537 = vld [vmem:[%s1 + $0x288] sm:$0xff]
        %v538 = vld [vmem:[%s1 + $0x290] sm:$0xff]
        %v539 = vld [vmem:[%s1 + $0x298] sm:$0xff]
        %v540 = vld [vmem:[%s1 + $0x2a0] sm:$0xff]
        %v541 = vld [vmem:[%s1 + $0x2a8] sm:$0xff]
        %v542 = vld [vmem:[%s1 + $0x2b0] sm:$0xff]
        %v543 = vld [vmem:[%s1 + $0x2b8] sm:$0xff]
        %v544 = vld [vmem:[%s1 + $0x2c0] sm:$0xff]
        %v545 = vld [vmem:[%s1 + $0x2c8] sm:$0xff]
        %v546 = vld [vmem:[%s1 + $0x2d0] sm:$0xff]
        %v547 = vld [vmem:[%s1 + $0x2d8] sm:$0xff]
        %v548 = vld [vmem:[%s1 + $0x2e0] sm:$0xff]
        %v549 = vld [vmem:[%s1 + $0x2e8] sm:$0xff]
        %v550 = vld [vmem:[%s1 + $0x2f0] sm:$0xff]
        %v551 = vld [vmem:[%s1 + $0x2f8] sm:$0xff]
        %v552 = vld [vmem:[%s2] sm:$0x3]
        %v554 = vperm.slane %v552, 0
        %v555 = vperm.slane %v552, 1
        %v654 = vunpack.c.l.b16 %v456
        %v655 = vunpack.c.h.b16 %v456
        %v656 = vunpack.c.l.b16 %v457
        %v657 = vunpack.c.h.b16 %v457
        %v658 = vunpack.c.l.b16 %v458
        %v659 = vunpack.c.h.b16 %v458
        %v660 = vunpack.c.l.b16 %v459
        %v661 = vunpack.c.h.b16 %v459
        %v662 = vunpack.c.l.b16 %v460
        %v663 = vunpack.c.h.b16 %v460
        %v664 = vunpack.c.l.b16 %v461
        %v665 = vunpack.c.h.b16 %v461
        %v666 = vunpack.c.l.b16 %v462
        %v667 = vunpack.c.h.b16 %v462
        %v668 = vunpack.c.l.b16 %v463
        %v669 = vunpack.c.h.b16 %v463
        %v670 = vunpack.c.l.b16 %v464
        %v671 = vunpack.c.h.b16 %v464
        %v672 = vunpack.c.l.b16 %v465
        %v673 = vunpack.c.h.b16 %v465
        %v674 = vunpack.c.l.b16 %v466
        %v675 = vunpack.c.h.b16 %v466
        %v676 = vunpack.c.l.b16 %v467
        %v677 = vunpack.c.h.b16 %v467
        %v678 = vunpack.c.l.b16 %v468
        %v679 = vunpack.c.h.b16 %v468
        %v680 = vunpack.c.l.b16 %v469
        %v681 = vunpack.c.h.b16 %v469
        %v682 = vunpack.c.l.b16 %v470
        %v683 = vunpack.c.h.b16 %v470
        %v684 = vunpack.c.l.b16 %v471
        %v685 = vunpack.c.h.b16 %v471
        %v686 = vunpack.c.l.b16 %v472
        %v687 = vunpack.c.h.b16 %v472
        %v688 = vunpack.c.l.b16 %v473
        %v689 = vunpack.c.h.b16 %v473
        %v690 = vunpack.c.l.b16 %v474
        %v691 = vunpack.c.h.b16 %v474
        %v692 = vunpack.c.l.b16 %v475
        %v693 = vunpack.c.h.b16 %v475
        %v694 = vunpack.c.l.b16 %v476
        %v695 = vunpack.c.h.b16 %v476
        %v696 = vunpack.c.l.b16 %v477
        %v697 = vunpack.c.h.b16 %v477
        %v698 = vunpack.c.l.b16 %v478
        %v699 = vunpack.c.h.b16 %v478
        %v700 = vunpack.c.l.b16 %v479
        %v701 = vunpack.c.h.b16 %v479
        %v702 = vunpack.c.l.b16 %v480
        %v703 = vunpack.c.h.b16 %v480
        %v704 = vunpack.c.l.b16 %v481
        %v705 = vunpack.c.h.b16 %v481
        %v706 = vunpack.c.l.b16 %v482
        %v707 = vunpack.c.h.b16 %v482
        %v708 = vunpack.c.l.b16 %v483
        %v709 = vunpack.c.h.b16 %v483
        %v710 = vunpack.c.l.b16 %v484
        %v711 = vunpack.c.h.b16 %v484
        %v712 = vunpack.c.l.b16 %v485
        %v713 = vunpack.c.h.b16 %v485
        %v714 = vunpack.c.l.b16 %v486
        %v715 = vunpack.c.h.b16 %v486
        %v716 = vunpack.c.l.b16 %v487
        %v717 = vunpack.c.h.b16 %v487
        %v718 = vunpack.c.l.b16 %v488
        %v719 = vunpack.c.h.b16 %v488
        %v720 = vunpack.c.l.b16 %v489
        %v721 = vunpack.c.h.b16 %v489
        %v722 = vunpack.c.l.b16 %v490
        %v723 = vunpack.c.h.b16 %v490
        %v724 = vunpack.c.l.b16 %v491
        %v725 = vunpack.c.h.b16 %v491
        %v726 = vunpack.c.l.b16 %v492
        %v727 = vunpack.c.h.b16 %v492
        %v728 = vunpack.c.l.b16 %v493
        %v729 = vunpack.c.h.b16 %v493
        %v730 = vunpack.c.l.b16 %v494
        %v731 = vunpack.c.h.b16 %v494
        %v732 = vunpack.c.l.b16 %v495
        %v733 = vunpack.c.h.b16 %v495
        %v734 = vunpack.c.l.b16 %v496
        %v735 = vunpack.c.h.b16 %v496
        %v736 = vunpack.c.l.b16 %v497
        %v737 = vunpack.c.h.b16 %v497
        %v738 = vunpack.c.l.b16 %v498
        %v739 = vunpack.c.h.b16 %v498
        %v740 = vunpack.c.l.b16 %v499
        %v741 = vunpack.c.h.b16 %v499
        %v742 = vunpack.c.l.b16 %v500
        %v743 = vunpack.c.h.b16 %v500
        %v744 = vunpack.c.l.b16 %v501
        %v745 = vunpack.c.h.b16 %v501
        %v746 = vunpack.c.l.b16 %v502
        %v747 = vunpack.c.h.b16 %v502
        %v748 = vunpack.c.l.b16 %v503
        %v749 = vunpack.c.h.b16 %v503
        %v750 = vunpack.c.l.b16 %v504
        %v751 = vunpack.c.h.b16 %v504
        %v752 = vunpack.c.l.b16 %v505
        %v753 = vunpack.c.h.b16 %v505
        %v754 = vunpack.c.l.b16 %v506
        %v755 = vunpack.c.h.b16 %v506
        %v756 = vunpack.c.l.b16 %v507
        %v757 = vunpack.c.h.b16 %v507
        %v758 = vunpack.c.l.b16 %v508
        %v759 = vunpack.c.h.b16 %v508
        %v760 = vunpack.c.l.b16 %v509
        %v761 = vunpack.c.h.b16 %v509
        %v762 = vunpack.c.l.b16 %v510
        %v763 = vunpack.c.h.b16 %v510
        %v764 = vunpack.c.l.b16 %v511
        %v765 = vunpack.c.h.b16 %v511
        %v766 = vunpack.c.l.b16 %v512
        %v767 = vunpack.c.h.b16 %v512
        %v768 = vunpack.c.l.b16 %v513
        %v769 = vunpack.c.h.b16 %v513
        %v770 = vunpack.c.l.b16 %v514
        %v771 = vunpack.c.h.b16 %v514
        %v772 = vunpack.c.l.b16 %v515
        %v773 = vunpack.c.h.b16 %v515
        %v774 = vunpack.c.l.b16 %v516
        %v775 = vunpack.c.h.b16 %v516
        %v776 = vunpack.c.l.b16 %v517
        %v777 = vunpack.c.h.b16 %v517
        %v778 = vunpack.c.l.b16 %v518
        %v779 = vunpack.c.h.b16 %v518
        %v780 = vunpack.c.l.b16 %v519
        %v781 = vunpack.c.h.b16 %v519
        %v782 = vunpack.c.l.b16 %v520
        %v783 = vunpack.c.h.b16 %v520
        %v784 = vunpack.c.l.b16 %v521
        %v785 = vunpack.c.h.b16 %v521
        %v786 = vunpack.c.l.b16 %v522
        %v787 = vunpack.c.h.b16 %v522
        %v788 = vunpack.c.l.b16 %v523
        %v789 = vunpack.c.h.b16 %v523
        %v790 = vunpack.c.l.b16 %v524
        %v791 = vunpack.c.h.b16 %v524
        %v792 = vunpack.c.l.b16 %v525
        %v793 = vunpack.c.h.b16 %v525
        %v794 = vunpack.c.l.b16 %v526
        %v795 = vunpack.c.h.b16 %v526
        %v796 = vunpack.c.l.b16 %v527
        %v797 = vunpack.c.h.b16 %v527
        %v798 = vunpack.c.l.b16 %v528
        %v799 = vunpack.c.h.b16 %v528
        %v800 = vunpack.c.l.b16 %v529
        %v801 = vunpack.c.h.b16 %v529
        %v802 = vunpack.c.l.b16 %v530
        %v803 = vunpack.c.h.b16 %v530
        %v804 = vunpack.c.l.b16 %v531
        %v805 = vunpack.c.h.b16 %v531
        %v806 = vunpack.c.l.b16 %v532
        %v807 = vunpack.c.h.b16 %v532
        %v808 = vunpack.c.l.b16 %v533
        %v809 = vunpack.c.h.b16 %v533
        %v810 = vunpack.c.l.b16 %v534
        %v811 = vunpack.c.h.b16 %v534
        %v812 = vunpack.c.l.b16 %v535
        %v813 = vunpack.c.h.b16 %v535
        %v814 = vunpack.c.l.b16 %v536
        %v815 = vunpack.c.h.b16 %v536
        %v816 = vunpack.c.l.b16 %v537
        %v817 = vunpack.c.h.b16 %v537
        %v818 = vunpack.c.l.b16 %v538
        %v819 = vunpack.c.h.b16 %v538
        %v820 = vunpack.c.l.b16 %v539
        %v821 = vunpack.c.h.b16 %v539
        %v822 = vunpack.c.l.b16 %v540
        %v823 = vunpack.c.h.b16 %v540
        %v824 = vunpack.c.l.b16 %v541
        %v825 = vunpack.c.h.b16 %v541
        %v826 = vunpack.c.l.b16 %v542
        %v827 = vunpack.c.h.b16 %v542
        %v828 = vunpack.c.l.b16 %v543
        %v829 = vunpack.c.h.b16 %v543
        %v830 = vunpack.c.l.b16 %v544
        %v831 = vunpack.c.h.b16 %v544
        %v832 = vunpack.c.l.b16 %v545
        %v833 = vunpack.c.h.b16 %v545
        %v834 = vunpack.c.l.b16 %v546
        %v835 = vunpack.c.h.b16 %v546
        %v836 = vunpack.c.l.b16 %v547
        %v837 = vunpack.c.h.b16 %v547
        %v838 = vunpack.c.l.b16 %v548
        %v839 = vunpack.c.h.b16 %v548
        %v840 = vunpack.c.l.b16 %v549
        %v841 = vunpack.c.h.b16 %v549
        %v842 = vunpack.c.l.b16 %v550
        %v843 = vunpack.c.h.b16 %v550
        %v844 = vunpack.c.l.b16 %v551
        %v845 = vunpack.c.h.b16 %v551
        %v846 = vpack.c.b16 %v656, %v654
        %v847 = vpack.c.b16 %v657, %v655
        %v848 = vpack.c.b16 %v660, %v658
        %v849 = vpack.c.b16 %v661, %v659
        %v850 = vpack.c.b16 %v664, %v662
        %v851 = vpack.c.b16 %v665, %v663
        %v852 = vpack.c.b16 %v668, %v666
        %v853 = vpack.c.b16 %v669, %v667
        %v854 = vpack.c.b16 %v672, %v670
        %v855 = vpack.c.b16 %v673, %v671
        %v856 = vpack.c.b16 %v676, %v674
        %v857 = vpack.c.b16 %v677, %v675
        %v858 = vpack.c.b16 %v680, %v678
        %v859 = vpack.c.b16 %v681, %v679
        %v860 = vpack.c.b16 %v684, %v682
        %v861 = vpack.c.b16 %v685, %v683
        %v862 = vpack.c.b16 %v688, %v686
        %v863 = vpack.c.b16 %v689, %v687
        %v864 = vpack.c.b16 %v692, %v690
        %v865 = vpack.c.b16 %v693, %v691
        %v866 = vpack.c.b16 %v696, %v694
        %v867 = vpack.c.b16 %v697, %v695
        %v868 = vpack.c.b16 %v700, %v698
        %v869 = vpack.c.b16 %v701, %v699
        %v870 = vpack.c.b16 %v704, %v702
        %v871 = vpack.c.b16 %v705, %v703
        %v872 = vpack.c.b16 %v708, %v706
        %v873 = vpack.c.b16 %v709, %v707
        %v874 = vpack.c.b16 %v712, %v710
        %v875 = vpack.c.b16 %v713, %v711
        %v876 = vpack.c.b16 %v716, %v714
        %v877 = vpack.c.b16 %v717, %v715
        %v878 = vpack.c.b16 %v720, %v718
        %v879 = vpack.c.b16 %v721, %v719
        %v880 = vpack.c.b16 %v724, %v722
        %v881 = vpack.c.b16 %v725, %v723
        %v882 = vpack.c.b16 %v728, %v726
        %v883 = vpack.c.b16 %v729, %v727
        %v884 = vpack.c.b16 %v732, %v730
        %v885 = vpack.c.b16 %v733, %v731
        %v886 = vpack.c.b16 %v736, %v734
        %v887 = vpack.c.b16 %v737, %v735
        %v888 = vpack.c.b16 %v740, %v738
        %v889 = vpack.c.b16 %v741, %v739
        %v890 = vpack.c.b16 %v744, %v742
        %v891 = vpack.c.b16 %v745, %v743
        %v892 = vpack.c.b16 %v748, %v746
        %v893 = vpack.c.b16 %v749, %v747
        %v894 = vpack.c.b16 %v752, %v750
        %v895 = vpack.c.b16 %v753, %v751
        %v896 = vpack.c.b16 %v756, %v754
        %v897 = vpack.c.b16 %v757, %v755
        %v898 = vpack.c.b16 %v760, %v758
        %v899 = vpack.c.b16 %v761, %v759
        %v900 = vpack.c.b16 %v764, %v762
        %v901 = vpack.c.b16 %v765, %v763
        %v902 = vpack.c.b16 %v768, %v766
        %v903 = vpack.c.b16 %v769, %v767
        %v904 = vpack.c.b16 %v772, %v770
        %v905 = vpack.c.b16 %v773, %v771
        %v906 = vpack.c.b16 %v776, %v774
        %v907 = vpack.c.b16 %v777, %v775
        %v908 = vpack.c.b16 %v780, %v778
        %v909 = vpack.c.b16 %v781, %v779
        %v910 = vpack.c.b16 %v784, %v782
        %v911 = vpack.c.b16 %v785, %v783
        %v912 = vpack.c.b16 %v788, %v786
        %v913 = vpack.c.b16 %v789, %v787
        %v914 = vpack.c.b16 %v792, %v790
        %v915 = vpack.c.b16 %v793, %v791
        %v916 = vpack.c.b16 %v796, %v794
        %v917 = vpack.c.b16 %v797, %v795
        %v918 = vpack.c.b16 %v800, %v798
        %v919 = vpack.c.b16 %v801, %v799
        %v920 = vpack.c.b16 %v804, %v802
        %v921 = vpack.c.b16 %v805, %v803
        %v922 = vpack.c.b16 %v808, %v806
        %v923 = vpack.c.b16 %v809, %v807
        %v924 = vpack.c.b16 %v812, %v810
        %v925 = vpack.c.b16 %v813, %v811
        %v926 = vpack.c.b16 %v816, %v814
        %v927 = vpack.c.b16 %v817, %v815
        %v928 = vpack.c.b16 %v820, %v818
        %v929 = vpack.c.b16 %v821, %v819
        %v930 = vpack.c.b16 %v824, %v822
        %v931 = vpack.c.b16 %v825, %v823
        %v932 = vpack.c.b16 %v828, %v826
        %v933 = vpack.c.b16 %v829, %v827
        %v934 = vpack.c.b16 %v832, %v830
        %v935 = vpack.c.b16 %v833, %v831
        %v936 = vpack.c.b16 %v836, %v834
        %v937 = vpack.c.b16 %v837, %v835
        %v938 = vpack.c.b16 %v840, %v838
        %v939 = vpack.c.b16 %v841, %v839
        %v940 = vpack.c.b16 %v844, %v842
        %v941 = vpack.c.b16 %v845, %v843
        %1038 = vmatpush.bf16.msra.mxu0 %v860
        %1039 = vmatpush.bf16.msra.mxu0 %v858
        %1040 = vmatpush.bf16.msra.mxu0 %v856
        %1041 = vmatpush.bf16.msra.mxu0 %v854
        %1042 = vmatpush.bf16.msra.mxu0 %v852
        %1043 = vmatpush.bf16.msra.mxu0 %v850
        %1044 = vmatpush.bf16.msra.mxu0 %v848
        %1045 = vmatpush.bf16.msra.mxu0 %v846
        %1046 = vmatmul.bf16.gmra.mxu0 %v450
        %v1047 = vpop.f32.mrf.mxu0
        %v1048 = vadd.f32 %v554, %v1047
        %v1049 = vpop.f32.mrf.mxu0
        %v1050 = vadd.f32 %v554, %v1049
        %1051 = vdwg.mxu0
        %1052 = vmatpush.bf16.msra.mxu0 %v876
        %1053 = vmatpush.bf16.msra.mxu0 %v874
        %1054 = vmatpush.bf16.msra.mxu0 %v872
        %1055 = vmatpush.bf16.msra.mxu0 %v870
        %1056 = vmatpush.bf16.msra.mxu0 %v868
        %1057 = vmatpush.bf16.msra.mxu0 %v866
        %1058 = vmatpush.bf16.msra.mxu0 %v864
        %1059 = vmatpush.bf16.msra.mxu0 %v862
        %1060 = vmatmul.bf16.gmra.mxu0 %v451
        %v1061 = vpop.f32.mrf.mxu0
        %v1062 = vadd.f32 %v1048, %v1061
        %v1063 = vpop.f32.mrf.mxu0
        %v1064 = vadd.f32 %v1050, %v1063
        %1065 = vdwg.mxu0
        %1066 = vmatpush.bf16.msra.mxu0 %v892
        %1067 = vmatpush.bf16.msra.mxu0 %v890
        %1068 = vmatpush.bf16.msra.mxu0 %v888
        %1069 = vmatpush.bf16.msra.mxu0 %v886
        %1070 = vmatpush.bf16.msra.mxu0 %v884
        %1071 = vmatpush.bf16.msra.mxu0 %v882
        %1072 = vmatpush.bf16.msra.mxu0 %v880
        %1073 = vmatpush.bf16.msra.mxu0 %v878
        %1074 = vmatmul.bf16.gmra.mxu0 %v452
        %v1075 = vpop.f32.mrf.mxu0
        %v1076 = vadd.f32 %v1062, %v1075
        %v1077 = vpop.f32.mrf.mxu0
        %v1078 = vadd.f32 %v1064, %v1077
        %1079 = vdwg.mxu0
        %1080 = vmatpush.bf16.msra.mxu0 %v908
        %1081 = vmatpush.bf16.msra.mxu0 %v906
        %1082 = vmatpush.bf16.msra.mxu0 %v904
        %1083 = vmatpush.bf16.msra.mxu0 %v902
        %1084 = vmatpush.bf16.msra.mxu0 %v900
        %1085 = vmatpush.bf16.msra.mxu0 %v898
        %1086 = vmatpush.bf16.msra.mxu0 %v896
        %1087 = vmatpush.bf16.msra.mxu0 %v894
        %1088 = vmatmul.bf16.gmra.mxu0 %v453
        %v1089 = vpop.f32.mrf.mxu0
        %v1090 = vadd.f32 %v1076, %v1089
        %v1091 = vpop.f32.mrf.mxu0
        %v1092 = vadd.f32 %v1078, %v1091
        %1093 = vdwg.mxu0
        %1094 = vmatpush.bf16.msra.mxu0 %v924
        %1095 = vmatpush.bf16.msra.mxu0 %v922
        %1096 = vmatpush.bf16.msra.mxu0 %v920
        %1097 = vmatpush.bf16.msra.mxu0 %v918
        %1098 = vmatpush.bf16.msra.mxu0 %v916
        %1099 = vmatpush.bf16.msra.mxu0 %v914
        %1100 = vmatpush.bf16.msra.mxu0 %v912
        %1101 = vmatpush.bf16.msra.mxu0 %v910
        %1102 = vmatmul.bf16.gmra.mxu0 %v454
        %v1103 = vpop.f32.mrf.mxu0
        %v1104 = vadd.f32 %v1090, %v1103
        %v1105 = vpop.f32.mrf.mxu0
        %v1106 = vadd.f32 %v1092, %v1105
        %1107 = vdwg.mxu0
        %1108 = vmatpush.bf16.msra.mxu0 %v940
        %1109 = vmatpush.bf16.msra.mxu0 %v938
        %1110 = vmatpush.bf16.msra.mxu0 %v936
        %1111 = vmatpush.bf16.msra.mxu0 %v934
        %1112 = vmatpush.bf16.msra.mxu0 %v932
        %1113 = vmatpush.bf16.msra.mxu0 %v930
        %1114 = vmatpush.bf16.msra.mxu0 %v928
        %1115 = vmatpush.bf16.msra.mxu0 %v926
        %1116 = vmatmul.bf16.gmra.mxu0 %v455
        %v1117 = vpop.f32.mrf.mxu0
        %v1118 = vadd.f32 %v1104, %v1117
        %v1119 = vpop.f32.mrf.mxu0
        %v1120 = vadd.f32 %v1106, %v1119
        %1121 = vdwg.mxu0
        %1122 = vmatpush.bf16.msra.mxu0 %v861
        %1123 = vmatpush.bf16.msra.mxu0 %v859
        %1124 = vmatpush.bf16.msra.mxu0 %v857
        %1125 = vmatpush.bf16.msra.mxu0 %v855
        %1126 = vmatpush.bf16.msra.mxu0 %v853
        %1127 = vmatpush.bf16.msra.mxu0 %v851
        %1128 = vmatpush.bf16.msra.mxu0 %v849
        %1129 = vmatpush.bf16.msra.mxu0 %v847
        %1130 = vmatmul.bf16.gmra.mxu0 %v450
        %v1131 = vpop.f32.mrf.mxu0
        %v1132 = vadd.f32 %v555, %v1131
        %v1133 = vpop.f32.mrf.mxu0
        %v1134 = vadd.f32 %v555, %v1133
        %1135 = vdwg.mxu0
        %1136 = vmatpush.bf16.msra.mxu0 %v877
        %1137 = vmatpush.bf16.msra.mxu0 %v875
        %1138 = vmatpush.bf16.msra.mxu0 %v873
        %1139 = vmatpush.bf16.msra.mxu0 %v871
        %1140 = vmatpush.bf16.msra.mxu0 %v869
        %1141 = vmatpush.bf16.msra.mxu0 %v867
        %1142 = vmatpush.bf16.msra.mxu0 %v865
        %1143 = vmatpush.bf16.msra.mxu0 %v863
        %1144 = vmatmul.bf16.gmra.mxu0 %v451
        %v1145 = vpop.f32.mrf.mxu0
        %v1146 = vadd.f32 %v1132, %v1145
        %v1147 = vpop.f32.mrf.mxu0
        %v1148 = vadd.f32 %v1134, %v1147
        %1149 = vdwg.mxu0
        %1150 = vmatpush.bf16.msra.mxu0 %v893
        %1151 = vmatpush.bf16.msra.mxu0 %v891
        %1152 = vmatpush.bf16.msra.mxu0 %v889
        %1153 = vmatpush.bf16.msra.mxu0 %v887
        %1154 = vmatpush.bf16.msra.mxu0 %v885
        %1155 = vmatpush.bf16.msra.mxu0 %v883
        %1156 = vmatpush.bf16.msra.mxu0 %v881
        %1157 = vmatpush.bf16.msra.mxu0 %v879
        %1158 = vmatmul.bf16.gmra.mxu0 %v452
        %v1159 = vpop.f32.mrf.mxu0
        %v1160 = vadd.f32 %v1146, %v1159
        %v1161 = vpop.f32.mrf.mxu0
        %v1162 = vadd.f32 %v1148, %v1161
        %1163 = vdwg.mxu0
        %1164 = vmatpush.bf16.msra.mxu0 %v909
        %1165 = vmatpush.bf16.msra.mxu0 %v907
        %1166 = vmatpush.bf16.msra.mxu0 %v905
        %1167 = vmatpush.bf16.msra.mxu0 %v903
        %1168 = vmatpush.bf16.msra.mxu0 %v901
        %1169 = vmatpush.bf16.msra.mxu0 %v899
        %1170 = vmatpush.bf16.msra.mxu0 %v897
        %1171 = vmatpush.bf16.msra.mxu0 %v895
        %1172 = vmatmul.bf16.gmra.mxu0 %v453
        %v1173 = vpop.f32.mrf.mxu0
        %v1174 = vadd.f32 %v1160, %v1173
        %v1175 = vpop.f32.mrf.mxu0
        %v1176 = vadd.f32 %v1162, %v1175
        %1177 = vdwg.mxu0
        %1178 = vmatpush.bf16.msra.mxu0 %v925
        %1179 = vmatpush.bf16.msra.mxu0 %v923
        %1180 = vmatpush.bf16.msra.mxu0 %v921
        %1181 = vmatpush.bf16.msra.mxu0 %v919
        %1182 = vmatpush.bf16.msra.mxu0 %v917
        %1183 = vmatpush.bf16.msra.mxu0 %v915
        %1184 = vmatpush.bf16.msra.mxu0 %v913
        %1185 = vmatpush.bf16.msra.mxu0 %v911
        %1186 = vmatmul.bf16.gmra.mxu0 %v454
        %v1187 = vpop.f32.mrf.mxu0
        %v1188 = vadd.f32 %v1174, %v1187
        %v1189 = vpop.f32.mrf.mxu0
        %v1190 = vadd.f32 %v1176, %v1189
        %1191 = vdwg.mxu0
        %1192 = vmatpush.bf16.msra.mxu0 %v941
        %1193 = vmatpush.bf16.msra.mxu0 %v939
        %1194 = vmatpush.bf16.msra.mxu0 %v937
        %1195 = vmatpush.bf16.msra.mxu0 %v935
        %1196 = vmatpush.bf16.msra.mxu0 %v933
        %1197 = vmatpush.bf16.msra.mxu0 %v931
        %1198 = vmatpush.bf16.msra.mxu0 %v929
        %1199 = vmatpush.bf16.msra.mxu0 %v927
        %1200 = vmatmul.bf16.gmra.mxu0 %v455
        %v1201 = vpop.f32.mrf.mxu0
        %v1202 = vadd.f32 %v1188, %v1201
        %v1203 = vpop.f32.mrf.mxu0
        %v1204 = vadd.f32 %v1190, %v1203
        %1205 = vdwg.mxu0
        %v1206 = vmax.f32 %v1118, 0.0
        %v1207 = vmax.f32 %v1202, 0.0
        %v1208 = vmax.f32 %v1120, 0.0
        %v1209 = vmax.f32 %v1204, 0.0
        %1210 = vmatpush.msra.mxu0 0.0
        %1211 = vmatpush.msra.mxu0 0.0
        %1212 = vmatpush.msra.mxu0 0.0
        %1213 = vmatpush.msra.mxu0 0.0
        %1214 = vmatpush.msra.mxu0 0.0
        %1215 = vmatpush.msra.mxu0 0.0
        %1216 = vmatpush.msra.mxu0 0.0
        %1217 = vmatpush.msra.mxu0 0.0
        %1218 = vmatpush.msra.mxu0 0.0
        %1219 = vmatpush.msra.mxu0 0.0
        %1220 = vmatpush.msra.mxu0 0.0
        %1221 = vmatpush.msra.mxu0 0.0
        %1222 = vmatpush.msra.mxu0 0.0
        %1223 = vmatpush.msra.mxu0 0.0
        %1224 = vmatpush.msra.mxu0 %v1208
        %1225 = vmatpush.msra.mxu0 %v1206
        %1226 = vmatmul.f32.gmra.mxu0 %v347
        %v1227 = vpop.f32.mrf.mxu0
        %v1228 = vadd.f32 0.0, %v1227
        %1229 = vmatmul.f32.gmra.mxu0 %v350
        %v1230 = vpop.f32.mrf.mxu0
        %v1231 = vadd.f32 0.0, %v1230
        %1232 = vdwg.mxu0
        %1233 = vmatpush.msra.mxu0 0.0
        %1234 = vmatpush.msra.mxu0 0.0
        %1235 = vmatpush.msra.mxu0 0.0
        %1236 = vmatpush.msra.mxu0 0.0
        %1237 = vmatpush.msra.mxu0 0.0
        %1238 = vmatpush.msra.mxu0 0.0
        %1239 = vmatpush.msra.mxu0 0.0
        %1240 = vmatpush.msra.mxu0 0.0
        %1241 = vmatpush.msra.mxu0 0.0
        %1242 = vmatpush.msra.mxu0 0.0
        %1243 = vmatpush.msra.mxu0 0.0
        %1244 = vmatpush.msra.mxu0 0.0
        %1245 = vmatpush.msra.mxu0 0.0
        %1246 = vmatpush.msra.mxu0 0.0
        %1247 = vmatpush.msra.mxu0 %v1209
        %1248 = vmatpush.msra.mxu0 %v1207
        %1249 = vmatmul.f32.gmra.mxu0 %v347
        %v1250 = vpop.f32.mrf.mxu0
        %v1251 = vadd.f32 0.0, %v1250
        %1252 = vmatmul.f32.gmra.mxu0 %v350
        %v1253 = vpop.f32.mrf.mxu0
        %v1254 = vadd.f32 0.0, %v1253
        %1255 = vdwg.mxu0
        %1256 = vmatpush.msra.mxu0 0.0
        %1257 = vmatpush.msra.mxu0 0.0
        %1258 = vmatpush.msra.mxu0 0.0
        %1259 = vmatpush.msra.mxu0 0.0
        %1260 = vmatpush.msra.mxu0 0.0
        %1261 = vmatpush.msra.mxu0 0.0
        %1262 = vmatpush.msra.mxu0 0.0
        %1263 = vmatpush.msra.mxu0 0.0
        %1264 = vmatpush.msra.mxu0 0.0
        %1265 = vmatpush.msra.mxu0 0.0
        %1266 = vmatpush.msra.mxu0 0.0
        %1267 = vmatpush.msra.mxu0 0.0
        %1268 = vmatpush.msra.mxu0 0.0
        %1269 = vmatpush.msra.mxu0 0.0
        %1270 = vmatpush.msra.mxu0 %v1208
        %1271 = vmatpush.msra.mxu0 %v1206
        %1272 = vmatmul.f32.gmra.mxu0 %v399
        %v1273 = vpop.f32.mrf.mxu0
        %v1274 = vadd.f32 0.0, %v1273
        %1275 = vmatmul.f32.gmra.mxu0 %v402
        %v1276 = vpop.f32.mrf.mxu0
        %v1277 = vadd.f32 0.0, %v1276
        %1278 = vdwg.mxu0
        %1279 = vmatpush.msra.mxu0 0.0
        %1280 = vmatpush.msra.mxu0 0.0
        %1281 = vmatpush.msra.mxu0 0.0
        %1282 = vmatpush.msra.mxu0 0.0
        %1283 = vmatpush.msra.mxu0 0.0
        %1284 = vmatpush.msra.mxu0 0.0
        %1285 = vmatpush.msra.mxu0 0.0
        %1286 = vmatpush.msra.mxu0 0.0
        %1287 = vmatpush.msra.mxu0 0.0
        %1288 = vmatpush.msra.mxu0 0.0
        %1289 = vmatpush.msra.mxu0 0.0
        %1290 = vmatpush.msra.mxu0 0.0
        %1291 = vmatpush.msra.mxu0 0.0
        %1292 = vmatpush.msra.mxu0 0.0
        %1293 = vmatpush.msra.mxu0 %v1209
        %1294 = vmatpush.msra.mxu0 %v1207
        %1295 = vmatmul.f32.gmra.mxu0 %v399
        %v1296 = vpop.f32.mrf.mxu0
        %v1297 = vadd.f32 0.0, %v1296
        %1298 = vmatmul.f32.gmra.mxu0 %v402
        %v1299 = vpop.f32.mrf.mxu0
        %v1300 = vadd.f32 0.0, %v1299
        %1301 = vdwg.mxu0
        %v1302 = vpack.c.bf16 %v1231, %v1228
        %v1303 = vpack.c.bf16 %v1254, %v1251
        %v1304 = vpack.c.bf16 %v1208, %v1206
        %v1305 = vpack.c.bf16 %v1209, %v1207
        %v1306 = vpack.c.bf16 %v1277, %v1274
        %v1307 = vpack.c.bf16 %v1300, %v1297
        %s1308 = scalar_lea.vmem %s1, 768
        %v1309 = vld [vmem:[%s1308] sm:$0xff]
        %v1310 = vld [vmem:[%s1308 + $0x8] sm:$0xff]
        %v1311 = vld [vmem:[%s1308 + $0x10] sm:$0xff]
        %v1312 = vld [vmem:[%s1308 + $0x18] sm:$0xff]
        %v1313 = vld [vmem:[%s1308 + $0x20] sm:$0xff]
        %v1314 = vld [vmem:[%s1308 + $0x28] sm:$0xff]
        %v1315 = vld [vmem:[%s1308 + $0x30] sm:$0xff]
        %v1316 = vld [vmem:[%s1308 + $0x38] sm:$0xff]
        %v1317 = vld [vmem:[%s1308 + $0x40] sm:$0xff]
        %v1318 = vld [vmem:[%s1308 + $0x48] sm:$0xff]
        %v1319 = vld [vmem:[%s1308 + $0x50] sm:$0xff]
        %v1320 = vld [vmem:[%s1308 + $0x58] sm:$0xff]
        %v1321 = vld [vmem:[%s1308 + $0x60] sm:$0xff]
        %v1322 = vld [vmem:[%s1308 + $0x68] sm:$0xff]
        %v1323 = vld [vmem:[%s1308 + $0x70] sm:$0xff]
        %v1324 = vld [vmem:[%s1308 + $0x78] sm:$0xff]
        %v1325 = vld [vmem:[%s1308 + $0x80] sm:$0xff]
        %v1326 = vld [vmem:[%s1308 + $0x88] sm:$0xff]
        %v1327 = vld [vmem:[%s1308 + $0x90] sm:$0xff]
        %v1328 = vld [vmem:[%s1308 + $0x98] sm:$0xff]
        %v1329 = vld [vmem:[%s1308 + $0xa0] sm:$0xff]
        %v1330 = vld [vmem:[%s1308 + $0xa8] sm:$0xff]
        %v1331 = vld [vmem:[%s1308 + $0xb0] sm:$0xff]
        %v1332 = vld [vmem:[%s1308 + $0xb8] sm:$0xff]
        %v1333 = vld [vmem:[%s1308 + $0xc0] sm:$0xff]
        %v1334 = vld [vmem:[%s1308 + $0xc8] sm:$0xff]
        %v1335 = vld [vmem:[%s1308 + $0xd0] sm:$0xff]
        %v1336 = vld [vmem:[%s1308 + $0xd8] sm:$0xff]
        %v1337 = vld [vmem:[%s1308 + $0xe0] sm:$0xff]
        %v1338 = vld [vmem:[%s1308 + $0xe8] sm:$0xff]
        %v1339 = vld [vmem:[%s1308 + $0xf0] sm:$0xff]
        %v1340 = vld [vmem:[%s1308 + $0xf8] sm:$0xff]
        %v1341 = vld [vmem:[%s1308 + $0x100] sm:$0xff]
        %v1342 = vld [vmem:[%s1308 + $0x108] sm:$0xff]
        %v1343 = vld [vmem:[%s1308 + $0x110] sm:$0xff]
        %v1344 = vld [vmem:[%s1308 + $0x118] sm:$0xff]
        %v1345 = vld [vmem:[%s1308 + $0x120] sm:$0xff]
        %v1346 = vld [vmem:[%s1308 + $0x128] sm:$0xff]
        %v1347 = vld [vmem:[%s1308 + $0x130] sm:$0xff]
        %v1348 = vld [vmem:[%s1308 + $0x138] sm:$0xff]
        %v1349 = vld [vmem:[%s1308 + $0x140] sm:$0xff]
        %v1350 = vld [vmem:[%s1308 + $0x148] sm:$0xff]
        %v1351 = vld [vmem:[%s1308 + $0x150] sm:$0xff]
        %v1352 = vld [vmem:[%s1308 + $0x158] sm:$0xff]
        %v1353 = vld [vmem:[%s1308 + $0x160] sm:$0xff]
        %v1354 = vld [vmem:[%s1308 + $0x168] sm:$0xff]
        %v1355 = vld [vmem:[%s1308 + $0x170] sm:$0xff]
        %v1356 = vld [vmem:[%s1308 + $0x178] sm:$0xff]
        %v1357 = vld [vmem:[%s1308 + $0x180] sm:$0xff]
        %v1358 = vld [vmem:[%s1308 + $0x188] sm:$0xff]
        %v1359 = vld [vmem:[%s1308 + $0x190] sm:$0xff]
        %v1360 = vld [vmem:[%s1308 + $0x198] sm:$0xff]
        %v1361 = vld [vmem:[%s1308 + $0x1a0] sm:$0xff]
        %v1362 = vld [vmem:[%s1308 + $0x1a8] sm:$0xff]
        %v1363 = vld [vmem:[%s1308 + $0x1b0] sm:$0xff]
        %v1364 = vld [vmem:[%s1308 + $0x1b8] sm:$0xff]
        %v1365 = vld [vmem:[%s1308 + $0x1c0] sm:$0xff]
        %v1366 = vld [vmem:[%s1308 + $0x1c8] sm:$0xff]
        %v1367 = vld [vmem:[%s1308 + $0x1d0] sm:$0xff]
        %v1368 = vld [vmem:[%s1308 + $0x1d8] sm:$0xff]
        %v1369 = vld [vmem:[%s1308 + $0x1e0] sm:$0xff]
        %v1370 = vld [vmem:[%s1308 + $0x1e8] sm:$0xff]
        %v1371 = vld [vmem:[%s1308 + $0x1f0] sm:$0xff]
        %v1372 = vld [vmem:[%s1308 + $0x1f8] sm:$0xff]
        %v1373 = vld [vmem:[%s1308 + $0x200] sm:$0xff]
        %v1374 = vld [vmem:[%s1308 + $0x208] sm:$0xff]
        %v1375 = vld [vmem:[%s1308 + $0x210] sm:$0xff]
        %v1376 = vld [vmem:[%s1308 + $0x218] sm:$0xff]
        %v1377 = vld [vmem:[%s1308 + $0x220] sm:$0xff]
        %v1378 = vld [vmem:[%s1308 + $0x228] sm:$0xff]
        %v1379 = vld [vmem:[%s1308 + $0x230] sm:$0xff]
        %v1380 = vld [vmem:[%s1308 + $0x238] sm:$0xff]
        %v1381 = vld [vmem:[%s1308 + $0x240] sm:$0xff]
        %v1382 = vld [vmem:[%s1308 + $0x248] sm:$0xff]
        %v1383 = vld [vmem:[%s1308 + $0x250] sm:$0xff]
        %v1384 = vld [vmem:[%s1308 + $0x258] sm:$0xff]
        %v1385 = vld [vmem:[%s1308 + $0x260] sm:$0xff]
        %v1386 = vld [vmem:[%s1308 + $0x268] sm:$0xff]
        %v1387 = vld [vmem:[%s1308 + $0x270] sm:$0xff]
        %v1388 = vld [vmem:[%s1308 + $0x278] sm:$0xff]
        %v1389 = vld [vmem:[%s1308 + $0x280] sm:$0xff]
        %v1390 = vld [vmem:[%s1308 + $0x288] sm:$0xff]
        %v1391 = vld [vmem:[%s1308 + $0x290] sm:$0xff]
        %v1392 = vld [vmem:[%s1308 + $0x298] sm:$0xff]
        %v1393 = vld [vmem:[%s1308 + $0x2a0] sm:$0xff]
        %v1394 = vld [vmem:[%s1308 + $0x2a8] sm:$0xff]
        %v1395 = vld [vmem:[%s1308 + $0x2b0] sm:$0xff]
        %v1396 = vld [vmem:[%s1308 + $0x2b8] sm:$0xff]
        %v1397 = vld [vmem:[%s1308 + $0x2c0] sm:$0xff]
        %v1398 = vld [vmem:[%s1308 + $0x2c8] sm:$0xff]
        %v1399 = vld [vmem:[%s1308 + $0x2d0] sm:$0xff]
        %v1400 = vld [vmem:[%s1308 + $0x2d8] sm:$0xff]
        %v1401 = vld [vmem:[%s1308 + $0x2e0] sm:$0xff]
        %v1402 = vld [vmem:[%s1308 + $0x2e8] sm:$0xff]
        %v1403 = vld [vmem:[%s1308 + $0x2f0] sm:$0xff]
        %v1404 = vld [vmem:[%s1308 + $0x2f8] sm:$0xff]
        %s1405 = scalar_lea.vmem %s2, 2
        %v1406 = vld [vmem:[%s1405] sm:$0x3]
        %v1408 = vperm.slane %v1406, 0
        %v1409 = vperm.slane %v1406, 1
        %v1508 = vunpack.c.l.b16 %v1309
        %v1509 = vunpack.c.h.b16 %v1309
        %v1510 = vunpack.c.l.b16 %v1310
        %v1511 = vunpack.c.h.b16 %v1310
        %v1512 = vunpack.c.l.b16 %v1311
        %v1513 = vunpack.c.h.b16 %v1311
        %v1514 = vunpack.c.l.b16 %v1312
        %v1515 = vunpack.c.h.b16 %v1312
        %v1516 = vunpack.c.l.b16 %v1313
        %v1517 = vunpack.c.h.b16 %v1313
        %v1518 = vunpack.c.l.b16 %v1314
        %v1519 = vunpack.c.h.b16 %v1314
        %v1520 = vunpack.c.l.b16 %v1315
        %v1521 = vunpack.c.h.b16 %v1315
        %v1522 = vunpack.c.l.b16 %v1316
        %v1523 = vunpack.c.h.b16 %v1316
        %v1524 = vunpack.c.l.b16 %v1317
        %v1525 = vunpack.c.h.b16 %v1317
        %v1526 = vunpack.c.l.b16 %v1318
        %v1527 = vunpack.c.h.b16 %v1318
        %v1528 = vunpack.c.l.b16 %v1319
        %v1529 = vunpack.c.h.b16 %v1319
        %v1530 = vunpack.c.l.b16 %v1320
        %v1531 = vunpack.c.h.b16 %v1320
        %v1532 = vunpack.c.l.b16 %v1321
        %v1533 = vunpack.c.h.b16 %v1321
        %v1534 = vunpack.c.l.b16 %v1322
        %v1535 = vunpack.c.h.b16 %v1322
        %v1536 = vunpack.c.l.b16 %v1323
        %v1537 = vunpack.c.h.b16 %v1323
        %v1538 = vunpack.c.l.b16 %v1324
        %v1539 = vunpack.c.h.b16 %v1324
        %v1540 = vunpack.c.l.b16 %v1325
        %v1541 = vunpack.c.h.b16 %v1325
        %v1542 = vunpack.c.l.b16 %v1326
        %v1543 = vunpack.c.h.b16 %v1326
        %v1544 = vunpack.c.l.b16 %v1327
        %v1545 = vunpack.c.h.b16 %v1327
        %v1546 = vunpack.c.l.b16 %v1328
        %v1547 = vunpack.c.h.b16 %v1328
        %v1548 = vunpack.c.l.b16 %v1329
        %v1549 = vunpack.c.h.b16 %v1329
        %v1550 = vunpack.c.l.b16 %v1330
        %v1551 = vunpack.c.h.b16 %v1330
        %v1552 = vunpack.c.l.b16 %v1331
        %v1553 = vunpack.c.h.b16 %v1331
        %v1554 = vunpack.c.l.b16 %v1332
        %v1555 = vunpack.c.h.b16 %v1332
        %v1556 = vunpack.c.l.b16 %v1333
        %v1557 = vunpack.c.h.b16 %v1333
        %v1558 = vunpack.c.l.b16 %v1334
        %v1559 = vunpack.c.h.b16 %v1334
        %v1560 = vunpack.c.l.b16 %v1335
        %v1561 = vunpack.c.h.b16 %v1335
        %v1562 = vunpack.c.l.b16 %v1336
        %v1563 = vunpack.c.h.b16 %v1336
        %v1564 = vunpack.c.l.b16 %v1337
        %v1565 = vunpack.c.h.b16 %v1337
        %v1566 = vunpack.c.l.b16 %v1338
        %v1567 = vunpack.c.h.b16 %v1338
        %v1568 = vunpack.c.l.b16 %v1339
        %v1569 = vunpack.c.h.b16 %v1339
        %v1570 = vunpack.c.l.b16 %v1340
        %v1571 = vunpack.c.h.b16 %v1340
        %v1572 = vunpack.c.l.b16 %v1341
        %v1573 = vunpack.c.h.b16 %v1341
        %v1574 = vunpack.c.l.b16 %v1342
        %v1575 = vunpack.c.h.b16 %v1342
        %v1576 = vunpack.c.l.b16 %v1343
        %v1577 = vunpack.c.h.b16 %v1343
        %v1578 = vunpack.c.l.b16 %v1344
        %v1579 = vunpack.c.h.b16 %v1344
        %v1580 = vunpack.c.l.b16 %v1345
        %v1581 = vunpack.c.h.b16 %v1345
        %v1582 = vunpack.c.l.b16 %v1346
        %v1583 = vunpack.c.h.b16 %v1346
        %v1584 = vunpack.c.l.b16 %v1347
        %v1585 = vunpack.c.h.b16 %v1347
        %v1586 = vunpack.c.l.b16 %v1348
        %v1587 = vunpack.c.h.b16 %v1348
        %v1588 = vunpack.c.l.b16 %v1349
        %v1589 = vunpack.c.h.b16 %v1349
        %v1590 = vunpack.c.l.b16 %v1350
        %v1591 = vunpack.c.h.b16 %v1350
        %v1592 = vunpack.c.l.b16 %v1351
        %v1593 = vunpack.c.h.b16 %v1351
        %v1594 = vunpack.c.l.b16 %v1352
        %v1595 = vunpack.c.h.b16 %v1352
        %v1596 = vunpack.c.l.b16 %v1353
        %v1597 = vunpack.c.h.b16 %v1353
        %v1598 = vunpack.c.l.b16 %v1354
        %v1599 = vunpack.c.h.b16 %v1354
        %v1600 = vunpack.c.l.b16 %v1355
        %v1601 = vunpack.c.h.b16 %v1355
        %v1602 = vunpack.c.l.b16 %v1356
        %v1603 = vunpack.c.h.b16 %v1356
        %v1604 = vunpack.c.l.b16 %v1357
        %v1605 = vunpack.c.h.b16 %v1357
        %v1606 = vunpack.c.l.b16 %v1358
        %v1607 = vunpack.c.h.b16 %v1358
        %v1608 = vunpack.c.l.b16 %v1359
        %v1609 = vunpack.c.h.b16 %v1359
        %v1610 = vunpack.c.l.b16 %v1360
        %v1611 = vunpack.c.h.b16 %v1360
        %v1612 = vunpack.c.l.b16 %v1361
        %v1613 = vunpack.c.h.b16 %v1361
        %v1614 = vunpack.c.l.b16 %v1362
        %v1615 = vunpack.c.h.b16 %v1362
        %v1616 = vunpack.c.l.b16 %v1363
        %v1617 = vunpack.c.h.b16 %v1363
        %v1618 = vunpack.c.l.b16 %v1364
        %v1619 = vunpack.c.h.b16 %v1364
        %v1620 = vunpack.c.l.b16 %v1365
        %v1621 = vunpack.c.h.b16 %v1365
        %v1622 = vunpack.c.l.b16 %v1366
        %v1623 = vunpack.c.h.b16 %v1366
        %v1624 = vunpack.c.l.b16 %v1367
        %v1625 = vunpack.c.h.b16 %v1367
        %v1626 = vunpack.c.l.b16 %v1368
        %v1627 = vunpack.c.h.b16 %v1368
        %v1628 = vunpack.c.l.b16 %v1369
        %v1629 = vunpack.c.h.b16 %v1369
        %v1630 = vunpack.c.l.b16 %v1370
        %v1631 = vunpack.c.h.b16 %v1370
        %v1632 = vunpack.c.l.b16 %v1371
        %v1633 = vunpack.c.h.b16 %v1371
        %v1634 = vunpack.c.l.b16 %v1372
        %v1635 = vunpack.c.h.b16 %v1372
        %v1636 = vunpack.c.l.b16 %v1373
        %v1637 = vunpack.c.h.b16 %v1373
        %v1638 = vunpack.c.l.b16 %v1374
        %v1639 = vunpack.c.h.b16 %v1374
        %v1640 = vunpack.c.l.b16 %v1375
        %v1641 = vunpack.c.h.b16 %v1375
        %v1642 = vunpack.c.l.b16 %v1376
        %v1643 = vunpack.c.h.b16 %v1376
        %v1644 = vunpack.c.l.b16 %v1377
        %v1645 = vunpack.c.h.b16 %v1377
        %v1646 = vunpack.c.l.b16 %v1378
        %v1647 = vunpack.c.h.b16 %v1378
        %v1648 = vunpack.c.l.b16 %v1379
        %v1649 = vunpack.c.h.b16 %v1379
        %v1650 = vunpack.c.l.b16 %v1380
        %v1651 = vunpack.c.h.b16 %v1380
        %v1652 = vunpack.c.l.b16 %v1381
        %v1653 = vunpack.c.h.b16 %v1381
        %v1654 = vunpack.c.l.b16 %v1382
        %v1655 = vunpack.c.h.b16 %v1382
        %v1656 = vunpack.c.l.b16 %v1383
        %v1657 = vunpack.c.h.b16 %v1383
        %v1658 = vunpack.c.l.b16 %v1384
        %v1659 = vunpack.c.h.b16 %v1384
        %v1660 = vunpack.c.l.b16 %v1385
        %v1661 = vunpack.c.h.b16 %v1385
        %v1662 = vunpack.c.l.b16 %v1386
        %v1663 = vunpack.c.h.b16 %v1386
        %v1664 = vunpack.c.l.b16 %v1387
        %v1665 = vunpack.c.h.b16 %v1387
        %v1666 = vunpack.c.l.b16 %v1388
        %v1667 = vunpack.c.h.b16 %v1388
        %v1668 = vunpack.c.l.b16 %v1389
        %v1669 = vunpack.c.h.b16 %v1389
        %v1670 = vunpack.c.l.b16 %v1390
        %v1671 = vunpack.c.h.b16 %v1390
        %v1672 = vunpack.c.l.b16 %v1391
        %v1673 = vunpack.c.h.b16 %v1391
        %v1674 = vunpack.c.l.b16 %v1392
        %v1675 = vunpack.c.h.b16 %v1392
        %v1676 = vunpack.c.l.b16 %v1393
        %v1677 = vunpack.c.h.b16 %v1393
        %v1678 = vunpack.c.l.b16 %v1394
        %v1679 = vunpack.c.h.b16 %v1394
        %v1680 = vunpack.c.l.b16 %v1395
        %v1681 = vunpack.c.h.b16 %v1395
        %v1682 = vunpack.c.l.b16 %v1396
        %v1683 = vunpack.c.h.b16 %v1396
        %v1684 = vunpack.c.l.b16 %v1397
        %v1685 = vunpack.c.h.b16 %v1397
        %v1686 = vunpack.c.l.b16 %v1398
        %v1687 = vunpack.c.h.b16 %v1398
        %v1688 = vunpack.c.l.b16 %v1399
        %v1689 = vunpack.c.h.b16 %v1399
        %v1690 = vunpack.c.l.b16 %v1400
        %v1691 = vunpack.c.h.b16 %v1400
        %v1692 = vunpack.c.l.b16 %v1401
        %v1693 = vunpack.c.h.b16 %v1401
        %v1694 = vunpack.c.l.b16 %v1402
        %v1695 = vunpack.c.h.b16 %v1402
        %v1696 = vunpack.c.l.b16 %v1403
        %v1697 = vunpack.c.h.b16 %v1403
        %v1698 = vunpack.c.l.b16 %v1404
        %v1699 = vunpack.c.h.b16 %v1404
        %v1700 = vpack.c.b16 %v1510, %v1508
        %v1701 = vpack.c.b16 %v1511, %v1509
        %v1702 = vpack.c.b16 %v1514, %v1512
        %v1703 = vpack.c.b16 %v1515, %v1513
        %v1704 = vpack.c.b16 %v1518, %v1516
        %v1705 = vpack.c.b16 %v1519, %v1517
        %v1706 = vpack.c.b16 %v1522, %v1520
        %v1707 = vpack.c.b16 %v1523, %v1521
        %v1708 = vpack.c.b16 %v1526, %v1524
        %v1709 = vpack.c.b16 %v1527, %v1525
        %v1710 = vpack.c.b16 %v1530, %v1528
        %v1711 = vpack.c.b16 %v1531, %v1529
        %v1712 = vpack.c.b16 %v1534, %v1532
        %v1713 = vpack.c.b16 %v1535, %v1533
        %v1714 = vpack.c.b16 %v1538, %v1536
        %v1715 = vpack.c.b16 %v1539, %v1537
        %v1716 = vpack.c.b16 %v1542, %v1540
        %v1717 = vpack.c.b16 %v1543, %v1541
        %v1718 = vpack.c.b16 %v1546, %v1544
        %v1719 = vpack.c.b16 %v1547, %v1545
        %v1720 = vpack.c.b16 %v1550, %v1548
        %v1721 = vpack.c.b16 %v1551, %v1549
        %v1722 = vpack.c.b16 %v1554, %v1552
        %v1723 = vpack.c.b16 %v1555, %v1553
        %v1724 = vpack.c.b16 %v1558, %v1556
        %v1725 = vpack.c.b16 %v1559, %v1557
        %v1726 = vpack.c.b16 %v1562, %v1560
        %v1727 = vpack.c.b16 %v1563, %v1561
        %v1728 = vpack.c.b16 %v1566, %v1564
        %v1729 = vpack.c.b16 %v1567, %v1565
        %v1730 = vpack.c.b16 %v1570, %v1568
        %v1731 = vpack.c.b16 %v1571, %v1569
        %v1732 = vpack.c.b16 %v1574, %v1572
        %v1733 = vpack.c.b16 %v1575, %v1573
        %v1734 = vpack.c.b16 %v1578, %v1576
        %v1735 = vpack.c.b16 %v1579, %v1577
        %v1736 = vpack.c.b16 %v1582, %v1580
        %v1737 = vpack.c.b16 %v1583, %v1581
        %v1738 = vpack.c.b16 %v1586, %v1584
        %v1739 = vpack.c.b16 %v1587, %v1585
        %v1740 = vpack.c.b16 %v1590, %v1588
        %v1741 = vpack.c.b16 %v1591, %v1589
        %v1742 = vpack.c.b16 %v1594, %v1592
        %v1743 = vpack.c.b16 %v1595, %v1593
        %v1744 = vpack.c.b16 %v1598, %v1596
        %v1745 = vpack.c.b16 %v1599, %v1597
        %v1746 = vpack.c.b16 %v1602, %v1600
        %v1747 = vpack.c.b16 %v1603, %v1601
        %v1748 = vpack.c.b16 %v1606, %v1604
        %v1749 = vpack.c.b16 %v1607, %v1605
        %v1750 = vpack.c.b16 %v1610, %v1608
        %v1751 = vpack.c.b16 %v1611, %v1609
        %v1752 = vpack.c.b16 %v1614, %v1612
        %v1753 = vpack.c.b16 %v1615, %v1613
        %v1754 = vpack.c.b16 %v1618, %v1616
        %v1755 = vpack.c.b16 %v1619, %v1617
        %v1756 = vpack.c.b16 %v1622, %v1620
        %v1757 = vpack.c.b16 %v1623, %v1621
        %v1758 = vpack.c.b16 %v1626, %v1624
        %v1759 = vpack.c.b16 %v1627, %v1625
        %v1760 = vpack.c.b16 %v1630, %v1628
        %v1761 = vpack.c.b16 %v1631, %v1629
        %v1762 = vpack.c.b16 %v1634, %v1632
        %v1763 = vpack.c.b16 %v1635, %v1633
        %v1764 = vpack.c.b16 %v1638, %v1636
        %v1765 = vpack.c.b16 %v1639, %v1637
        %v1766 = vpack.c.b16 %v1642, %v1640
        %v1767 = vpack.c.b16 %v1643, %v1641
        %v1768 = vpack.c.b16 %v1646, %v1644
        %v1769 = vpack.c.b16 %v1647, %v1645
        %v1770 = vpack.c.b16 %v1650, %v1648
        %v1771 = vpack.c.b16 %v1651, %v1649
        %v1772 = vpack.c.b16 %v1654, %v1652
        %v1773 = vpack.c.b16 %v1655, %v1653
        %v1774 = vpack.c.b16 %v1658, %v1656
        %v1775 = vpack.c.b16 %v1659, %v1657
        %v1776 = vpack.c.b16 %v1662, %v1660
        %v1777 = vpack.c.b16 %v1663, %v1661
        %v1778 = vpack.c.b16 %v1666, %v1664
        %v1779 = vpack.c.b16 %v1667, %v1665
        %v1780 = vpack.c.b16 %v1670, %v1668
        %v1781 = vpack.c.b16 %v1671, %v1669
        %v1782 = vpack.c.b16 %v1674, %v1672
        %v1783 = vpack.c.b16 %v1675, %v1673
        %v1784 = vpack.c.b16 %v1678, %v1676
        %v1785 = vpack.c.b16 %v1679, %v1677
        %v1786 = vpack.c.b16 %v1682, %v1680
        %v1787 = vpack.c.b16 %v1683, %v1681
        %v1788 = vpack.c.b16 %v1686, %v1684
        %v1789 = vpack.c.b16 %v1687, %v1685
        %v1790 = vpack.c.b16 %v1690, %v1688
        %v1791 = vpack.c.b16 %v1691, %v1689
        %v1792 = vpack.c.b16 %v1694, %v1692
        %v1793 = vpack.c.b16 %v1695, %v1693
        %v1794 = vpack.c.b16 %v1698, %v1696
        %v1795 = vpack.c.b16 %v1699, %v1697
        %1892 = vmatpush.bf16.msra.mxu0 %v1714
        %1893 = vmatpush.bf16.msra.mxu0 %v1712
        %1894 = vmatpush.bf16.msra.mxu0 %v1710
        %1895 = vmatpush.bf16.msra.mxu0 %v1708
        %1896 = vmatpush.bf16.msra.mxu0 %v1706
        %1897 = vmatpush.bf16.msra.mxu0 %v1704
        %1898 = vmatpush.bf16.msra.mxu0 %v1702
        %1899 = vmatpush.bf16.msra.mxu0 %v1700
        %1900 = vmatmul.bf16.gmra.mxu0 %v1302
        %v1901 = vpop.f32.mrf.mxu0
        %v1902 = vadd.f32 %v1408, %v1901
        %v1903 = vpop.f32.mrf.mxu0
        %v1904 = vadd.f32 %v1408, %v1903
        %1905 = vdwg.mxu0
        %1906 = vmatpush.bf16.msra.mxu0 %v1730
        %1907 = vmatpush.bf16.msra.mxu0 %v1728
        %1908 = vmatpush.bf16.msra.mxu0 %v1726
        %1909 = vmatpush.bf16.msra.mxu0 %v1724
        %1910 = vmatpush.bf16.msra.mxu0 %v1722
        %1911 = vmatpush.bf16.msra.mxu0 %v1720
        %1912 = vmatpush.bf16.msra.mxu0 %v1718
        %1913 = vmatpush.bf16.msra.mxu0 %v1716
        %1914 = vmatmul.bf16.gmra.mxu0 %v1303
        %v1915 = vpop.f32.mrf.mxu0
        %v1916 = vadd.f32 %v1902, %v1915
        %v1917 = vpop.f32.mrf.mxu0
        %v1918 = vadd.f32 %v1904, %v1917
        %1919 = vdwg.mxu0
        %1920 = vmatpush.bf16.msra.mxu0 %v1746
        %1921 = vmatpush.bf16.msra.mxu0 %v1744
        %1922 = vmatpush.bf16.msra.mxu0 %v1742
        %1923 = vmatpush.bf16.msra.mxu0 %v1740
        %1924 = vmatpush.bf16.msra.mxu0 %v1738
        %1925 = vmatpush.bf16.msra.mxu0 %v1736
        %1926 = vmatpush.bf16.msra.mxu0 %v1734
        %1927 = vmatpush.bf16.msra.mxu0 %v1732
        %1928 = vmatmul.bf16.gmra.mxu0 %v1304
        %v1929 = vpop.f32.mrf.mxu0
        %v1930 = vadd.f32 %v1916, %v1929
        %v1931 = vpop.f32.mrf.mxu0
        %v1932 = vadd.f32 %v1918, %v1931
        %1933 = vdwg.mxu0
        %1934 = vmatpush.bf16.msra.mxu0 %v1762
        %1935 = vmatpush.bf16.msra.mxu0 %v1760
        %1936 = vmatpush.bf16.msra.mxu0 %v1758
        %1937 = vmatpush.bf16.msra.mxu0 %v1756
        %1938 = vmatpush.bf16.msra.mxu0 %v1754
        %1939 = vmatpush.bf16.msra.mxu0 %v1752
        %1940 = vmatpush.bf16.msra.mxu0 %v1750
        %1941 = vmatpush.bf16.msra.mxu0 %v1748
        %1942 = vmatmul.bf16.gmra.mxu0 %v1305
        %v1943 = vpop.f32.mrf.mxu0
        %v1944 = vadd.f32 %v1930, %v1943
        %v1945 = vpop.f32.mrf.mxu0
        %v1946 = vadd.f32 %v1932, %v1945
        %1947 = vdwg.mxu0
        %1948 = vmatpush.bf16.msra.mxu0 %v1778
        %1949 = vmatpush.bf16.msra.mxu0 %v1776
        %1950 = vmatpush.bf16.msra.mxu0 %v1774
        %1951 = vmatpush.bf16.msra.mxu0 %v1772
        %1952 = vmatpush.bf16.msra.mxu0 %v1770
        %1953 = vmatpush.bf16.msra.mxu0 %v1768
        %1954 = vmatpush.bf16.msra.mxu0 %v1766
        %1955 = vmatpush.bf16.msra.mxu0 %v1764
        %1956 = vmatmul.bf16.gmra.mxu0 %v1306
        %v1957 = vpop.f32.mrf.mxu0
        %v1958 = vadd.f32 %v1944, %v1957
        %v1959 = vpop.f32.mrf.mxu0
        %v1960 = vadd.f32 %v1946, %v1959
        %1961 = vdwg.mxu0
        %1962 = vmatpush.bf16.msra.mxu0 %v1794
        %1963 = vmatpush.bf16.msra.mxu0 %v1792
        %1964 = vmatpush.bf16.msra.mxu0 %v1790
        %1965 = vmatpush.bf16.msra.mxu0 %v1788
        %1966 = vmatpush.bf16.msra.mxu0 %v1786
        %1967 = vmatpush.bf16.msra.mxu0 %v1784
        %1968 = vmatpush.bf16.msra.mxu0 %v1782
        %1969 = vmatpush.bf16.msra.mxu0 %v1780
        %1970 = vmatmul.bf16.gmra.mxu0 %v1307
        %v1971 = vpop.f32.mrf.mxu0
        %v1972 = vadd.f32 %v1958, %v1971
        %v1973 = vpop.f32.mrf.mxu0
        %v1974 = vadd.f32 %v1960, %v1973
        %1975 = vdwg.mxu0
        %1976 = vmatpush.bf16.msra.mxu0 %v1715
        %1977 = vmatpush.bf16.msra.mxu0 %v1713
        %1978 = vmatpush.bf16.msra.mxu0 %v1711
        %1979 = vmatpush.bf16.msra.mxu0 %v1709
        %1980 = vmatpush.bf16.msra.mxu0 %v1707
        %1981 = vmatpush.bf16.msra.mxu0 %v1705
        %1982 = vmatpush.bf16.msra.mxu0 %v1703
        %1983 = vmatpush.bf16.msra.mxu0 %v1701
        %1984 = vmatmul.bf16.gmra.mxu0 %v1302
        %v1985 = vpop.f32.mrf.mxu0
        %v1986 = vadd.f32 %v1409, %v1985
        %v1987 = vpop.f32.mrf.mxu0
        %v1988 = vadd.f32 %v1409, %v1987
        %1989 = vdwg.mxu0
        %1990 = vmatpush.bf16.msra.mxu0 %v1731
        %1991 = vmatpush.bf16.msra.mxu0 %v1729
        %1992 = vmatpush.bf16.msra.mxu0 %v1727
        %1993 = vmatpush.bf16.msra.mxu0 %v1725
        %1994 = vmatpush.bf16.msra.mxu0 %v1723
        %1995 = vmatpush.bf16.msra.mxu0 %v1721
        %1996 = vmatpush.bf16.msra.mxu0 %v1719
        %1997 = vmatpush.bf16.msra.mxu0 %v1717
        %1998 = vmatmul.bf16.gmra.mxu0 %v1303
        %v1999 = vpop.f32.mrf.mxu0
        %v2000 = vadd.f32 %v1986, %v1999
        %v2001 = vpop.f32.mrf.mxu0
        %v2002 = vadd.f32 %v1988, %v2001
        %2003 = vdwg.mxu0
        %2004 = vmatpush.bf16.msra.mxu0 %v1747
        %2005 = vmatpush.bf16.msra.mxu0 %v1745
        %2006 = vmatpush.bf16.msra.mxu0 %v1743
        %2007 = vmatpush.bf16.msra.mxu0 %v1741
        %2008 = vmatpush.bf16.msra.mxu0 %v1739
        %2009 = vmatpush.bf16.msra.mxu0 %v1737
        %2010 = vmatpush.bf16.msra.mxu0 %v1735
        %2011 = vmatpush.bf16.msra.mxu0 %v1733
        %2012 = vmatmul.bf16.gmra.mxu0 %v1304
        %v2013 = vpop.f32.mrf.mxu0
        %v2014 = vadd.f32 %v2000, %v2013
        %v2015 = vpop.f32.mrf.mxu0
        %v2016 = vadd.f32 %v2002, %v2015
        %2017 = vdwg.mxu0
        %2018 = vmatpush.bf16.msra.mxu0 %v1763
        %2019 = vmatpush.bf16.msra.mxu0 %v1761
        %2020 = vmatpush.bf16.msra.mxu0 %v1759
        %2021 = vmatpush.bf16.msra.mxu0 %v1757
        %2022 = vmatpush.bf16.msra.mxu0 %v1755
        %2023 = vmatpush.bf16.msra.mxu0 %v1753
        %2024 = vmatpush.bf16.msra.mxu0 %v1751
        %2025 = vmatpush.bf16.msra.mxu0 %v1749
        %2026 = vmatmul.bf16.gmra.mxu0 %v1305
        %v2027 = vpop.f32.mrf.mxu0
        %v2028 = vadd.f32 %v2014, %v2027
        %v2029 = vpop.f32.mrf.mxu0
        %v2030 = vadd.f32 %v2016, %v2029
        %2031 = vdwg.mxu0
        %2032 = vmatpush.bf16.msra.mxu0 %v1779
        %2033 = vmatpush.bf16.msra.mxu0 %v1777
        %2034 = vmatpush.bf16.msra.mxu0 %v1775
        %2035 = vmatpush.bf16.msra.mxu0 %v1773
        %2036 = vmatpush.bf16.msra.mxu0 %v1771
        %2037 = vmatpush.bf16.msra.mxu0 %v1769
        %2038 = vmatpush.bf16.msra.mxu0 %v1767
        %2039 = vmatpush.bf16.msra.mxu0 %v1765
        %2040 = vmatmul.bf16.gmra.mxu0 %v1306
        %v2041 = vpop.f32.mrf.mxu0
        %v2042 = vadd.f32 %v2028, %v2041
        %v2043 = vpop.f32.mrf.mxu0
        %v2044 = vadd.f32 %v2030, %v2043
        %2045 = vdwg.mxu0
        %2046 = vmatpush.bf16.msra.mxu0 %v1795
        %2047 = vmatpush.bf16.msra.mxu0 %v1793
        %2048 = vmatpush.bf16.msra.mxu0 %v1791
        %2049 = vmatpush.bf16.msra.mxu0 %v1789
        %2050 = vmatpush.bf16.msra.mxu0 %v1787
        %2051 = vmatpush.bf16.msra.mxu0 %v1785
        %2052 = vmatpush.bf16.msra.mxu0 %v1783
        %2053 = vmatpush.bf16.msra.mxu0 %v1781
        %2054 = vmatmul.bf16.gmra.mxu0 %v1307
        %v2055 = vpop.f32.mrf.mxu0
        %v2056 = vadd.f32 %v2042, %v2055
        %v2057 = vpop.f32.mrf.mxu0
        %v2058 = vadd.f32 %v2044, %v2057
        %2059 = vdwg.mxu0
        %v2060 = vadd.f32 %v1972, %v1974
        %v2061 = vrot.slane %v2060, 4
        %v2062 = vadd.f32 %v2060, %v2061
        %v2063 = vrot.slane %v2062, 2
        %v2064 = vadd.f32 %v2062, %v2063
        %v2065 = vrot.slane %v2064, 1
        %v2066 = vadd.f32 %v2064, %v2065
        %v2067 = vadd.f32 %v2056, %v2058
        %v2068 = vrot.slane %v2067, 4
        %v2069 = vadd.f32 %v2067, %v2068
        %v2070 = vrot.slane %v2069, 2
        %v2071 = vadd.f32 %v2069, %v2070
        %v2072 = vrot.slane %v2071, 1
        %v2073 = vadd.f32 %v2071, %v2072
        %v2074 = vmax.f32 %v1972, %v1974
        %v2075 = vrot.slane %v2074, 4
        %v2076 = vmax.f32 %v2074, %v2075
        %v2077 = vrot.slane %v2076, 2
        %v2078 = vmax.f32 %v2076, %v2077
        %v2079 = vrot.slane %v2078, 1
        %v2080 = vmax.f32 %v2078, %v2079
        %v2081 = vmax.f32 %v2056, %v2058
        %v2082 = vrot.slane %v2081, 4
        %v2083 = vmax.f32 %v2081, %v2082
        %v2084 = vrot.slane %v2083, 2
        %v2085 = vmax.f32 %v2083, %v2084
        %v2086 = vrot.slane %v2085, 1
        %v2087 = vmax.f32 %v2085, %v2086
        %2088 = vrot.lane.b32.xlu0 %v2066, 16
        %v2089 = vpop.permute.xlu0 %2088
        %2090 = vrot.lane.b32.xlu0 %v2073, 16
        %v2091 = vpop.permute.xlu0 %2090
        %vm2092 = vcmp.lt.s32.totalorder %v324, 16
        %v2093 = vsel %vm2092, %v2089, %v2091
        %v2094 = vsel %vm2092, %v2091, %v2089
        %v2095 = vadd.f32 %v2066, %v2094
        %v2096 = vadd.f32 %v2073, %v2093
        %2097 = vrot.lane.b32.xlu0 %v2095, 32
        %v2098 = vpop.permute.xlu0 %2097
        %2099 = vrot.lane.b32.xlu0 %v2096, 32
        %v2100 = vpop.permute.xlu0 %2099
        %vm2101 = vcmp.lt.s32.totalorder %v324, 32
        %v2102 = vsel %vm2101, %v2098, %v2100
        %v2103 = vsel %vm2101, %v2100, %v2098
        %v2104 = vadd.f32 %v2095, %v2103
        %v2105 = vadd.f32 %v2096, %v2102
        %2106 = vrot.lane.b32.xlu0 %v2104, 64
        %v2107 = vpop.permute.xlu0 %2106
        %2108 = vrot.lane.b32.xlu0 %v2105, 64
        %v2109 = vpop.permute.xlu0 %2108
        %vm2110 = vcmp.lt.s32.totalorder %v324, 64
        %v2111 = vsel %vm2110, %v2107, %v2109
        %v2112 = vsel %vm2110, %v2109, %v2107
        %v2113 = vadd.f32 %v2104, %v2112
        %v2114 = vadd.f32 %v2105, %v2111
        %v2115 = vadd.f32 %v2113, %v2114
        %v2116 = vmul.f32 %v2115, 0.00390625
        %2117 = vrot.lane.b32.xlu0 %v2080, 16
        %v2118 = vpop.permute.xlu0 %2117
        %2119 = vrot.lane.b32.xlu0 %v2087, 16
        %v2120 = vpop.permute.xlu0 %2119
        %v2121 = vsel %vm2092, %v2118, %v2120
        %v2122 = vsel %vm2092, %v2120, %v2118
        %v2123 = vmax.f32 %v2080, %v2122
        %v2124 = vmax.f32 %v2087, %v2121
        %2125 = vrot.lane.b32.xlu0 %v2123, 32
        %v2126 = vpop.permute.xlu0 %2125
        %2127 = vrot.lane.b32.xlu0 %v2124, 32
        %v2128 = vpop.permute.xlu0 %2127
        %v2129 = vsel %vm2101, %v2126, %v2128
        %v2130 = vsel %vm2101, %v2128, %v2126
        %v2131 = vmax.f32 %v2123, %v2130
        %v2132 = vmax.f32 %v2124, %v2129
        %2133 = vrot.lane.b32.xlu0 %v2131, 64
        %v2134 = vpop.permute.xlu0 %2133
        %2135 = vrot.lane.b32.xlu0 %v2132, 64
        %v2136 = vpop.permute.xlu0 %2135
        %v2137 = vsel %vm2110, %v2134, %v2136
        %v2138 = vsel %vm2110, %v2136, %v2134
        %v2139 = vmax.f32 %v2131, %v2138
        %v2140 = vmax.f32 %v2132, %v2137
        %v2141 = vmax.f32 %v2139, %v2140
        %s2142 = sld [smem:[#allocation2]]
        %v2143 = vstv %s2142
        %v2144 = vmul.f32 %v2143, %v2116
        %s2145 = ssub.f32 1.0, %s2142
        %v2146 = vstv %s2145
        %v2147 = vmul.f32 %v2146, %v2141
        %v2148 = vadd.f32 %v2144, %v2147
        %v2149 = vld [vmem:[%s4] sm:$0xff]
        %v2150 = vperm.slane %v2148, 0
        %v2152 = vrot.slane %v2150, 4
        %vm2153 = vcmask 1043456
        %v2154 = vsel %vm2153, %v2150, %v2152
        %v2156 = vmul.f32 %v2149, %v2154
        %2158 = vst [vmem:[#allocation1] ss:$2 sm:$0xff] %v2156
        %v2159 = vld.sshfl [vmem:[#allocation1] sm:$0xff pattern:$0x75316420]
        %v2160 = vld.sshfl [vmem:[#allocation1 + $0x8] sm:$0xff pattern:$0x75316420]
        %v2163 = vsel %vm2153, %v2159, 0.0
        %v2164 = vsel %vm2153, %v2160, 0.0
        %v2165 = vadd.f32 %v2163, %v2164
        %2166 = vadd.xlane.f32.xlu0 %v2165
        %v2167 = vpop.xlane.xlu0 %2166
        %v2168 = vld [vmem:[%s5] sm:$0xf]
        %v2169 = vadd.f32 %v2167, %v2168
        %v2170 = vmax.f32 %v2169, 0.0
        %v2171 = vld [vmem:[%s6] sm:$0xff]
        %2173 = vset.pattern.permute.xlu0 0
        %2174 = vperm.xlu0 %2173, %v2170
        %v2175 = vpop.permute.xlu0 %2174
        %v2177 = vunpack.c.l.s4 839922192
        %v2178 = vunpack.c.0.s8 %v2177
        %v2179 = vperm.slane %v2175, %v2178
        %v2181 = vmul.f32 %v2171, %v2179
        %2183 = vst [vmem:[#allocation1] ss:$2 sm:$0xff] %v2181
        %v2184 = vld.sshfl [vmem:[#allocation1] sm:$0xff pattern:$0x75316420]
        %v2185 = vld.sshfl [vmem:[#allocation1 + $0x8] sm:$0xff pattern:$0x75316420]
        %v2188 = vsel %vm2153, %v2184, 0.0
        %v2189 = vrot.slane %v2188, 4
        %v2190 = vadd.f32 %v2188, %v2189
        %v2191 = vrot.slane %v2190, 2
        %v2192 = vadd.f32 %v2190, %v2191
        %v2193 = vrot.slane %v2192, 1
        %v2194 = vadd.f32 %v2192, %v2193
        %v2195 = vsel %vm2153, %v2185, 0.0
        %v2196 = vrot.slane %v2195, 4
        %v2197 = vadd.f32 %v2195, %v2196
        %v2198 = vrot.slane %v2197, 2
        %v2199 = vadd.f32 %v2197, %v2198
        %v2200 = vrot.slane %v2199, 1
        %v2201 = vadd.f32 %v2199, %v2200
        %v2202 = vld [vmem:[%s7] sm:$0x3]
        %v2204 = vperm.slane %v2202, 0
        %v2205 = vperm.slane %v2202, 1
        %v2208 = vadd.f32 %v2194, %v2204
        %v2209 = vadd.f32 %v2201, %v2205
        %v2210 = vxor.u32 %v2208, 2147483648
        %v2211 = vxor.u32 %v2209, 2147483648
        %v2212 = vmul.f32 %v2210, 1.442695
        %v2213 = vpow.pop %v2212
        %v2214 = vmul.f32 %v2211, 1.442695
        %v2215 = vpow.pop %v2214
        %v2216 = vadd.f32 %v2213, 1.0
        %v2217 = vadd.f32 %v2215, 1.0
        %v2218 = vrcp.pop %v2216
        %v2219 = vmul.f32 %v2216, %v2218
        %v2220 = vsub.f32 1.0, %v2219
        %v2221 = vmul.f32 %v2218, %v2220
        %v2222 = vadd.f32 %v2218, %v2221
        %vm2223 = vweird.f32 %v2216
        %vm2224 = vweird.f32 %v2218
        %vm2225 = vmor %vm2223, %vm2224
        %v2226 = vsel %vm2225, %v2218, %v2222
        %v2227 = vand.u32 2147483647, %v2216
        %vm2228 = vcmp.eq.f32.partialorder %v2227, 8.507059e+37
        %v2229 = vand.u32 %v2216, 2147483648
        %v2230 = vor.u32 1.1754944e-38, %v2229
        %v2231 = vsel %vm2228, %v2230, %v2226
        %v2232 = vmul.f32 1.0, %v2231
        %v2233 = vrcp.pop %v2217
        %v2234 = vmul.f32 %v2217, %v2233
        %v2235 = vsub.f32 1.0, %v2234
        %v2236 = vmul.f32 %v2233, %v2235
        %v2237 = vadd.f32 %v2233, %v2236
        %vm2238 = vweird.f32 %v2217
        %vm2239 = vweird.f32 %v2233
        %vm2240 = vmor %vm2238, %vm2239
        %v2241 = vsel %vm2240, %v2233, %v2237
        %v2242 = vand.u32 2147483647, %v2217
        %vm2243 = vcmp.eq.f32.partialorder %v2242, 8.507059e+37
        %v2244 = vand.u32 %v2217, 2147483648
        %v2245 = vor.u32 1.1754944e-38, %v2244
        %v2246 = vsel %vm2243, %v2245, %v2241
        %v2247 = vmul.f32 1.0, %v2246
        %v2248 = vperm.slane %v2232, 0
        %v2249 = vperm.slane %v2247, 0
        %v2250 = vmul.f32 %v1972, %v2248
        %v2251 = vmul.f32 %v2056, %v2249
        %v2252 = vmul.f32 %v1974, %v2248
        %v2253 = vmul.f32 %v2058, %v2249
        %v2254 = vadd.f32 %v2250, %v341
        %v2255 = vadd.f32 %v2251, %v342
        %v2256 = vadd.f32 %v2252, %v343
        %v2257 = vadd.f32 %v2253, %v344
        %2258 = vmatpush.msra.mxu0 0.0
        %2259 = vmatpush.msra.mxu0 0.0
        %2260 = vmatpush.msra.mxu0 0.0
        %2261 = vmatpush.msra.mxu0 0.0
        %2262 = vmatpush.msra.mxu0 0.0
        %2263 = vmatpush.msra.mxu0 0.0
        %2264 = vmatpush.msra.mxu0 0.0
        %2265 = vmatpush.msra.mxu0 0.0
        %2266 = vmatpush.msra.mxu0 0.0
        %2267 = vmatpush.msra.mxu0 0.0
        %2268 = vmatpush.msra.mxu0 0.0
        %2269 = vmatpush.msra.mxu0 0.0
        %2270 = vmatpush.msra.mxu0 0.0
        %2271 = vmatpush.msra.mxu0 0.0
        %2272 = vmatpush.msra.mxu0 %v2256
        %2273 = vmatpush.msra.mxu0 %v2254
        %2274 = vmatmul.f32.gmra.mxu0 %v347
        %v2275 = vpop.f32.mrf.mxu0
        %v2276 = vadd.f32 0.0, %v2275
        %2277 = vmatmul.f32.gmra.mxu0 %v350
        %v2278 = vpop.f32.mrf.mxu0
        %v2279 = vadd.f32 0.0, %v2278
        %2280 = vdwg.mxu0
        %2281 = vmatpush.msra.mxu0 0.0
        %2282 = vmatpush.msra.mxu0 0.0
        %2283 = vmatpush.msra.mxu0 0.0
        %2284 = vmatpush.msra.mxu0 0.0
        %2285 = vmatpush.msra.mxu0 0.0
        %2286 = vmatpush.msra.mxu0 0.0
        %2287 = vmatpush.msra.mxu0 0.0
        %2288 = vmatpush.msra.mxu0 0.0
        %2289 = vmatpush.msra.mxu0 0.0
        %2290 = vmatpush.msra.mxu0 0.0
        %2291 = vmatpush.msra.mxu0 0.0
        %2292 = vmatpush.msra.mxu0 0.0
        %2293 = vmatpush.msra.mxu0 0.0
        %2294 = vmatpush.msra.mxu0 0.0
        %2295 = vmatpush.msra.mxu0 %v2257
        %2296 = vmatpush.msra.mxu0 %v2255
        %2297 = vmatmul.f32.gmra.mxu0 %v347
        %v2298 = vpop.f32.mrf.mxu0
        %v2299 = vadd.f32 0.0, %v2298
        %2300 = vmatmul.f32.gmra.mxu0 %v350
        %v2301 = vpop.f32.mrf.mxu0
        %v2302 = vadd.f32 0.0, %v2301
        %2303 = vdwg.mxu0
        %2304 = vmatpush.msra.mxu0 0.0
        %2305 = vmatpush.msra.mxu0 0.0
        %2306 = vmatpush.msra.mxu0 0.0
        %2307 = vmatpush.msra.mxu0 0.0
        %2308 = vmatpush.msra.mxu0 0.0
        %2309 = vmatpush.msra.mxu0 0.0
        %2310 = vmatpush.msra.mxu0 0.0
        %2311 = vmatpush.msra.mxu0 0.0
        %2312 = vmatpush.msra.mxu0 0.0
        %2313 = vmatpush.msra.mxu0 0.0
        %2314 = vmatpush.msra.mxu0 0.0
        %2315 = vmatpush.msra.mxu0 0.0
        %2316 = vmatpush.msra.mxu0 0.0
        %2317 = vmatpush.msra.mxu0 0.0
        %2318 = vmatpush.msra.mxu0 %v2256
        %2319 = vmatpush.msra.mxu0 %v2254
        %2320 = vmatmul.f32.gmra.mxu0 %v399
        %v2321 = vpop.f32.mrf.mxu0
        %v2322 = vadd.f32 0.0, %v2321
        %2323 = vmatmul.f32.gmra.mxu0 %v402
        %v2324 = vpop.f32.mrf.mxu0
        %v2325 = vadd.f32 0.0, %v2324
        %2326 = vdwg.mxu0
        %2327 = vmatpush.msra.mxu0 0.0
        %2328 = vmatpush.msra.mxu0 0.0
        %2329 = vmatpush.msra.mxu0 0.0
        %2330 = vmatpush.msra.mxu0 0.0
        %2331 = vmatpush.msra.mxu0 0.0
        %2332 = vmatpush.msra.mxu0 0.0
        %2333 = vmatpush.msra.mxu0 0.0
        %2334 = vmatpush.msra.mxu0 0.0
        %2335 = vmatpush.msra.mxu0 0.0
        %2336 = vmatpush.msra.mxu0 0.0
        %2337 = vmatpush.msra.mxu0 0.0
        %2338 = vmatpush.msra.mxu0 0.0
        %2339 = vmatpush.msra.mxu0 0.0
        %2340 = vmatpush.msra.mxu0 0.0
        %2341 = vmatpush.msra.mxu0 %v2257
        %2342 = vmatpush.msra.mxu0 %v2255
        %2343 = vmatmul.f32.gmra.mxu0 %v399
        %v2344 = vpop.f32.mrf.mxu0
        %v2345 = vadd.f32 0.0, %v2344
        %2346 = vmatmul.f32.gmra.mxu0 %v402
        %v2347 = vpop.f32.mrf.mxu0
        %v2348 = vadd.f32 0.0, %v2347
        %2349 = vdwg.mxu0
        %v2350 = vpack.c.bf16 %v2279, %v2276
        %v2351 = vpack.c.bf16 %v2302, %v2299
        %v2352 = vpack.c.bf16 %v2256, %v2254
        %v2353 = vpack.c.bf16 %v2257, %v2255
        %v2354 = vpack.c.bf16 %v2325, %v2322
        %v2355 = vpack.c.bf16 %v2348, %v2345
        %s2356 = scalar_lea.vmem %s1, 1536
        %v2357 = vld [vmem:[%s2356] sm:$0xff]
        %v2358 = vld [vmem:[%s2356 + $0x8] sm:$0xff]
        %v2359 = vld [vmem:[%s2356 + $0x10] sm:$0xff]
        %v2360 = vld [vmem:[%s2356 + $0x18] sm:$0xff]
        %v2361 = vld [vmem:[%s2356 + $0x20] sm:$0xff]
        %v2362 = vld [vmem:[%s2356 + $0x28] sm:$0xff]
        %v2363 = vld [vmem:[%s2356 + $0x30] sm:$0xff]
        %v2364 = vld [vmem:[%s2356 + $0x38] sm:$0xff]
        %v2365 = vld [vmem:[%s2356 + $0x40] sm:$0xff]
        %v2366 = vld [vmem:[%s2356 + $0x48] sm:$0xff]
        %v2367 = vld [vmem:[%s2356 + $0x50] sm:$0xff]
        %v2368 = vld [vmem:[%s2356 + $0x58] sm:$0xff]
        %v2369 = vld [vmem:[%s2356 + $0x60] sm:$0xff]
        %v2370 = vld [vmem:[%s2356 + $0x68] sm:$0xff]
        %v2371 = vld [vmem:[%s2356 + $0x70] sm:$0xff]
        %v2372 = vld [vmem:[%s2356 + $0x78] sm:$0xff]
        %v2373 = vld [vmem:[%s2356 + $0x80] sm:$0xff]
        %v2374 = vld [vmem:[%s2356 + $0x88] sm:$0xff]
        %v2375 = vld [vmem:[%s2356 + $0x90] sm:$0xff]
        %v2376 = vld [vmem:[%s2356 + $0x98] sm:$0xff]
        %v2377 = vld [vmem:[%s2356 + $0xa0] sm:$0xff]
        %v2378 = vld [vmem:[%s2356 + $0xa8] sm:$0xff]
        %v2379 = vld [vmem:[%s2356 + $0xb0] sm:$0xff]
        %v2380 = vld [vmem:[%s2356 + $0xb8] sm:$0xff]
        %v2381 = vld [vmem:[%s2356 + $0xc0] sm:$0xff]
        %v2382 = vld [vmem:[%s2356 + $0xc8] sm:$0xff]
        %v2383 = vld [vmem:[%s2356 + $0xd0] sm:$0xff]
        %v2384 = vld [vmem:[%s2356 + $0xd8] sm:$0xff]
        %v2385 = vld [vmem:[%s2356 + $0xe0] sm:$0xff]
        %v2386 = vld [vmem:[%s2356 + $0xe8] sm:$0xff]
        %v2387 = vld [vmem:[%s2356 + $0xf0] sm:$0xff]
        %v2388 = vld [vmem:[%s2356 + $0xf8] sm:$0xff]
        %v2389 = vld [vmem:[%s2356 + $0x100] sm:$0xff]
        %v2390 = vld [vmem:[%s2356 + $0x108] sm:$0xff]
        %v2391 = vld [vmem:[%s2356 + $0x110] sm:$0xff]
        %v2392 = vld [vmem:[%s2356 + $0x118] sm:$0xff]
        %v2393 = vld [vmem:[%s2356 + $0x120] sm:$0xff]
        %v2394 = vld [vmem:[%s2356 + $0x128] sm:$0xff]
        %v2395 = vld [vmem:[%s2356 + $0x130] sm:$0xff]
        %v2396 = vld [vmem:[%s2356 + $0x138] sm:$0xff]
        %v2397 = vld [vmem:[%s2356 + $0x140] sm:$0xff]
        %v2398 = vld [vmem:[%s2356 + $0x148] sm:$0xff]
        %v2399 = vld [vmem:[%s2356 + $0x150] sm:$0xff]
        %v2400 = vld [vmem:[%s2356 + $0x158] sm:$0xff]
        %v2401 = vld [vmem:[%s2356 + $0x160] sm:$0xff]
        %v2402 = vld [vmem:[%s2356 + $0x168] sm:$0xff]
        %v2403 = vld [vmem:[%s2356 + $0x170] sm:$0xff]
        %v2404 = vld [vmem:[%s2356 + $0x178] sm:$0xff]
        %v2405 = vld [vmem:[%s2356 + $0x180] sm:$0xff]
        %v2406 = vld [vmem:[%s2356 + $0x188] sm:$0xff]
        %v2407 = vld [vmem:[%s2356 + $0x190] sm:$0xff]
        %v2408 = vld [vmem:[%s2356 + $0x198] sm:$0xff]
        %v2409 = vld [vmem:[%s2356 + $0x1a0] sm:$0xff]
        %v2410 = vld [vmem:[%s2356 + $0x1a8] sm:$0xff]
        %v2411 = vld [vmem:[%s2356 + $0x1b0] sm:$0xff]
        %v2412 = vld [vmem:[%s2356 + $0x1b8] sm:$0xff]
        %v2413 = vld [vmem:[%s2356 + $0x1c0] sm:$0xff]
        %v2414 = vld [vmem:[%s2356 + $0x1c8] sm:$0xff]
        %v2415 = vld [vmem:[%s2356 + $0x1d0] sm:$0xff]
        %v2416 = vld [vmem:[%s2356 + $0x1d8] sm:$0xff]
        %v2417 = vld [vmem:[%s2356 + $0x1e0] sm:$0xff]
        %v2418 = vld [vmem:[%s2356 + $0x1e8] sm:$0xff]
        %v2419 = vld [vmem:[%s2356 + $0x1f0] sm:$0xff]
        %v2420 = vld [vmem:[%s2356 + $0x1f8] sm:$0xff]
        %v2421 = vld [vmem:[%s2356 + $0x200] sm:$0xff]
        %v2422 = vld [vmem:[%s2356 + $0x208] sm:$0xff]
        %v2423 = vld [vmem:[%s2356 + $0x210] sm:$0xff]
        %v2424 = vld [vmem:[%s2356 + $0x218] sm:$0xff]
        %v2425 = vld [vmem:[%s2356 + $0x220] sm:$0xff]
        %v2426 = vld [vmem:[%s2356 + $0x228] sm:$0xff]
        %v2427 = vld [vmem:[%s2356 + $0x230] sm:$0xff]
        %v2428 = vld [vmem:[%s2356 + $0x238] sm:$0xff]
        %v2429 = vld [vmem:[%s2356 + $0x240] sm:$0xff]
        %v2430 = vld [vmem:[%s2356 + $0x248] sm:$0xff]
        %v2431 = vld [vmem:[%s2356 + $0x250] sm:$0xff]
        %v2432 = vld [vmem:[%s2356 + $0x258] sm:$0xff]
        %v2433 = vld [vmem:[%s2356 + $0x260] sm:$0xff]
        %v2434 = vld [vmem:[%s2356 + $0x268] sm:$0xff]
        %v2435 = vld [vmem:[%s2356 + $0x270] sm:$0xff]
        %v2436 = vld [vmem:[%s2356 + $0x278] sm:$0xff]
        %v2437 = vld [vmem:[%s2356 + $0x280] sm:$0xff]
        %v2438 = vld [vmem:[%s2356 + $0x288] sm:$0xff]
        %v2439 = vld [vmem:[%s2356 + $0x290] sm:$0xff]
        %v2440 = vld [vmem:[%s2356 + $0x298] sm:$0xff]
        %v2441 = vld [vmem:[%s2356 + $0x2a0] sm:$0xff]
        %v2442 = vld [vmem:[%s2356 + $0x2a8] sm:$0xff]
        %v2443 = vld [vmem:[%s2356 + $0x2b0] sm:$0xff]
        %v2444 = vld [vmem:[%s2356 + $0x2b8] sm:$0xff]
        %v2445 = vld [vmem:[%s2356 + $0x2c0] sm:$0xff]
        %v2446 = vld [vmem:[%s2356 + $0x2c8] sm:$0xff]
        %v2447 = vld [vmem:[%s2356 + $0x2d0] sm:$0xff]
        %v2448 = vld [vmem:[%s2356 + $0x2d8] sm:$0xff]
        %v2449 = vld [vmem:[%s2356 + $0x2e0] sm:$0xff]
        %v2450 = vld [vmem:[%s2356 + $0x2e8] sm:$0xff]
        %v2451 = vld [vmem:[%s2356 + $0x2f0] sm:$0xff]
        %v2452 = vld [vmem:[%s2356 + $0x2f8] sm:$0xff]
        %s2453 = scalar_lea.vmem %s2, 4
        %v2454 = vld [vmem:[%s2453] sm:$0x3]
        %v2456 = vperm.slane %v2454, 0
        %v2457 = vperm.slane %v2454, 1
        %v2556 = vunpack.c.l.b16 %v2357
        %v2557 = vunpack.c.h.b16 %v2357
        %v2558 = vunpack.c.l.b16 %v2358
        %v2559 = vunpack.c.h.b16 %v2358
        %v2560 = vunpack.c.l.b16 %v2359
        %v2561 = vunpack.c.h.b16 %v2359
        %v2562 = vunpack.c.l.b16 %v2360
        %v2563 = vunpack.c.h.b16 %v2360
        %v2564 = vunpack.c.l.b16 %v2361
        %v2565 = vunpack.c.h.b16 %v2361
        %v2566 = vunpack.c.l.b16 %v2362
        %v2567 = vunpack.c.h.b16 %v2362
        %v2568 = vunpack.c.l.b16 %v2363
        %v2569 = vunpack.c.h.b16 %v2363
        %v2570 = vunpack.c.l.b16 %v2364
        %v2571 = vunpack.c.h.b16 %v2364
        %v2572 = vunpack.c.l.b16 %v2365
        %v2573 = vunpack.c.h.b16 %v2365
        %v2574 = vunpack.c.l.b16 %v2366
        %v2575 = vunpack.c.h.b16 %v2366
        %v2576 = vunpack.c.l.b16 %v2367
        %v2577 = vunpack.c.h.b16 %v2367
        %v2578 = vunpack.c.l.b16 %v2368
        %v2579 = vunpack.c.h.b16 %v2368
        %v2580 = vunpack.c.l.b16 %v2369
        %v2581 = vunpack.c.h.b16 %v2369
        %v2582 = vunpack.c.l.b16 %v2370
        %v2583 = vunpack.c.h.b16 %v2370
        %v2584 = vunpack.c.l.b16 %v2371
        %v2585 = vunpack.c.h.b16 %v2371
        %v2586 = vunpack.c.l.b16 %v2372
        %v2587 = vunpack.c.h.b16 %v2372
        %v2588 = vunpack.c.l.b16 %v2373
        %v2589 = vunpack.c.h.b16 %v2373
        %v2590 = vunpack.c.l.b16 %v2374
        %v2591 = vunpack.c.h.b16 %v2374
        %v2592 = vunpack.c.l.b16 %v2375
        %v2593 = vunpack.c.h.b16 %v2375
        %v2594 = vunpack.c.l.b16 %v2376
        %v2595 = vunpack.c.h.b16 %v2376
        %v2596 = vunpack.c.l.b16 %v2377
        %v2597 = vunpack.c.h.b16 %v2377
        %v2598 = vunpack.c.l.b16 %v2378
        %v2599 = vunpack.c.h.b16 %v2378
        %v2600 = vunpack.c.l.b16 %v2379
        %v2601 = vunpack.c.h.b16 %v2379
        %v2602 = vunpack.c.l.b16 %v2380
        %v2603 = vunpack.c.h.b16 %v2380
        %v2604 = vunpack.c.l.b16 %v2381
        %v2605 = vunpack.c.h.b16 %v2381
        %v2606 = vunpack.c.l.b16 %v2382
        %v2607 = vunpack.c.h.b16 %v2382
        %v2608 = vunpack.c.l.b16 %v2383
        %v2609 = vunpack.c.h.b16 %v2383
        %v2610 = vunpack.c.l.b16 %v2384
        %v2611 = vunpack.c.h.b16 %v2384
        %v2612 = vunpack.c.l.b16 %v2385
        %v2613 = vunpack.c.h.b16 %v2385
        %v2614 = vunpack.c.l.b16 %v2386
        %v2615 = vunpack.c.h.b16 %v2386
        %v2616 = vunpack.c.l.b16 %v2387
        %v2617 = vunpack.c.h.b16 %v2387
        %v2618 = vunpack.c.l.b16 %v2388
        %v2619 = vunpack.c.h.b16 %v2388
        %v2620 = vunpack.c.l.b16 %v2389
        %v2621 = vunpack.c.h.b16 %v2389
        %v2622 = vunpack.c.l.b16 %v2390
        %v2623 = vunpack.c.h.b16 %v2390
        %v2624 = vunpack.c.l.b16 %v2391
        %v2625 = vunpack.c.h.b16 %v2391
        %v2626 = vunpack.c.l.b16 %v2392
        %v2627 = vunpack.c.h.b16 %v2392
        %v2628 = vunpack.c.l.b16 %v2393
        %v2629 = vunpack.c.h.b16 %v2393
        %v2630 = vunpack.c.l.b16 %v2394
        %v2631 = vunpack.c.h.b16 %v2394
        %v2632 = vunpack.c.l.b16 %v2395
        %v2633 = vunpack.c.h.b16 %v2395
        %v2634 = vunpack.c.l.b16 %v2396
        %v2635 = vunpack.c.h.b16 %v2396
        %v2636 = vunpack.c.l.b16 %v2397
        %v2637 = vunpack.c.h.b16 %v2397
        %v2638 = vunpack.c.l.b16 %v2398
        %v2639 = vunpack.c.h.b16 %v2398
        %v2640 = vunpack.c.l.b16 %v2399
        %v2641 = vunpack.c.h.b16 %v2399
        %v2642 = vunpack.c.l.b16 %v2400
        %v2643 = vunpack.c.h.b16 %v2400
        %v2644 = vunpack.c.l.b16 %v2401
        %v2645 = vunpack.c.h.b16 %v2401
        %v2646 = vunpack.c.l.b16 %v2402
        %v2647 = vunpack.c.h.b16 %v2402
        %v2648 = vunpack.c.l.b16 %v2403
        %v2649 = vunpack.c.h.b16 %v2403
        %v2650 = vunpack.c.l.b16 %v2404
        %v2651 = vunpack.c.h.b16 %v2404
        %v2652 = vunpack.c.l.b16 %v2405
        %v2653 = vunpack.c.h.b16 %v2405
        %v2654 = vunpack.c.l.b16 %v2406
        %v2655 = vunpack.c.h.b16 %v2406
        %v2656 = vunpack.c.l.b16 %v2407
        %v2657 = vunpack.c.h.b16 %v2407
        %v2658 = vunpack.c.l.b16 %v2408
        %v2659 = vunpack.c.h.b16 %v2408
        %v2660 = vunpack.c.l.b16 %v2409
        %v2661 = vunpack.c.h.b16 %v2409
        %v2662 = vunpack.c.l.b16 %v2410
        %v2663 = vunpack.c.h.b16 %v2410
        %v2664 = vunpack.c.l.b16 %v2411
        %v2665 = vunpack.c.h.b16 %v2411
        %v2666 = vunpack.c.l.b16 %v2412
        %v2667 = vunpack.c.h.b16 %v2412
        %v2668 = vunpack.c.l.b16 %v2413
        %v2669 = vunpack.c.h.b16 %v2413
        %v2670 = vunpack.c.l.b16 %v2414
        %v2671 = vunpack.c.h.b16 %v2414
        %v2672 = vunpack.c.l.b16 %v2415
        %v2673 = vunpack.c.h.b16 %v2415
        %v2674 = vunpack.c.l.b16 %v2416
        %v2675 = vunpack.c.h.b16 %v2416
        %v2676 = vunpack.c.l.b16 %v2417
        %v2677 = vunpack.c.h.b16 %v2417
        %v2678 = vunpack.c.l.b16 %v2418
        %v2679 = vunpack.c.h.b16 %v2418
        %v2680 = vunpack.c.l.b16 %v2419
        %v2681 = vunpack.c.h.b16 %v2419
        %v2682 = vunpack.c.l.b16 %v2420
        %v2683 = vunpack.c.h.b16 %v2420
        %v2684 = vunpack.c.l.b16 %v2421
        %v2685 = vunpack.c.h.b16 %v2421
        %v2686 = vunpack.c.l.b16 %v2422
        %v2687 = vunpack.c.h.b16 %v2422
        %v2688 = vunpack.c.l.b16 %v2423
        %v2689 = vunpack.c.h.b16 %v2423
        %v2690 = vunpack.c.l.b16 %v2424
        %v2691 = vunpack.c.h.b16 %v2424
        %v2692 = vunpack.c.l.b16 %v2425
        %v2693 = vunpack.c.h.b16 %v2425
        %v2694 = vunpack.c.l.b16 %v2426
        %v2695 = vunpack.c.h.b16 %v2426
        %v2696 = vunpack.c.l.b16 %v2427
        %v2697 = vunpack.c.h.b16 %v2427
        %v2698 = vunpack.c.l.b16 %v2428
        %v2699 = vunpack.c.h.b16 %v2428
        %v2700 = vunpack.c.l.b16 %v2429
        %v2701 = vunpack.c.h.b16 %v2429
        %v2702 = vunpack.c.l.b16 %v2430
        %v2703 = vunpack.c.h.b16 %v2430
        %v2704 = vunpack.c.l.b16 %v2431
        %v2705 = vunpack.c.h.b16 %v2431
        %v2706 = vunpack.c.l.b16 %v2432
        %v2707 = vunpack.c.h.b16 %v2432
        %v2708 = vunpack.c.l.b16 %v2433
        %v2709 = vunpack.c.h.b16 %v2433
        %v2710 = vunpack.c.l.b16 %v2434
        %v2711 = vunpack.c.h.b16 %v2434
        %v2712 = vunpack.c.l.b16 %v2435
        %v2713 = vunpack.c.h.b16 %v2435
        %v2714 = vunpack.c.l.b16 %v2436
        %v2715 = vunpack.c.h.b16 %v2436
        %v2716 = vunpack.c.l.b16 %v2437
        %v2717 = vunpack.c.h.b16 %v2437
        %v2718 = vunpack.c.l.b16 %v2438
        %v2719 = vunpack.c.h.b16 %v2438
        %v2720 = vunpack.c.l.b16 %v2439
        %v2721 = vunpack.c.h.b16 %v2439
        %v2722 = vunpack.c.l.b16 %v2440
        %v2723 = vunpack.c.h.b16 %v2440
        %v2724 = vunpack.c.l.b16 %v2441
        %v2725 = vunpack.c.h.b16 %v2441
        %v2726 = vunpack.c.l.b16 %v2442
        %v2727 = vunpack.c.h.b16 %v2442
        %v2728 = vunpack.c.l.b16 %v2443
        %v2729 = vunpack.c.h.b16 %v2443
        %v2730 = vunpack.c.l.b16 %v2444
        %v2731 = vunpack.c.h.b16 %v2444
        %v2732 = vunpack.c.l.b16 %v2445
        %v2733 = vunpack.c.h.b16 %v2445
        %v2734 = vunpack.c.l.b16 %v2446
        %v2735 = vunpack.c.h.b16 %v2446
        %v2736 = vunpack.c.l.b16 %v2447
        %v2737 = vunpack.c.h.b16 %v2447
        %v2738 = vunpack.c.l.b16 %v2448
        %v2739 = vunpack.c.h.b16 %v2448
        %v2740 = vunpack.c.l.b16 %v2449
        %v2741 = vunpack.c.h.b16 %v2449
        %v2742 = vunpack.c.l.b16 %v2450
        %v2743 = vunpack.c.h.b16 %v2450
        %v2744 = vunpack.c.l.b16 %v2451
        %v2745 = vunpack.c.h.b16 %v2451
        %v2746 = vunpack.c.l.b16 %v2452
        %v2747 = vunpack.c.h.b16 %v2452
        %v2748 = vpack.c.b16 %v2558, %v2556
        %v2749 = vpack.c.b16 %v2559, %v2557
        %v2750 = vpack.c.b16 %v2562, %v2560
        %v2751 = vpack.c.b16 %v2563, %v2561
        %v2752 = vpack.c.b16 %v2566, %v2564
        %v2753 = vpack.c.b16 %v2567, %v2565
        %v2754 = vpack.c.b16 %v2570, %v2568
        %v2755 = vpack.c.b16 %v2571, %v2569
        %v2756 = vpack.c.b16 %v2574, %v2572
        %v2757 = vpack.c.b16 %v2575, %v2573
        %v2758 = vpack.c.b16 %v2578, %v2576
        %v2759 = vpack.c.b16 %v2579, %v2577
        %v2760 = vpack.c.b16 %v2582, %v2580
        %v2761 = vpack.c.b16 %v2583, %v2581
        %v2762 = vpack.c.b16 %v2586, %v2584
        %v2763 = vpack.c.b16 %v2587, %v2585
        %v2764 = vpack.c.b16 %v2590, %v2588
        %v2765 = vpack.c.b16 %v2591, %v2589
        %v2766 = vpack.c.b16 %v2594, %v2592
        %v2767 = vpack.c.b16 %v2595, %v2593
        %v2768 = vpack.c.b16 %v2598, %v2596
        %v2769 = vpack.c.b16 %v2599, %v2597
        %v2770 = vpack.c.b16 %v2602, %v2600
        %v2771 = vpack.c.b16 %v2603, %v2601
        %v2772 = vpack.c.b16 %v2606, %v2604
        %v2773 = vpack.c.b16 %v2607, %v2605
        %v2774 = vpack.c.b16 %v2610, %v2608
        %v2775 = vpack.c.b16 %v2611, %v2609
        %v2776 = vpack.c.b16 %v2614, %v2612
        %v2777 = vpack.c.b16 %v2615, %v2613
        %v2778 = vpack.c.b16 %v2618, %v2616
        %v2779 = vpack.c.b16 %v2619, %v2617
        %v2780 = vpack.c.b16 %v2622, %v2620
        %v2781 = vpack.c.b16 %v2623, %v2621
        %v2782 = vpack.c.b16 %v2626, %v2624
        %v2783 = vpack.c.b16 %v2627, %v2625
        %v2784 = vpack.c.b16 %v2630, %v2628
        %v2785 = vpack.c.b16 %v2631, %v2629
        %v2786 = vpack.c.b16 %v2634, %v2632
        %v2787 = vpack.c.b16 %v2635, %v2633
        %v2788 = vpack.c.b16 %v2638, %v2636
        %v2789 = vpack.c.b16 %v2639, %v2637
        %v2790 = vpack.c.b16 %v2642, %v2640
        %v2791 = vpack.c.b16 %v2643, %v2641
        %v2792 = vpack.c.b16 %v2646, %v2644
        %v2793 = vpack.c.b16 %v2647, %v2645
        %v2794 = vpack.c.b16 %v2650, %v2648
        %v2795 = vpack.c.b16 %v2651, %v2649
        %v2796 = vpack.c.b16 %v2654, %v2652
        %v2797 = vpack.c.b16 %v2655, %v2653
        %v2798 = vpack.c.b16 %v2658, %v2656
        %v2799 = vpack.c.b16 %v2659, %v2657
        %v2800 = vpack.c.b16 %v2662, %v2660
        %v2801 = vpack.c.b16 %v2663, %v2661
        %v2802 = vpack.c.b16 %v2666, %v2664
        %v2803 = vpack.c.b16 %v2667, %v2665
        %v2804 = vpack.c.b16 %v2670, %v2668
        %v2805 = vpack.c.b16 %v2671, %v2669
        %v2806 = vpack.c.b16 %v2674, %v2672
        %v2807 = vpack.c.b16 %v2675, %v2673
        %v2808 = vpack.c.b16 %v2678, %v2676
        %v2809 = vpack.c.b16 %v2679, %v2677
        %v2810 = vpack.c.b16 %v2682, %v2680
        %v2811 = vpack.c.b16 %v2683, %v2681
        %v2812 = vpack.c.b16 %v2686, %v2684
        %v2813 = vpack.c.b16 %v2687, %v2685
        %v2814 = vpack.c.b16 %v2690, %v2688
        %v2815 = vpack.c.b16 %v2691, %v2689
        %v2816 = vpack.c.b16 %v2694, %v2692
        %v2817 = vpack.c.b16 %v2695, %v2693
        %v2818 = vpack.c.b16 %v2698, %v2696
        %v2819 = vpack.c.b16 %v2699, %v2697
        %v2820 = vpack.c.b16 %v2702, %v2700
        %v2821 = vpack.c.b16 %v2703, %v2701
        %v2822 = vpack.c.b16 %v2706, %v2704
        %v2823 = vpack.c.b16 %v2707, %v2705
        %v2824 = vpack.c.b16 %v2710, %v2708
        %v2825 = vpack.c.b16 %v2711, %v2709
        %v2826 = vpack.c.b16 %v2714, %v2712
        %v2827 = vpack.c.b16 %v2715, %v2713
        %v2828 = vpack.c.b16 %v2718, %v2716
        %v2829 = vpack.c.b16 %v2719, %v2717
        %v2830 = vpack.c.b16 %v2722, %v2720
        %v2831 = vpack.c.b16 %v2723, %v2721
        %v2832 = vpack.c.b16 %v2726, %v2724
        %v2833 = vpack.c.b16 %v2727, %v2725
        %v2834 = vpack.c.b16 %v2730, %v2728
        %v2835 = vpack.c.b16 %v2731, %v2729
        %v2836 = vpack.c.b16 %v2734, %v2732
        %v2837 = vpack.c.b16 %v2735, %v2733
        %v2838 = vpack.c.b16 %v2738, %v2736
        %v2839 = vpack.c.b16 %v2739, %v2737
        %v2840 = vpack.c.b16 %v2742, %v2740
        %v2841 = vpack.c.b16 %v2743, %v2741
        %v2842 = vpack.c.b16 %v2746, %v2744
        %v2843 = vpack.c.b16 %v2747, %v2745
        %2940 = vmatpush.bf16.msra.mxu0 %v2762
        %2941 = vmatpush.bf16.msra.mxu0 %v2760
        %2942 = vmatpush.bf16.msra.mxu0 %v2758
        %2943 = vmatpush.bf16.msra.mxu0 %v2756
        %2944 = vmatpush.bf16.msra.mxu0 %v2754
        %2945 = vmatpush.bf16.msra.mxu0 %v2752
        %2946 = vmatpush.bf16.msra.mxu0 %v2750
        %2947 = vmatpush.bf16.msra.mxu0 %v2748
        %2948 = vmatmul.bf16.gmra.mxu0 %v2350
        %v2949 = vpop.f32.mrf.mxu0
        %v2950 = vadd.f32 %v2456, %v2949
        %v2951 = vpop.f32.mrf.mxu0
        %v2952 = vadd.f32 %v2456, %v2951
        %2953 = vdwg.mxu0
        %2954 = vmatpush.bf16.msra.mxu0 %v2778
        %2955 = vmatpush.bf16.msra.mxu0 %v2776
        %2956 = vmatpush.bf16.msra.mxu0 %v2774
        %2957 = vmatpush.bf16.msra.mxu0 %v2772
        %2958 = vmatpush.bf16.msra.mxu0 %v2770
        %2959 = vmatpush.bf16.msra.mxu0 %v2768
        %2960 = vmatpush.bf16.msra.mxu0 %v2766
        %2961 = vmatpush.bf16.msra.mxu0 %v2764
        %2962 = vmatmul.bf16.gmra.mxu0 %v2351
        %v2963 = vpop.f32.mrf.mxu0
        %v2964 = vadd.f32 %v2950, %v2963
        %v2965 = vpop.f32.mrf.mxu0
        %v2966 = vadd.f32 %v2952, %v2965
        %2967 = vdwg.mxu0
        %2968 = vmatpush.bf16.msra.mxu0 %v2794
        %2969 = vmatpush.bf16.msra.mxu0 %v2792
        %2970 = vmatpush.bf16.msra.mxu0 %v2790
        %2971 = vmatpush.bf16.msra.mxu0 %v2788
        %2972 = vmatpush.bf16.msra.mxu0 %v2786
        %2973 = vmatpush.bf16.msra.mxu0 %v2784
        %2974 = vmatpush.bf16.msra.mxu0 %v2782
        %2975 = vmatpush.bf16.msra.mxu0 %v2780
        %2976 = vmatmul.bf16.gmra.mxu0 %v2352
        %v2977 = vpop.f32.mrf.mxu0
        %v2978 = vadd.f32 %v2964, %v2977
        %v2979 = vpop.f32.mrf.mxu0
        %v2980 = vadd.f32 %v2966, %v2979
        %2981 = vdwg.mxu0
        %2982 = vmatpush.bf16.msra.mxu0 %v2810
        %2983 = vmatpush.bf16.msra.mxu0 %v2808
        %2984 = vmatpush.bf16.msra.mxu0 %v2806
        %2985 = vmatpush.bf16.msra.mxu0 %v2804
        %2986 = vmatpush.bf16.msra.mxu0 %v2802
        %2987 = vmatpush.bf16.msra.mxu0 %v2800
        %2988 = vmatpush.bf16.msra.mxu0 %v2798
        %2989 = vmatpush.bf16.msra.mxu0 %v2796
        %2990 = vmatmul.bf16.gmra.mxu0 %v2353
        %v2991 = vpop.f32.mrf.mxu0
        %v2992 = vadd.f32 %v2978, %v2991
        %v2993 = vpop.f32.mrf.mxu0
        %v2994 = vadd.f32 %v2980, %v2993
        %2995 = vdwg.mxu0
        %2996 = vmatpush.bf16.msra.mxu0 %v2826
        %2997 = vmatpush.bf16.msra.mxu0 %v2824
        %2998 = vmatpush.bf16.msra.mxu0 %v2822
        %2999 = vmatpush.bf16.msra.mxu0 %v2820
        %3000 = vmatpush.bf16.msra.mxu0 %v2818
        %3001 = vmatpush.bf16.msra.mxu0 %v2816
        %3002 = vmatpush.bf16.msra.mxu0 %v2814
        %3003 = vmatpush.bf16.msra.mxu0 %v2812
        %3004 = vmatmul.bf16.gmra.mxu0 %v2354
        %v3005 = vpop.f32.mrf.mxu0
        %v3006 = vadd.f32 %v2992, %v3005
        %v3007 = vpop.f32.mrf.mxu0
        %v3008 = vadd.f32 %v2994, %v3007
        %3009 = vdwg.mxu0
        %3010 = vmatpush.bf16.msra.mxu0 %v2842
        %3011 = vmatpush.bf16.msra.mxu0 %v2840
        %3012 = vmatpush.bf16.msra.mxu0 %v2838
        %3013 = vmatpush.bf16.msra.mxu0 %v2836
        %3014 = vmatpush.bf16.msra.mxu0 %v2834
        %3015 = vmatpush.bf16.msra.mxu0 %v2832
        %3016 = vmatpush.bf16.msra.mxu0 %v2830
        %3017 = vmatpush.bf16.msra.mxu0 %v2828
        %3018 = vmatmul.bf16.gmra.mxu0 %v2355
        %v3019 = vpop.f32.mrf.mxu0
        %v3020 = vadd.f32 %v3006, %v3019
        %v3021 = vpop.f32.mrf.mxu0
        %v3022 = vadd.f32 %v3008, %v3021
        %3023 = vdwg.mxu0
        %3024 = vmatpush.bf16.msra.mxu0 %v2763
        %3025 = vmatpush.bf16.msra.mxu0 %v2761
        %3026 = vmatpush.bf16.msra.mxu0 %v2759
        %3027 = vmatpush.bf16.msra.mxu0 %v2757
        %3028 = vmatpush.bf16.msra.mxu0 %v2755
        %3029 = vmatpush.bf16.msra.mxu0 %v2753
        %3030 = vmatpush.bf16.msra.mxu0 %v2751
        %3031 = vmatpush.bf16.msra.mxu0 %v2749
        %3032 = vmatmul.bf16.gmra.mxu0 %v2350
        %v3033 = vpop.f32.mrf.mxu0
        %v3034 = vadd.f32 %v2457, %v3033
        %v3035 = vpop.f32.mrf.mxu0
        %v3036 = vadd.f32 %v2457, %v3035
        %3037 = vdwg.mxu0
        %3038 = vmatpush.bf16.msra.mxu0 %v2779
        %3039 = vmatpush.bf16.msra.mxu0 %v2777
        %3040 = vmatpush.bf16.msra.mxu0 %v2775
        %3041 = vmatpush.bf16.msra.mxu0 %v2773
        %3042 = vmatpush.bf16.msra.mxu0 %v2771
        %3043 = vmatpush.bf16.msra.mxu0 %v2769
        %3044 = vmatpush.bf16.msra.mxu0 %v2767
        %3045 = vmatpush.bf16.msra.mxu0 %v2765
        %3046 = vmatmul.bf16.gmra.mxu0 %v2351
        %v3047 = vpop.f32.mrf.mxu0
        %v3048 = vadd.f32 %v3034, %v3047
        %v3049 = vpop.f32.mrf.mxu0
        %v3050 = vadd.f32 %v3036, %v3049
        %3051 = vdwg.mxu0
        %3052 = vmatpush.bf16.msra.mxu0 %v2795
        %3053 = vmatpush.bf16.msra.mxu0 %v2793
        %3054 = vmatpush.bf16.msra.mxu0 %v2791
        %3055 = vmatpush.bf16.msra.mxu0 %v2789
        %3056 = vmatpush.bf16.msra.mxu0 %v2787
        %3057 = vmatpush.bf16.msra.mxu0 %v2785
        %3058 = vmatpush.bf16.msra.mxu0 %v2783
        %3059 = vmatpush.bf16.msra.mxu0 %v2781
        %3060 = vmatmul.bf16.gmra.mxu0 %v2352
        %v3061 = vpop.f32.mrf.mxu0
        %v3062 = vadd.f32 %v3048, %v3061
        %v3063 = vpop.f32.mrf.mxu0
        %v3064 = vadd.f32 %v3050, %v3063
        %3065 = vdwg.mxu0
        %3066 = vmatpush.bf16.msra.mxu0 %v2811
        %3067 = vmatpush.bf16.msra.mxu0 %v2809
        %3068 = vmatpush.bf16.msra.mxu0 %v2807
        %3069 = vmatpush.bf16.msra.mxu0 %v2805
        %3070 = vmatpush.bf16.msra.mxu0 %v2803
        %3071 = vmatpush.bf16.msra.mxu0 %v2801
        %3072 = vmatpush.bf16.msra.mxu0 %v2799
        %3073 = vmatpush.bf16.msra.mxu0 %v2797
        %3074 = vmatmul.bf16.gmra.mxu0 %v2353
        %v3075 = vpop.f32.mrf.mxu0
        %v3076 = vadd.f32 %v3062, %v3075
        %v3077 = vpop.f32.mrf.mxu0
        %v3078 = vadd.f32 %v3064, %v3077
        %3079 = vdwg.mxu0
        %3080 = vmatpush.bf16.msra.mxu0 %v2827
        %3081 = vmatpush.bf16.msra.mxu0 %v2825
        %3082 = vmatpush.bf16.msra.mxu0 %v2823
        %3083 = vmatpush.bf16.msra.mxu0 %v2821
        %3084 = vmatpush.bf16.msra.mxu0 %v2819
        %3085 = vmatpush.bf16.msra.mxu0 %v2817
        %3086 = vmatpush.bf16.msra.mxu0 %v2815
        %3087 = vmatpush.bf16.msra.mxu0 %v2813
        %3088 = vmatmul.bf16.gmra.mxu0 %v2354
        %v3089 = vpop.f32.mrf.mxu0
        %v3090 = vadd.f32 %v3076, %v3089
        %v3091 = vpop.f32.mrf.mxu0
        %v3092 = vadd.f32 %v3078, %v3091
        %3093 = vdwg.mxu0
        %3094 = vmatpush.bf16.msra.mxu0 %v2843
        %3095 = vmatpush.bf16.msra.mxu0 %v2841
        %3096 = vmatpush.bf16.msra.mxu0 %v2839
        %3097 = vmatpush.bf16.msra.mxu0 %v2837
        %3098 = vmatpush.bf16.msra.mxu0 %v2835
        %3099 = vmatpush.bf16.msra.mxu0 %v2833
        %3100 = vmatpush.bf16.msra.mxu0 %v2831
        %3101 = vmatpush.bf16.msra.mxu0 %v2829
        %3102 = vmatmul.bf16.gmra.mxu0 %v2355
        %v3103 = vpop.f32.mrf.mxu0
        %v3104 = vadd.f32 %v3090, %v3103
        %v3105 = vpop.f32.mrf.mxu0
        %v3106 = vadd.f32 %v3092, %v3105
        %3107 = vdwg.mxu0
        %v3108 = vmax.f32 %v3020, 0.0
        %v3109 = vmax.f32 %v3104, 0.0
        %v3110 = vmax.f32 %v3022, 0.0
        %v3111 = vmax.f32 %v3106, 0.0
        %3112 = vmatpush.msra.mxu0 0.0
        %3113 = vmatpush.msra.mxu0 0.0
        %3114 = vmatpush.msra.mxu0 0.0
        %3115 = vmatpush.msra.mxu0 0.0
        %3116 = vmatpush.msra.mxu0 0.0
        %3117 = vmatpush.msra.mxu0 0.0
        %3118 = vmatpush.msra.mxu0 0.0
        %3119 = vmatpush.msra.mxu0 0.0
        %3120 = vmatpush.msra.mxu0 0.0
        %3121 = vmatpush.msra.mxu0 0.0
        %3122 = vmatpush.msra.mxu0 0.0
        %3123 = vmatpush.msra.mxu0 0.0
        %3124 = vmatpush.msra.mxu0 0.0
        %3125 = vmatpush.msra.mxu0 0.0
        %3126 = vmatpush.msra.mxu0 %v3110
        %3127 = vmatpush.msra.mxu0 %v3108
        %3128 = vmatmul.f32.gmra.mxu0 %v347
        %v3129 = vpop.f32.mrf.mxu0
        %v3130 = vadd.f32 0.0, %v3129
        %3131 = vmatmul.f32.gmra.mxu0 %v350
        %v3132 = vpop.f32.mrf.mxu0
        %v3133 = vadd.f32 0.0, %v3132
        %3134 = vdwg.mxu0
        %3135 = vmatpush.msra.mxu0 0.0
        %3136 = vmatpush.msra.mxu0 0.0
        %3137 = vmatpush.msra.mxu0 0.0
        %3138 = vmatpush.msra.mxu0 0.0
        %3139 = vmatpush.msra.mxu0 0.0
        %3140 = vmatpush.msra.mxu0 0.0
        %3141 = vmatpush.msra.mxu0 0.0
        %3142 = vmatpush.msra.mxu0 0.0
        %3143 = vmatpush.msra.mxu0 0.0
        %3144 = vmatpush.msra.mxu0 0.0
        %3145 = vmatpush.msra.mxu0 0.0
        %3146 = vmatpush.msra.mxu0 0.0
        %3147 = vmatpush.msra.mxu0 0.0
        %3148 = vmatpush.msra.mxu0 0.0
        %3149 = vmatpush.msra.mxu0 %v3111
        %3150 = vmatpush.msra.mxu0 %v3109
        %3151 = vmatmul.f32.gmra.mxu0 %v347
        %v3152 = vpop.f32.mrf.mxu0
        %v3153 = vadd.f32 0.0, %v3152
        %3154 = vmatmul.f32.gmra.mxu0 %v350
        %v3155 = vpop.f32.mrf.mxu0
        %v3156 = vadd.f32 0.0, %v3155
        %3157 = vdwg.mxu0
        %3158 = vmatpush.msra.mxu0 0.0
        %3159 = vmatpush.msra.mxu0 0.0
        %3160 = vmatpush.msra.mxu0 0.0
        %3161 = vmatpush.msra.mxu0 0.0
        %3162 = vmatpush.msra.mxu0 0.0
        %3163 = vmatpush.msra.mxu0 0.0
        %3164 = vmatpush.msra.mxu0 0.0
        %3165 = vmatpush.msra.mxu0 0.0
        %3166 = vmatpush.msra.mxu0 0.0
        %3167 = vmatpush.msra.mxu0 0.0
        %3168 = vmatpush.msra.mxu0 0.0
        %3169 = vmatpush.msra.mxu0 0.0
        %3170 = vmatpush.msra.mxu0 0.0
        %3171 = vmatpush.msra.mxu0 0.0
        %3172 = vmatpush.msra.mxu0 %v3110
        %3173 = vmatpush.msra.mxu0 %v3108
        %3174 = vmatmul.f32.gmra.mxu0 %v399
        %v3175 = vpop.f32.mrf.mxu0
        %v3176 = vadd.f32 0.0, %v3175
        %3177 = vmatmul.f32.gmra.mxu0 %v402
        %v3178 = vpop.f32.mrf.mxu0
        %v3179 = vadd.f32 0.0, %v3178
        %3180 = vdwg.mxu0
        %3181 = vmatpush.msra.mxu0 0.0
        %3182 = vmatpush.msra.mxu0 0.0
        %3183 = vmatpush.msra.mxu0 0.0
        %3184 = vmatpush.msra.mxu0 0.0
        %3185 = vmatpush.msra.mxu0 0.0
        %3186 = vmatpush.msra.mxu0 0.0
        %3187 = vmatpush.msra.mxu0 0.0
        %3188 = vmatpush.msra.mxu0 0.0
        %3189 = vmatpush.msra.mxu0 0.0
        %3190 = vmatpush.msra.mxu0 0.0
        %3191 = vmatpush.msra.mxu0 0.0
        %3192 = vmatpush.msra.mxu0 0.0
        %3193 = vmatpush.msra.mxu0 0.0
        %3194 = vmatpush.msra.mxu0 0.0
        %3195 = vmatpush.msra.mxu0 %v3111
        %3196 = vmatpush.msra.mxu0 %v3109
        %3197 = vmatmul.f32.gmra.mxu0 %v399
        %v3198 = vpop.f32.mrf.mxu0
        %v3199 = vadd.f32 0.0, %v3198
        %3200 = vmatmul.f32.gmra.mxu0 %v402
        %v3201 = vpop.f32.mrf.mxu0
        %v3202 = vadd.f32 0.0, %v3201
        %3203 = vdwg.mxu0
        %v3204 = vpack.c.bf16 %v3133, %v3130
        %v3205 = vpack.c.bf16 %v3156, %v3153
        %v3206 = vpack.c.bf16 %v3110, %v3108
        %v3207 = vpack.c.bf16 %v3111, %v3109
        %v3208 = vpack.c.bf16 %v3179, %v3176
        %v3209 = vpack.c.bf16 %v3202, %v3199
        %s3210 = scalar_lea.vmem %s1, 2304
        %v3211 = vld [vmem:[%s3210] sm:$0xff]
        %v3212 = vld [vmem:[%s3210 + $0x8] sm:$0xff]
        %v3213 = vld [vmem:[%s3210 + $0x10] sm:$0xff]
        %v3214 = vld [vmem:[%s3210 + $0x18] sm:$0xff]
        %v3215 = vld [vmem:[%s3210 + $0x20] sm:$0xff]
        %v3216 = vld [vmem:[%s3210 + $0x28] sm:$0xff]
        %v3217 = vld [vmem:[%s3210 + $0x30] sm:$0xff]
        %v3218 = vld [vmem:[%s3210 + $0x38] sm:$0xff]
        %v3219 = vld [vmem:[%s3210 + $0x40] sm:$0xff]
        %v3220 = vld [vmem:[%s3210 + $0x48] sm:$0xff]
        %v3221 = vld [vmem:[%s3210 + $0x50] sm:$0xff]
        %v3222 = vld [vmem:[%s3210 + $0x58] sm:$0xff]
        %v3223 = vld [vmem:[%s3210 + $0x60] sm:$0xff]
        %v3224 = vld [vmem:[%s3210 + $0x68] sm:$0xff]
        %v3225 = vld [vmem:[%s3210 + $0x70] sm:$0xff]
        %v3226 = vld [vmem:[%s3210 + $0x78] sm:$0xff]
        %v3227 = vld [vmem:[%s3210 + $0x80] sm:$0xff]
        %v3228 = vld [vmem:[%s3210 + $0x88] sm:$0xff]
        %v3229 = vld [vmem:[%s3210 + $0x90] sm:$0xff]
        %v3230 = vld [vmem:[%s3210 + $0x98] sm:$0xff]
        %v3231 = vld [vmem:[%s3210 + $0xa0] sm:$0xff]
        %v3232 = vld [vmem:[%s3210 + $0xa8] sm:$0xff]
        %v3233 = vld [vmem:[%s3210 + $0xb0] sm:$0xff]
        %v3234 = vld [vmem:[%s3210 + $0xb8] sm:$0xff]
        %v3235 = vld [vmem:[%s3210 + $0xc0] sm:$0xff]
        %v3236 = vld [vmem:[%s3210 + $0xc8] sm:$0xff]
        %v3237 = vld [vmem:[%s3210 + $0xd0] sm:$0xff]
        %v3238 = vld [vmem:[%s3210 + $0xd8] sm:$0xff]
        %v3239 = vld [vmem:[%s3210 + $0xe0] sm:$0xff]
        %v3240 = vld [vmem:[%s3210 + $0xe8] sm:$0xff]
        %v3241 = vld [vmem:[%s3210 + $0xf0] sm:$0xff]
        %v3242 = vld [vmem:[%s3210 + $0xf8] sm:$0xff]
        %v3243 = vld [vmem:[%s3210 + $0x100] sm:$0xff]
        %v3244 = vld [vmem:[%s3210 + $0x108] sm:$0xff]
        %v3245 = vld [vmem:[%s3210 + $0x110] sm:$0xff]
        %v3246 = vld [vmem:[%s3210 + $0x118] sm:$0xff]
        %v3247 = vld [vmem:[%s3210 + $0x120] sm:$0xff]
        %v3248 = vld [vmem:[%s3210 + $0x128] sm:$0xff]
        %v3249 = vld [vmem:[%s3210 + $0x130] sm:$0xff]
        %v3250 = vld [vmem:[%s3210 + $0x138] sm:$0xff]
        %v3251 = vld [vmem:[%s3210 + $0x140] sm:$0xff]
        %v3252 = vld [vmem:[%s3210 + $0x148] sm:$0xff]
        %v3253 = vld [vmem:[%s3210 + $0x150] sm:$0xff]
        %v3254 = vld [vmem:[%s3210 + $0x158] sm:$0xff]
        %v3255 = vld [vmem:[%s3210 + $0x160] sm:$0xff]
        %v3256 = vld [vmem:[%s3210 + $0x168] sm:$0xff]
        %v3257 = vld [vmem:[%s3210 + $0x170] sm:$0xff]
        %v3258 = vld [vmem:[%s3210 + $0x178] sm:$0xff]
        %v3259 = vld [vmem:[%s3210 + $0x180] sm:$0xff]
        %v3260 = vld [vmem:[%s3210 + $0x188] sm:$0xff]
        %v3261 = vld [vmem:[%s3210 + $0x190] sm:$0xff]
        %v3262 = vld [vmem:[%s3210 + $0x198] sm:$0xff]
        %v3263 = vld [vmem:[%s3210 + $0x1a0] sm:$0xff]
        %v3264 = vld [vmem:[%s3210 + $0x1a8] sm:$0xff]
        %v3265 = vld [vmem:[%s3210 + $0x1b0] sm:$0xff]
        %v3266 = vld [vmem:[%s3210 + $0x1b8] sm:$0xff]
        %v3267 = vld [vmem:[%s3210 + $0x1c0] sm:$0xff]
        %v3268 = vld [vmem:[%s3210 + $0x1c8] sm:$0xff]
        %v3269 = vld [vmem:[%s3210 + $0x1d0] sm:$0xff]
        %v3270 = vld [vmem:[%s3210 + $0x1d8] sm:$0xff]
        %v3271 = vld [vmem:[%s3210 + $0x1e0] sm:$0xff]
        %v3272 = vld [vmem:[%s3210 + $0x1e8] sm:$0xff]
        %v3273 = vld [vmem:[%s3210 + $0x1f0] sm:$0xff]
        %v3274 = vld [vmem:[%s3210 + $0x1f8] sm:$0xff]
        %v3275 = vld [vmem:[%s3210 + $0x200] sm:$0xff]
        %v3276 = vld [vmem:[%s3210 + $0x208] sm:$0xff]
        %v3277 = vld [vmem:[%s3210 + $0x210] sm:$0xff]
        %v3278 = vld [vmem:[%s3210 + $0x218] sm:$0xff]
        %v3279 = vld [vmem:[%s3210 + $0x220] sm:$0xff]
        %v3280 = vld [vmem:[%s3210 + $0x228] sm:$0xff]
        %v3281 = vld [vmem:[%s3210 + $0x230] sm:$0xff]
        %v3282 = vld [vmem:[%s3210 + $0x238] sm:$0xff]
        %v3283 = vld [vmem:[%s3210 + $0x240] sm:$0xff]
        %v3284 = vld [vmem:[%s3210 + $0x248] sm:$0xff]
        %v3285 = vld [vmem:[%s3210 + $0x250] sm:$0xff]
        %v3286 = vld [vmem:[%s3210 + $0x258] sm:$0xff]
        %v3287 = vld [vmem:[%s3210 + $0x260] sm:$0xff]
        %v3288 = vld [vmem:[%s3210 + $0x268] sm:$0xff]
        %v3289 = vld [vmem:[%s3210 + $0x270] sm:$0xff]
        %v3290 = vld [vmem:[%s3210 + $0x278] sm:$0xff]
        %v3291 = vld [vmem:[%s3210 + $0x280] sm:$0xff]
        %v3292 = vld [vmem:[%s3210 + $0x288] sm:$0xff]
        %v3293 = vld [vmem:[%s3210 + $0x290] sm:$0xff]
        %v3294 = vld [vmem:[%s3210 + $0x298] sm:$0xff]
        %v3295 = vld [vmem:[%s3210 + $0x2a0] sm:$0xff]
        %v3296 = vld [vmem:[%s3210 + $0x2a8] sm:$0xff]
        %v3297 = vld [vmem:[%s3210 + $0x2b0] sm:$0xff]
        %v3298 = vld [vmem:[%s3210 + $0x2b8] sm:$0xff]
        %v3299 = vld [vmem:[%s3210 + $0x2c0] sm:$0xff]
        %v3300 = vld [vmem:[%s3210 + $0x2c8] sm:$0xff]
        %v3301 = vld [vmem:[%s3210 + $0x2d0] sm:$0xff]
        %v3302 = vld [vmem:[%s3210 + $0x2d8] sm:$0xff]
        %v3303 = vld [vmem:[%s3210 + $0x2e0] sm:$0xff]
        %v3304 = vld [vmem:[%s3210 + $0x2e8] sm:$0xff]
        %v3305 = vld [vmem:[%s3210 + $0x2f0] sm:$0xff]
        %v3306 = vld [vmem:[%s3210 + $0x2f8] sm:$0xff]
        %s3307 = scalar_lea.vmem %s2, 6
        %v3308 = vld [vmem:[%s3307] sm:$0x3]
        %v3310 = vperm.slane %v3308, 0
        %v3311 = vperm.slane %v3308, 1
        %v3410 = vunpack.c.l.b16 %v3211
        %v3411 = vunpack.c.h.b16 %v3211
        %v3412 = vunpack.c.l.b16 %v3212
        %v3413 = vunpack.c.h.b16 %v3212
        %v3414 = vunpack.c.l.b16 %v3213
        %v3415 = vunpack.c.h.b16 %v3213
        %v3416 = vunpack.c.l.b16 %v3214
        %v3417 = vunpack.c.h.b16 %v3214
        %v3418 = vunpack.c.l.b16 %v3215
        %v3419 = vunpack.c.h.b16 %v3215
        %v3420 = vunpack.c.l.b16 %v3216
        %v3421 = vunpack.c.h.b16 %v3216
        %v3422 = vunpack.c.l.b16 %v3217
        %v3423 = vunpack.c.h.b16 %v3217
        %v3424 = vunpack.c.l.b16 %v3218
        %v3425 = vunpack.c.h.b16 %v3218
        %v3426 = vunpack.c.l.b16 %v3219
        %v3427 = vunpack.c.h.b16 %v3219
        %v3428 = vunpack.c.l.b16 %v3220
        %v3429 = vunpack.c.h.b16 %v3220
        %v3430 = vunpack.c.l.b16 %v3221
        %v3431 = vunpack.c.h.b16 %v3221
        %v3432 = vunpack.c.l.b16 %v3222
        %v3433 = vunpack.c.h.b16 %v3222
        %v3434 = vunpack.c.l.b16 %v3223
        %v3435 = vunpack.c.h.b16 %v3223
        %v3436 = vunpack.c.l.b16 %v3224
        %v3437 = vunpack.c.h.b16 %v3224
        %v3438 = vunpack.c.l.b16 %v3225
        %v3439 = vunpack.c.h.b16 %v3225
        %v3440 = vunpack.c.l.b16 %v3226
        %v3441 = vunpack.c.h.b16 %v3226
        %v3442 = vunpack.c.l.b16 %v3227
        %v3443 = vunpack.c.h.b16 %v3227
        %v3444 = vunpack.c.l.b16 %v3228
        %v3445 = vunpack.c.h.b16 %v3228
        %v3446 = vunpack.c.l.b16 %v3229
        %v3447 = vunpack.c.h.b16 %v3229
        %v3448 = vunpack.c.l.b16 %v3230
        %v3449 = vunpack.c.h.b16 %v3230
        %v3450 = vunpack.c.l.b16 %v3231
        %v3451 = vunpack.c.h.b16 %v3231
        %v3452 = vunpack.c.l.b16 %v3232
        %v3453 = vunpack.c.h.b16 %v3232
        %v3454 = vunpack.c.l.b16 %v3233
        %v3455 = vunpack.c.h.b16 %v3233
        %v3456 = vunpack.c.l.b16 %v3234
        %v3457 = vunpack.c.h.b16 %v3234
        %v3458 = vunpack.c.l.b16 %v3235
        %v3459 = vunpack.c.h.b16 %v3235
        %v3460 = vunpack.c.l.b16 %v3236
        %v3461 = vunpack.c.h.b16 %v3236
        %v3462 = vunpack.c.l.b16 %v3237
        %v3463 = vunpack.c.h.b16 %v3237
        %v3464 = vunpack.c.l.b16 %v3238
        %v3465 = vunpack.c.h.b16 %v3238
        %v3466 = vunpack.c.l.b16 %v3239
        %v3467 = vunpack.c.h.b16 %v3239
        %v3468 = vunpack.c.l.b16 %v3240
        %v3469 = vunpack.c.h.b16 %v3240
        %v3470 = vunpack.c.l.b16 %v3241
        %v3471 = vunpack.c.h.b16 %v3241
        %v3472 = vunpack.c.l.b16 %v3242
        %v3473 = vunpack.c.h.b16 %v3242
        %v3474 = vunpack.c.l.b16 %v3243
        %v3475 = vunpack.c.h.b16 %v3243
        %v3476 = vunpack.c.l.b16 %v3244
        %v3477 = vunpack.c.h.b16 %v3244
        %v3478 = vunpack.c.l.b16 %v3245
        %v3479 = vunpack.c.h.b16 %v3245
        %v3480 = vunpack.c.l.b16 %v3246
        %v3481 = vunpack.c.h.b16 %v3246
        %v3482 = vunpack.c.l.b16 %v3247
        %v3483 = vunpack.c.h.b16 %v3247
        %v3484 = vunpack.c.l.b16 %v3248
        %v3485 = vunpack.c.h.b16 %v3248
        %v3486 = vunpack.c.l.b16 %v3249
        %v3487 = vunpack.c.h.b16 %v3249
        %v3488 = vunpack.c.l.b16 %v3250
        %v3489 = vunpack.c.h.b16 %v3250
        %v3490 = vunpack.c.l.b16 %v3251
        %v3491 = vunpack.c.h.b16 %v3251
        %v3492 = vunpack.c.l.b16 %v3252
        %v3493 = vunpack.c.h.b16 %v3252
        %v3494 = vunpack.c.l.b16 %v3253
        %v3495 = vunpack.c.h.b16 %v3253
        %v3496 = vunpack.c.l.b16 %v3254
        %v3497 = vunpack.c.h.b16 %v3254
        %v3498 = vunpack.c.l.b16 %v3255
        %v3499 = vunpack.c.h.b16 %v3255
        %v3500 = vunpack.c.l.b16 %v3256
        %v3501 = vunpack.c.h.b16 %v3256
        %v3502 = vunpack.c.l.b16 %v3257
        %v3503 = vunpack.c.h.b16 %v3257
        %v3504 = vunpack.c.l.b16 %v3258
        %v3505 = vunpack.c.h.b16 %v3258
        %v3506 = vunpack.c.l.b16 %v3259
        %v3507 = vunpack.c.h.b16 %v3259
        %v3508 = vunpack.c.l.b16 %v3260
        %v3509 = vunpack.c.h.b16 %v3260
        %v3510 = vunpack.c.l.b16 %v3261
        %v3511 = vunpack.c.h.b16 %v3261
        %v3512 = vunpack.c.l.b16 %v3262
        %v3513 = vunpack.c.h.b16 %v3262
        %v3514 = vunpack.c.l.b16 %v3263
        %v3515 = vunpack.c.h.b16 %v3263
        %v3516 = vunpack.c.l.b16 %v3264
        %v3517 = vunpack.c.h.b16 %v3264
        %v3518 = vunpack.c.l.b16 %v3265
        %v3519 = vunpack.c.h.b16 %v3265
        %v3520 = vunpack.c.l.b16 %v3266
        %v3521 = vunpack.c.h.b16 %v3266
        %v3522 = vunpack.c.l.b16 %v3267
        %v3523 = vunpack.c.h.b16 %v3267
        %v3524 = vunpack.c.l.b16 %v3268
        %v3525 = vunpack.c.h.b16 %v3268
        %v3526 = vunpack.c.l.b16 %v3269
        %v3527 = vunpack.c.h.b16 %v3269
        %v3528 = vunpack.c.l.b16 %v3270
        %v3529 = vunpack.c.h.b16 %v3270
        %v3530 = vunpack.c.l.b16 %v3271
        %v3531 = vunpack.c.h.b16 %v3271
        %v3532 = vunpack.c.l.b16 %v3272
        %v3533 = vunpack.c.h.b16 %v3272
        %v3534 = vunpack.c.l.b16 %v3273
        %v3535 = vunpack.c.h.b16 %v3273
        %v3536 = vunpack.c.l.b16 %v3274
        %v3537 = vunpack.c.h.b16 %v3274
        %v3538 = vunpack.c.l.b16 %v3275
        %v3539 = vunpack.c.h.b16 %v3275
        %v3540 = vunpack.c.l.b16 %v3276
        %v3541 = vunpack.c.h.b16 %v3276
        %v3542 = vunpack.c.l.b16 %v3277
        %v3543 = vunpack.c.h.b16 %v3277
        %v3544 = vunpack.c.l.b16 %v3278
        %v3545 = vunpack.c.h.b16 %v3278
        %v3546 = vunpack.c.l.b16 %v3279
        %v3547 = vunpack.c.h.b16 %v3279
        %v3548 = vunpack.c.l.b16 %v3280
        %v3549 = vunpack.c.h.b16 %v3280
        %v3550 = vunpack.c.l.b16 %v3281
        %v3551 = vunpack.c.h.b16 %v3281
        %v3552 = vunpack.c.l.b16 %v3282
        %v3553 = vunpack.c.h.b16 %v3282
        %v3554 = vunpack.c.l.b16 %v3283
        %v3555 = vunpack.c.h.b16 %v3283
        %v3556 = vunpack.c.l.b16 %v3284
        %v3557 = vunpack.c.h.b16 %v3284
        %v3558 = vunpack.c.l.b16 %v3285
        %v3559 = vunpack.c.h.b16 %v3285
        %v3560 = vunpack.c.l.b16 %v3286
        %v3561 = vunpack.c.h.b16 %v3286
        %v3562 = vunpack.c.l.b16 %v3287
        %v3563 = vunpack.c.h.b16 %v3287
        %v3564 = vunpack.c.l.b16 %v3288
        %v3565 = vunpack.c.h.b16 %v3288
        %v3566 = vunpack.c.l.b16 %v3289
        %v3567 = vunpack.c.h.b16 %v3289
        %v3568 = vunpack.c.l.b16 %v3290
        %v3569 = vunpack.c.h.b16 %v3290
        %v3570 = vunpack.c.l.b16 %v3291
        %v3571 = vunpack.c.h.b16 %v3291
        %v3572 = vunpack.c.l.b16 %v3292
        %v3573 = vunpack.c.h.b16 %v3292
        %v3574 = vunpack.c.l.b16 %v3293
        %v3575 = vunpack.c.h.b16 %v3293
        %v3576 = vunpack.c.l.b16 %v3294
        %v3577 = vunpack.c.h.b16 %v3294
        %v3578 = vunpack.c.l.b16 %v3295
        %v3579 = vunpack.c.h.b16 %v3295
        %v3580 = vunpack.c.l.b16 %v3296
        %v3581 = vunpack.c.h.b16 %v3296
        %v3582 = vunpack.c.l.b16 %v3297
        %v3583 = vunpack.c.h.b16 %v3297
        %v3584 = vunpack.c.l.b16 %v3298
        %v3585 = vunpack.c.h.b16 %v3298
        %v3586 = vunpack.c.l.b16 %v3299
        %v3587 = vunpack.c.h.b16 %v3299
        %v3588 = vunpack.c.l.b16 %v3300
        %v3589 = vunpack.c.h.b16 %v3300
        %v3590 = vunpack.c.l.b16 %v3301
        %v3591 = vunpack.c.h.b16 %v3301
        %v3592 = vunpack.c.l.b16 %v3302
        %v3593 = vunpack.c.h.b16 %v3302
        %v3594 = vunpack.c.l.b16 %v3303
        %v3595 = vunpack.c.h.b16 %v3303
        %v3596 = vunpack.c.l.b16 %v3304
        %v3597 = vunpack.c.h.b16 %v3304
        %v3598 = vunpack.c.l.b16 %v3305
        %v3599 = vunpack.c.h.b16 %v3305
        %v3600 = vunpack.c.l.b16 %v3306
        %v3601 = vunpack.c.h.b16 %v3306
        %v3602 = vpack.c.b16 %v3412, %v3410
        %v3603 = vpack.c.b16 %v3413, %v3411
        %v3604 = vpack.c.b16 %v3416, %v3414
        %v3605 = vpack.c.b16 %v3417, %v3415
        %v3606 = vpack.c.b16 %v3420, %v3418
        %v3607 = vpack.c.b16 %v3421, %v3419
        %v3608 = vpack.c.b16 %v3424, %v3422
        %v3609 = vpack.c.b16 %v3425, %v3423
        %v3610 = vpack.c.b16 %v3428, %v3426
        %v3611 = vpack.c.b16 %v3429, %v3427
        %v3612 = vpack.c.b16 %v3432, %v3430
        %v3613 = vpack.c.b16 %v3433, %v3431
        %v3614 = vpack.c.b16 %v3436, %v3434
        %v3615 = vpack.c.b16 %v3437, %v3435
        %v3616 = vpack.c.b16 %v3440, %v3438
        %v3617 = vpack.c.b16 %v3441, %v3439
        %v3618 = vpack.c.b16 %v3444, %v3442
        %v3619 = vpack.c.b16 %v3445, %v3443
        %v3620 = vpack.c.b16 %v3448, %v3446
        %v3621 = vpack.c.b16 %v3449, %v3447
        %v3622 = vpack.c.b16 %v3452, %v3450
        %v3623 = vpack.c.b16 %v3453, %v3451
        %v3624 = vpack.c.b16 %v3456, %v3454
        %v3625 = vpack.c.b16 %v3457, %v3455
        %v3626 = vpack.c.b16 %v3460, %v3458
        %v3627 = vpack.c.b16 %v3461, %v3459
        %v3628 = vpack.c.b16 %v3464, %v3462
        %v3629 = vpack.c.b16 %v3465, %v3463
        %v3630 = vpack.c.b16 %v3468, %v3466
        %v3631 = vpack.c.b16 %v3469, %v3467
        %v3632 = vpack.c.b16 %v3472, %v3470
        %v3633 = vpack.c.b16 %v3473, %v3471
        %v3634 = vpack.c.b16 %v3476, %v3474
        %v3635 = vpack.c.b16 %v3477, %v3475
        %v3636 = vpack.c.b16 %v3480, %v3478
        %v3637 = vpack.c.b16 %v3481, %v3479
        %v3638 = vpack.c.b16 %v3484, %v3482
        %v3639 = vpack.c.b16 %v3485, %v3483
        %v3640 = vpack.c.b16 %v3488, %v3486
        %v3641 = vpack.c.b16 %v3489, %v3487
        %v3642 = vpack.c.b16 %v3492, %v3490
        %v3643 = vpack.c.b16 %v3493, %v3491
        %v3644 = vpack.c.b16 %v3496, %v3494
        %v3645 = vpack.c.b16 %v3497, %v3495
        %v3646 = vpack.c.b16 %v3500, %v3498
        %v3647 = vpack.c.b16 %v3501, %v3499
        %v3648 = vpack.c.b16 %v3504, %v3502
        %v3649 = vpack.c.b16 %v3505, %v3503
        %v3650 = vpack.c.b16 %v3508, %v3506
        %v3651 = vpack.c.b16 %v3509, %v3507
        %v3652 = vpack.c.b16 %v3512, %v3510
        %v3653 = vpack.c.b16 %v3513, %v3511
        %v3654 = vpack.c.b16 %v3516, %v3514
        %v3655 = vpack.c.b16 %v3517, %v3515
        %v3656 = vpack.c.b16 %v3520, %v3518
        %v3657 = vpack.c.b16 %v3521, %v3519
        %v3658 = vpack.c.b16 %v3524, %v3522
        %v3659 = vpack.c.b16 %v3525, %v3523
        %v3660 = vpack.c.b16 %v3528, %v3526
        %v3661 = vpack.c.b16 %v3529, %v3527
        %v3662 = vpack.c.b16 %v3532, %v3530
        %v3663 = vpack.c.b16 %v3533, %v3531
        %v3664 = vpack.c.b16 %v3536, %v3534
        %v3665 = vpack.c.b16 %v3537, %v3535
        %v3666 = vpack.c.b16 %v3540, %v3538
        %v3667 = vpack.c.b16 %v3541, %v3539
        %v3668 = vpack.c.b16 %v3544, %v3542
        %v3669 = vpack.c.b16 %v3545, %v3543
        %v3670 = vpack.c.b16 %v3548, %v3546
        %v3671 = vpack.c.b16 %v3549, %v3547
        %v3672 = vpack.c.b16 %v3552, %v3550
        %v3673 = vpack.c.b16 %v3553, %v3551
        %v3674 = vpack.c.b16 %v3556, %v3554
        %v3675 = vpack.c.b16 %v3557, %v3555
        %v3676 = vpack.c.b16 %v3560, %v3558
        %v3677 = vpack.c.b16 %v3561, %v3559
        %v3678 = vpack.c.b16 %v3564, %v3562
        %v3679 = vpack.c.b16 %v3565, %v3563
        %v3680 = vpack.c.b16 %v3568, %v3566
        %v3681 = vpack.c.b16 %v3569, %v3567
        %v3682 = vpack.c.b16 %v3572, %v3570
        %v3683 = vpack.c.b16 %v3573, %v3571
        %v3684 = vpack.c.b16 %v3576, %v3574
        %v3685 = vpack.c.b16 %v3577, %v3575
        %v3686 = vpack.c.b16 %v3580, %v3578
        %v3687 = vpack.c.b16 %v3581, %v3579
        %v3688 = vpack.c.b16 %v3584, %v3582
        %v3689 = vpack.c.b16 %v3585, %v3583
        %v3690 = vpack.c.b16 %v3588, %v3586
        %v3691 = vpack.c.b16 %v3589, %v3587
        %v3692 = vpack.c.b16 %v3592, %v3590
        %v3693 = vpack.c.b16 %v3593, %v3591
        %v3694 = vpack.c.b16 %v3596, %v3594
        %v3695 = vpack.c.b16 %v3597, %v3595
        %v3696 = vpack.c.b16 %v3600, %v3598
        %v3697 = vpack.c.b16 %v3601, %v3599
        %3794 = vmatpush.bf16.msra.mxu0 %v3616
        %3795 = vmatpush.bf16.msra.mxu0 %v3614
        %3796 = vmatpush.bf16.msra.mxu0 %v3612
        %3797 = vmatpush.bf16.msra.mxu0 %v3610
        %3798 = vmatpush.bf16.msra.mxu0 %v3608
        %3799 = vmatpush.bf16.msra.mxu0 %v3606
        %3800 = vmatpush.bf16.msra.mxu0 %v3604
        %3801 = vmatpush.bf16.msra.mxu0 %v3602
        %3802 = vmatmul.bf16.gmra.mxu0 %v3204
        %v3803 = vpop.f32.mrf.mxu0
        %v3804 = vadd.f32 %v3310, %v3803
        %v3805 = vpop.f32.mrf.mxu0
        %v3806 = vadd.f32 %v3310, %v3805
        %3807 = vdwg.mxu0
        %3808 = vmatpush.bf16.msra.mxu0 %v3632
        %3809 = vmatpush.bf16.msra.mxu0 %v3630
        %3810 = vmatpush.bf16.msra.mxu0 %v3628
        %3811 = vmatpush.bf16.msra.mxu0 %v3626
        %3812 = vmatpush.bf16.msra.mxu0 %v3624
        %3813 = vmatpush.bf16.msra.mxu0 %v3622
        %3814 = vmatpush.bf16.msra.mxu0 %v3620
        %3815 = vmatpush.bf16.msra.mxu0 %v3618
        %3816 = vmatmul.bf16.gmra.mxu0 %v3205
        %v3817 = vpop.f32.mrf.mxu0
        %v3818 = vadd.f32 %v3804, %v3817
        %v3819 = vpop.f32.mrf.mxu0
        %v3820 = vadd.f32 %v3806, %v3819
        %3821 = vdwg.mxu0
        %3822 = vmatpush.bf16.msra.mxu0 %v3648
        %3823 = vmatpush.bf16.msra.mxu0 %v3646
        %3824 = vmatpush.bf16.msra.mxu0 %v3644
        %3825 = vmatpush.bf16.msra.mxu0 %v3642
        %3826 = vmatpush.bf16.msra.mxu0 %v3640
        %3827 = vmatpush.bf16.msra.mxu0 %v3638
        %3828 = vmatpush.bf16.msra.mxu0 %v3636
        %3829 = vmatpush.bf16.msra.mxu0 %v3634
        %3830 = vmatmul.bf16.gmra.mxu0 %v3206
        %v3831 = vpop.f32.mrf.mxu0
        %v3832 = vadd.f32 %v3818, %v3831
        %v3833 = vpop.f32.mrf.mxu0
        %v3834 = vadd.f32 %v3820, %v3833
        %3835 = vdwg.mxu0
        %3836 = vmatpush.bf16.msra.mxu0 %v3664
        %3837 = vmatpush.bf16.msra.mxu0 %v3662
        %3838 = vmatpush.bf16.msra.mxu0 %v3660
        %3839 = vmatpush.bf16.msra.mxu0 %v3658
        %3840 = vmatpush.bf16.msra.mxu0 %v3656
        %3841 = vmatpush.bf16.msra.mxu0 %v3654
        %3842 = vmatpush.bf16.msra.mxu0 %v3652
        %3843 = vmatpush.bf16.msra.mxu0 %v3650
        %3844 = vmatmul.bf16.gmra.mxu0 %v3207
        %v3845 = vpop.f32.mrf.mxu0
        %v3846 = vadd.f32 %v3832, %v3845
        %v3847 = vpop.f32.mrf.mxu0
        %v3848 = vadd.f32 %v3834, %v3847
        %3849 = vdwg.mxu0
        %3850 = vmatpush.bf16.msra.mxu0 %v3680
        %3851 = vmatpush.bf16.msra.mxu0 %v3678
        %3852 = vmatpush.bf16.msra.mxu0 %v3676
        %3853 = vmatpush.bf16.msra.mxu0 %v3674
        %3854 = vmatpush.bf16.msra.mxu0 %v3672
        %3855 = vmatpush.bf16.msra.mxu0 %v3670
        %3856 = vmatpush.bf16.msra.mxu0 %v3668
        %3857 = vmatpush.bf16.msra.mxu0 %v3666
        %3858 = vmatmul.bf16.gmra.mxu0 %v3208
        %v3859 = vpop.f32.mrf.mxu0
        %v3860 = vadd.f32 %v3846, %v3859
        %v3861 = vpop.f32.mrf.mxu0
        %v3862 = vadd.f32 %v3848, %v3861
        %3863 = vdwg.mxu0
        %3864 = vmatpush.bf16.msra.mxu0 %v3696
        %3865 = vmatpush.bf16.msra.mxu0 %v3694
        %3866 = vmatpush.bf16.msra.mxu0 %v3692
        %3867 = vmatpush.bf16.msra.mxu0 %v3690
        %3868 = vmatpush.bf16.msra.mxu0 %v3688
        %3869 = vmatpush.bf16.msra.mxu0 %v3686
        %3870 = vmatpush.bf16.msra.mxu0 %v3684
        %3871 = vmatpush.bf16.msra.mxu0 %v3682
        %3872 = vmatmul.bf16.gmra.mxu0 %v3209
        %v3873 = vpop.f32.mrf.mxu0
        %v3874 = vadd.f32 %v3860, %v3873
        %v3875 = vpop.f32.mrf.mxu0
        %v3876 = vadd.f32 %v3862, %v3875
        %3877 = vdwg.mxu0
        %3878 = vmatpush.bf16.msra.mxu0 %v3617
        %3879 = vmatpush.bf16.msra.mxu0 %v3615
        %3880 = vmatpush.bf16.msra.mxu0 %v3613
        %3881 = vmatpush.bf16.msra.mxu0 %v3611
        %3882 = vmatpush.bf16.msra.mxu0 %v3609
        %3883 = vmatpush.bf16.msra.mxu0 %v3607
        %3884 = vmatpush.bf16.msra.mxu0 %v3605
        %3885 = vmatpush.bf16.msra.mxu0 %v3603
        %3886 = vmatmul.bf16.gmra.mxu0 %v3204
        %v3887 = vpop.f32.mrf.mxu0
        %v3888 = vadd.f32 %v3311, %v3887
        %v3889 = vpop.f32.mrf.mxu0
        %v3890 = vadd.f32 %v3311, %v3889
        %3891 = vdwg.mxu0
        %3892 = vmatpush.bf16.msra.mxu0 %v3633
        %3893 = vmatpush.bf16.msra.mxu0 %v3631
        %3894 = vmatpush.bf16.msra.mxu0 %v3629
        %3895 = vmatpush.bf16.msra.mxu0 %v3627
        %3896 = vmatpush.bf16.msra.mxu0 %v3625
        %3897 = vmatpush.bf16.msra.mxu0 %v3623
        %3898 = vmatpush.bf16.msra.mxu0 %v3621
        %3899 = vmatpush.bf16.msra.mxu0 %v3619
        %3900 = vmatmul.bf16.gmra.mxu0 %v3205
        %v3901 = vpop.f32.mrf.mxu0
        %v3902 = vadd.f32 %v3888, %v3901
        %v3903 = vpop.f32.mrf.mxu0
        %v3904 = vadd.f32 %v3890, %v3903
        %3905 = vdwg.mxu0
        %3906 = vmatpush.bf16.msra.mxu0 %v3649
        %3907 = vmatpush.bf16.msra.mxu0 %v3647
        %3908 = vmatpush.bf16.msra.mxu0 %v3645
        %3909 = vmatpush.bf16.msra.mxu0 %v3643
        %3910 = vmatpush.bf16.msra.mxu0 %v3641
        %3911 = vmatpush.bf16.msra.mxu0 %v3639
        %3912 = vmatpush.bf16.msra.mxu0 %v3637
        %3913 = vmatpush.bf16.msra.mxu0 %v3635
        %3914 = vmatmul.bf16.gmra.mxu0 %v3206
        %v3915 = vpop.f32.mrf.mxu0
        %v3916 = vadd.f32 %v3902, %v3915
        %v3917 = vpop.f32.mrf.mxu0
        %v3918 = vadd.f32 %v3904, %v3917
        %3919 = vdwg.mxu0
        %3920 = vmatpush.bf16.msra.mxu0 %v3665
        %3921 = vmatpush.bf16.msra.mxu0 %v3663
        %3922 = vmatpush.bf16.msra.mxu0 %v3661
        %3923 = vmatpush.bf16.msra.mxu0 %v3659
        %3924 = vmatpush.bf16.msra.mxu0 %v3657
        %3925 = vmatpush.bf16.msra.mxu0 %v3655
        %3926 = vmatpush.bf16.msra.mxu0 %v3653
        %3927 = vmatpush.bf16.msra.mxu0 %v3651
        %3928 = vmatmul.bf16.gmra.mxu0 %v3207
        %v3929 = vpop.f32.mrf.mxu0
        %v3930 = vadd.f32 %v3916, %v3929
        %v3931 = vpop.f32.mrf.mxu0
        %v3932 = vadd.f32 %v3918, %v3931
        %3933 = vdwg.mxu0
        %3934 = vmatpush.bf16.msra.mxu0 %v3681
        %3935 = vmatpush.bf16.msra.mxu0 %v3679
        %3936 = vmatpush.bf16.msra.mxu0 %v3677
        %3937 = vmatpush.bf16.msra.mxu0 %v3675
        %3938 = vmatpush.bf16.msra.mxu0 %v3673
        %3939 = vmatpush.bf16.msra.mxu0 %v3671
        %3940 = vmatpush.bf16.msra.mxu0 %v3669
        %3941 = vmatpush.bf16.msra.mxu0 %v3667
        %3942 = vmatmul.bf16.gmra.mxu0 %v3208
        %v3943 = vpop.f32.mrf.mxu0
        %v3944 = vadd.f32 %v3930, %v3943
        %v3945 = vpop.f32.mrf.mxu0
        %v3946 = vadd.f32 %v3932, %v3945
        %3947 = vdwg.mxu0
        %3948 = vmatpush.bf16.msra.mxu0 %v3697
        %3949 = vmatpush.bf16.msra.mxu0 %v3695
        %3950 = vmatpush.bf16.msra.mxu0 %v3693
        %3951 = vmatpush.bf16.msra.mxu0 %v3691
        %3952 = vmatpush.bf16.msra.mxu0 %v3689
        %3953 = vmatpush.bf16.msra.mxu0 %v3687
        %3954 = vmatpush.bf16.msra.mxu0 %v3685
        %3955 = vmatpush.bf16.msra.mxu0 %v3683
        %3956 = vmatmul.bf16.gmra.mxu0 %v3209
        %v3957 = vpop.f32.mrf.mxu0
        %v3958 = vadd.f32 %v3944, %v3957
        %v3959 = vpop.f32.mrf.mxu0
        %v3960 = vadd.f32 %v3946, %v3959
        %3961 = vdwg.mxu0
        %v3962 = vadd.f32 %v3874, %v3876
        %v3963 = vrot.slane %v3962, 4
        %v3964 = vadd.f32 %v3962, %v3963
        %v3965 = vrot.slane %v3964, 2
        %v3966 = vadd.f32 %v3964, %v3965
        %v3967 = vrot.slane %v3966, 1
        %v3968 = vadd.f32 %v3966, %v3967
        %v3969 = vadd.f32 %v3958, %v3960
        %v3970 = vrot.slane %v3969, 4
        %v3971 = vadd.f32 %v3969, %v3970
        %v3972 = vrot.slane %v3971, 2
        %v3973 = vadd.f32 %v3971, %v3972
        %v3974 = vrot.slane %v3973, 1
        %v3975 = vadd.f32 %v3973, %v3974
        %v3976 = vmax.f32 %v3874, %v3876
        %v3977 = vrot.slane %v3976, 4
        %v3978 = vmax.f32 %v3976, %v3977
        %v3979 = vrot.slane %v3978, 2
        %v3980 = vmax.f32 %v3978, %v3979
        %v3981 = vrot.slane %v3980, 1
        %v3982 = vmax.f32 %v3980, %v3981
        %v3983 = vmax.f32 %v3958, %v3960
        %v3984 = vrot.slane %v3983, 4
        %v3985 = vmax.f32 %v3983, %v3984
        %v3986 = vrot.slane %v3985, 2
        %v3987 = vmax.f32 %v3985, %v3986
        %v3988 = vrot.slane %v3987, 1
        %v3989 = vmax.f32 %v3987, %v3988
        %3990 = vrot.lane.b32.xlu0 %v3968, 16
        %v3991 = vpop.permute.xlu0 %3990
        %3992 = vrot.lane.b32.xlu0 %v3975, 16
        %v3993 = vpop.permute.xlu0 %3992
        %v3994 = vsel %vm2092, %v3991, %v3993
        %v3995 = vsel %vm2092, %v3993, %v3991
        %v3996 = vadd.f32 %v3968, %v3995
        %v3997 = vadd.f32 %v3975, %v3994
        %3998 = vrot.lane.b32.xlu0 %v3996, 32
        %v3999 = vpop.permute.xlu0 %3998
        %4000 = vrot.lane.b32.xlu0 %v3997, 32
        %v4001 = vpop.permute.xlu0 %4000
        %v4002 = vsel %vm2101, %v3999, %v4001
        %v4003 = vsel %vm2101, %v4001, %v3999
        %v4004 = vadd.f32 %v3996, %v4003
        %v4005 = vadd.f32 %v3997, %v4002
        %4006 = vrot.lane.b32.xlu0 %v4004, 64
        %v4007 = vpop.permute.xlu0 %4006
        %4008 = vrot.lane.b32.xlu0 %v4005, 64
        %v4009 = vpop.permute.xlu0 %4008
        %v4010 = vsel %vm2110, %v4007, %v4009
        %v4011 = vsel %vm2110, %v4009, %v4007
        %v4012 = vadd.f32 %v4004, %v4011
        %v4013 = vadd.f32 %v4005, %v4010
        %v4014 = vadd.f32 %v4012, %v4013
        %v4015 = vmul.f32 %v4014, 0.00390625
        %4016 = vrot.lane.b32.xlu0 %v3982, 16
        %v4017 = vpop.permute.xlu0 %4016
        %4018 = vrot.lane.b32.xlu0 %v3989, 16
        %v4019 = vpop.permute.xlu0 %4018
        %v4020 = vsel %vm2092, %v4017, %v4019
        %v4021 = vsel %vm2092, %v4019, %v4017
        %v4022 = vmax.f32 %v3982, %v4021
        %v4023 = vmax.f32 %v3989, %v4020
        %4024 = vrot.lane.b32.xlu0 %v4022, 32
        %v4025 = vpop.permute.xlu0 %4024
        %4026 = vrot.lane.b32.xlu0 %v4023, 32
        %v4027 = vpop.permute.xlu0 %4026
        %v4028 = vsel %vm2101, %v4025, %v4027
        %v4029 = vsel %vm2101, %v4027, %v4025
        %v4030 = vmax.f32 %v4022, %v4029
        %v4031 = vmax.f32 %v4023, %v4028
        %4032 = vrot.lane.b32.xlu0 %v4030, 64
        %v4033 = vpop.permute.xlu0 %4032
        %4034 = vrot.lane.b32.xlu0 %v4031, 64
        %v4035 = vpop.permute.xlu0 %4034
        %v4036 = vsel %vm2110, %v4033, %v4035
        %v4037 = vsel %vm2110, %v4035, %v4033
        %v4038 = vmax.f32 %v4030, %v4037
        %v4039 = vmax.f32 %v4031, %v4036
        %v4040 = vmax.f32 %v4038, %v4039
        %s4041 = sld [smem:[#allocation2 + $0x1]]
        %v4042 = vstv %s4041
        %v4043 = vmul.f32 %v4042, %v4015
        %s4044 = ssub.f32 1.0, %s4041
        %v4045 = vstv %s4044
        %v4046 = vmul.f32 %v4045, %v4040
        %v4047 = vadd.f32 %v4043, %v4046
        %s4048 = scalar_lea.vmem %s4, 8
        %v4049 = vld [vmem:[%s4048] sm:$0xff]
        %v4050 = vperm.slane %v4047, 0
        %v4052 = vrot.slane %v4050, 4
        %v4053 = vsel %vm2153, %v4050, %v4052
        %v4055 = vmul.f32 %v4049, %v4053
        %4057 = vst [vmem:[#allocation1] ss:$2 sm:$0xff] %v4055
        %v4058 = vld.sshfl [vmem:[#allocation1] sm:$0xff pattern:$0x75316420]
        %v4059 = vld.sshfl [vmem:[#allocation1 + $0x8] sm:$0xff pattern:$0x75316420]
        %v4062 = vsel %vm2153, %v4058, 0.0
        %v4063 = vsel %vm2153, %v4059, 0.0
        %v4064 = vadd.f32 %v4062, %v4063
        %4065 = vadd.xlane.f32.xlu0 %v4064
        %v4066 = vpop.xlane.xlu0 %4065
        %s4067 = scalar_lea.vmem %s5, 4
        %v4068 = vld [vmem:[%s4067] sm:$0xf]
        %v4069 = vadd.f32 %v4066, %v4068
        %v4070 = vmax.f32 %v4069, 0.0
        %s4071 = scalar_lea.vmem %s6, 8
        %v4072 = vld [vmem:[%s4071] sm:$0xff]
        %4074 = vset.pattern.permute.xlu0 0
        %4075 = vperm.xlu0 %4074, %v4070
        %v4076 = vpop.permute.xlu0 %4075
        %v4078 = vunpack.c.l.s4 839922192
        %v4079 = vunpack.c.0.s8 %v4078
        %v4080 = vperm.slane %v4076, %v4079
        %v4082 = vmul.f32 %v4072, %v4080
        %4084 = vst [vmem:[#allocation1] ss:$2 sm:$0xff] %v4082
        %v4085 = vld.sshfl [vmem:[#allocation1] sm:$0xff pattern:$0x75316420]
        %v4086 = vld.sshfl [vmem:[#allocation1 + $0x8] sm:$0xff pattern:$0x75316420]
        %v4089 = vsel %vm2153, %v4085, 0.0
        %v4090 = vrot.slane %v4089, 4
        %v4091 = vadd.f32 %v4089, %v4090
        %v4092 = vrot.slane %v4091, 2
        %v4093 = vadd.f32 %v4091, %v4092
        %v4094 = vrot.slane %v4093, 1
        %v4095 = vadd.f32 %v4093, %v4094
        %v4096 = vsel %vm2153, %v4086, 0.0
        %v4097 = vrot.slane %v4096, 4
        %v4098 = vadd.f32 %v4096, %v4097
        %v4099 = vrot.slane %v4098, 2
        %v4100 = vadd.f32 %v4098, %v4099
        %v4101 = vrot.slane %v4100, 1
        %v4102 = vadd.f32 %v4100, %v4101
        %s4103 = scalar_lea.vmem %s7, 2
        %v4104 = vld [vmem:[%s4103] sm:$0x3]
        %v4106 = vperm.slane %v4104, 0
        %v4107 = vperm.slane %v4104, 1
        %v4110 = vadd.f32 %v4095, %v4106
        %v4111 = vadd.f32 %v4102, %v4107
        %v4112 = vxor.u32 %v4110, 2147483648
        %v4113 = vxor.u32 %v4111, 2147483648
        %v4114 = vmul.f32 %v4112, 1.442695
        %v4115 = vpow.pop %v4114
        %v4116 = vmul.f32 %v4113, 1.442695
        %v4117 = vpow.pop %v4116
        %v4118 = vadd.f32 %v4115, 1.0
        %v4119 = vadd.f32 %v4117, 1.0
        %v4120 = vrcp.pop %v4118
        %v4121 = vmul.f32 %v4118, %v4120
        %v4122 = vsub.f32 1.0, %v4121
        %v4123 = vmul.f32 %v4120, %v4122
        %v4124 = vadd.f32 %v4120, %v4123
        %vm4125 = vweird.f32 %v4118
        %vm4126 = vweird.f32 %v4120
        %vm4127 = vmor %vm4125, %vm4126
        %v4128 = vsel %vm4127, %v4120, %v4124
        %v4129 = vand.u32 2147483647, %v4118
        %vm4130 = vcmp.eq.f32.partialorder %v4129, 8.507059e+37
        %v4131 = vand.u32 %v4118, 2147483648
        %v4132 = vor.u32 1.1754944e-38, %v4131
        %v4133 = vsel %vm4130, %v4132, %v4128
        %v4134 = vmul.f32 1.0, %v4133
        %v4135 = vrcp.pop %v4119
        %v4136 = vmul.f32 %v4119, %v4135
        %v4137 = vsub.f32 1.0, %v4136
        %v4138 = vmul.f32 %v4135, %v4137
        %v4139 = vadd.f32 %v4135, %v4138
        %vm4140 = vweird.f32 %v4119
        %vm4141 = vweird.f32 %v4135
        %vm4142 = vmor %vm4140, %vm4141
        %v4143 = vsel %vm4142, %v4135, %v4139
        %v4144 = vand.u32 2147483647, %v4119
        %vm4145 = vcmp.eq.f32.partialorder %v4144, 8.507059e+37
        %v4146 = vand.u32 %v4119, 2147483648
        %v4147 = vor.u32 1.1754944e-38, %v4146
        %v4148 = vsel %vm4145, %v4147, %v4143
        %v4149 = vmul.f32 1.0, %v4148
        %v4150 = vperm.slane %v4134, 0
        %v4151 = vperm.slane %v4149, 0
        %v4152 = vmul.f32 %v3874, %v4150
        %v4153 = vmul.f32 %v3958, %v4151
        %v4154 = vmul.f32 %v3876, %v4150
        %v4155 = vmul.f32 %v3960, %v4151
        %v4156 = vadd.f32 %v4152, %v2254
        %v4157 = vadd.f32 %v4153, %v2255
        %v4158 = vadd.f32 %v4154, %v2256
        %v4159 = vadd.f32 %v4155, %v2257
        %4160 = vmatpush.msra.mxu0 0.0
        %4161 = vmatpush.msra.mxu0 0.0
        %4162 = vmatpush.msra.mxu0 0.0
        %4163 = vmatpush.msra.mxu0 0.0
        %4164 = vmatpush.msra.mxu0 0.0
        %4165 = vmatpush.msra.mxu0 0.0
        %4166 = vmatpush.msra.mxu0 0.0
        %4167 = vmatpush.msra.mxu0 0.0
        %4168 = vmatpush.msra.mxu0 0.0
        %4169 = vmatpush.msra.mxu0 0.0
        %4170 = vmatpush.msra.mxu0 0.0
        %4171 = vmatpush.msra.mxu0 0.0
        %4172 = vmatpush.msra.mxu0 0.0
        %4173 = vmatpush.msra.mxu0 0.0
        %4174 = vmatpush.msra.mxu0 %v4158
        %4175 = vmatpush.msra.mxu0 %v4156
        %4176 = vmatmul.f32.gmra.mxu0 %v347
        %v4177 = vpop.f32.mrf.mxu0
        %v4178 = vadd.f32 0.0, %v4177
        %4179 = vmatmul.f32.gmra.mxu0 %v350
        %v4180 = vpop.f32.mrf.mxu0
        %v4181 = vadd.f32 0.0, %v4180
        %4182 = vdwg.mxu0
        %4183 = vmatpush.msra.mxu0 0.0
        %4184 = vmatpush.msra.mxu0 0.0
        %4185 = vmatpush.msra.mxu0 0.0
        %4186 = vmatpush.msra.mxu0 0.0
        %4187 = vmatpush.msra.mxu0 0.0
        %4188 = vmatpush.msra.mxu0 0.0
        %4189 = vmatpush.msra.mxu0 0.0
        %4190 = vmatpush.msra.mxu0 0.0
        %4191 = vmatpush.msra.mxu0 0.0
        %4192 = vmatpush.msra.mxu0 0.0
        %4193 = vmatpush.msra.mxu0 0.0
        %4194 = vmatpush.msra.mxu0 0.0
        %4195 = vmatpush.msra.mxu0 0.0
        %4196 = vmatpush.msra.mxu0 0.0
        %4197 = vmatpush.msra.mxu0 %v4159
        %4198 = vmatpush.msra.mxu0 %v4157
        %4199 = vmatmul.f32.gmra.mxu0 %v347
        %v4200 = vpop.f32.mrf.mxu0
        %v4201 = vadd.f32 0.0, %v4200
        %4202 = vmatmul.f32.gmra.mxu0 %v350
        %v4203 = vpop.f32.mrf.mxu0
        %v4204 = vadd.f32 0.0, %v4203
        %4205 = vdwg.mxu0
        %4206 = vmatpush.msra.mxu0 0.0
        %4207 = vmatpush.msra.mxu0 0.0
        %4208 = vmatpush.msra.mxu0 0.0
        %4209 = vmatpush.msra.mxu0 0.0
        %4210 = vmatpush.msra.mxu0 0.0
        %4211 = vmatpush.msra.mxu0 0.0
        %4212 = vmatpush.msra.mxu0 0.0
        %4213 = vmatpush.msra.mxu0 0.0
        %4214 = vmatpush.msra.mxu0 0.0
        %4215 = vmatpush.msra.mxu0 0.0
        %4216 = vmatpush.msra.mxu0 0.0
        %4217 = vmatpush.msra.mxu0 0.0
        %4218 = vmatpush.msra.mxu0 0.0
        %4219 = vmatpush.msra.mxu0 0.0
        %4220 = vmatpush.msra.mxu0 %v4158
        %4221 = vmatpush.msra.mxu0 %v4156
        %4222 = vmatmul.f32.gmra.mxu0 %v399
        %v4223 = vpop.f32.mrf.mxu0
        %v4224 = vadd.f32 0.0, %v4223
        %4225 = vmatmul.f32.gmra.mxu0 %v402
        %v4226 = vpop.f32.mrf.mxu0
        %v4227 = vadd.f32 0.0, %v4226
        %4228 = vdwg.mxu0
        %4229 = vmatpush.msra.mxu0 0.0
        %4230 = vmatpush.msra.mxu0 0.0
        %4231 = vmatpush.msra.mxu0 0.0
        %4232 = vmatpush.msra.mxu0 0.0
        %4233 = vmatpush.msra.mxu0 0.0
        %4234 = vmatpush.msra.mxu0 0.0
        %4235 = vmatpush.msra.mxu0 0.0
        %4236 = vmatpush.msra.mxu0 0.0
        %4237 = vmatpush.msra.mxu0 0.0
        %4238 = vmatpush.msra.mxu0 0.0
        %4239 = vmatpush.msra.mxu0 0.0
        %4240 = vmatpush.msra.mxu0 0.0
        %4241 = vmatpush.msra.mxu0 0.0
        %4242 = vmatpush.msra.mxu0 0.0
        %4243 = vmatpush.msra.mxu0 %v4159
        %4244 = vmatpush.msra.mxu0 %v4157
        %4245 = vmatmul.f32.gmra.mxu0 %v399
        %v4246 = vpop.f32.mrf.mxu0
        %v4247 = vadd.f32 0.0, %v4246
        %4248 = vmatmul.f32.gmra.mxu0 %v402
        %v4249 = vpop.f32.mrf.mxu0
        %v4250 = vadd.f32 0.0, %v4249
        %4251 = vdwg.mxu0
        %v4252 = vpack.c.bf16 %v4181, %v4178
        %v4253 = vpack.c.bf16 %v4204, %v4201
        %v4254 = vpack.c.bf16 %v4158, %v4156
        %v4255 = vpack.c.bf16 %v4159, %v4157
        %v4256 = vpack.c.bf16 %v4227, %v4224
        %v4257 = vpack.c.bf16 %v4250, %v4247
        %s4258 = scalar_lea.vmem %s1, 3072
        %v4259 = vld [vmem:[%s4258] sm:$0xff]
        %v4260 = vld [vmem:[%s4258 + $0x8] sm:$0xff]
        %v4261 = vld [vmem:[%s4258 + $0x10] sm:$0xff]
        %v4262 = vld [vmem:[%s4258 + $0x18] sm:$0xff]
        %v4263 = vld [vmem:[%s4258 + $0x20] sm:$0xff]
        %v4264 = vld [vmem:[%s4258 + $0x28] sm:$0xff]
        %v4265 = vld [vmem:[%s4258 + $0x30] sm:$0xff]
        %v4266 = vld [vmem:[%s4258 + $0x38] sm:$0xff]
        %v4267 = vld [vmem:[%s4258 + $0x40] sm:$0xff]
        %v4268 = vld [vmem:[%s4258 + $0x48] sm:$0xff]
        %v4269 = vld [vmem:[%s4258 + $0x50] sm:$0xff]
        %v4270 = vld [vmem:[%s4258 + $0x58] sm:$0xff]
        %v4271 = vld [vmem:[%s4258 + $0x60] sm:$0xff]
        %v4272 = vld [vmem:[%s4258 + $0x68] sm:$0xff]
        %v4273 = vld [vmem:[%s4258 + $0x70] sm:$0xff]
        %v4274 = vld [vmem:[%s4258 + $0x78] sm:$0xff]
        %v4275 = vld [vmem:[%s4258 + $0x80] sm:$0xff]
        %v4276 = vld [vmem:[%s4258 + $0x88] sm:$0xff]
        %v4277 = vld [vmem:[%s4258 + $0x90] sm:$0xff]
        %v4278 = vld [vmem:[%s4258 + $0x98] sm:$0xff]
        %v4279 = vld [vmem:[%s4258 + $0xa0] sm:$0xff]
        %v4280 = vld [vmem:[%s4258 + $0xa8] sm:$0xff]
        %v4281 = vld [vmem:[%s4258 + $0xb0] sm:$0xff]
        %v4282 = vld [vmem:[%s4258 + $0xb8] sm:$0xff]
        %v4283 = vld [vmem:[%s4258 + $0xc0] sm:$0xff]
        %v4284 = vld [vmem:[%s4258 + $0xc8] sm:$0xff]
        %v4285 = vld [vmem:[%s4258 + $0xd0] sm:$0xff]
        %v4286 = vld [vmem:[%s4258 + $0xd8] sm:$0xff]
        %v4287 = vld [vmem:[%s4258 + $0xe0] sm:$0xff]
        %v4288 = vld [vmem:[%s4258 + $0xe8] sm:$0xff]
        %v4289 = vld [vmem:[%s4258 + $0xf0] sm:$0xff]
        %v4290 = vld [vmem:[%s4258 + $0xf8] sm:$0xff]
        %v4291 = vld [vmem:[%s4258 + $0x100] sm:$0xff]
        %v4292 = vld [vmem:[%s4258 + $0x108] sm:$0xff]
        %v4293 = vld [vmem:[%s4258 + $0x110] sm:$0xff]
        %v4294 = vld [vmem:[%s4258 + $0x118] sm:$0xff]
        %v4295 = vld [vmem:[%s4258 + $0x120] sm:$0xff]
        %v4296 = vld [vmem:[%s4258 + $0x128] sm:$0xff]
        %v4297 = vld [vmem:[%s4258 + $0x130] sm:$0xff]
        %v4298 = vld [vmem:[%s4258 + $0x138] sm:$0xff]
        %v4299 = vld [vmem:[%s4258 + $0x140] sm:$0xff]
        %v4300 = vld [vmem:[%s4258 + $0x148] sm:$0xff]
        %v4301 = vld [vmem:[%s4258 + $0x150] sm:$0xff]
        %v4302 = vld [vmem:[%s4258 + $0x158] sm:$0xff]
        %v4303 = vld [vmem:[%s4258 + $0x160] sm:$0xff]
        %v4304 = vld [vmem:[%s4258 + $0x168] sm:$0xff]
        %v4305 = vld [vmem:[%s4258 + $0x170] sm:$0xff]
        %v4306 = vld [vmem:[%s4258 + $0x178] sm:$0xff]
        %v4307 = vld [vmem:[%s4258 + $0x180] sm:$0xff]
        %v4308 = vld [vmem:[%s4258 + $0x188] sm:$0xff]
        %v4309 = vld [vmem:[%s4258 + $0x190] sm:$0xff]
        %v4310 = vld [vmem:[%s4258 + $0x198] sm:$0xff]
        %v4311 = vld [vmem:[%s4258 + $0x1a0] sm:$0xff]
        %v4312 = vld [vmem:[%s4258 + $0x1a8] sm:$0xff]
        %v4313 = vld [vmem:[%s4258 + $0x1b0] sm:$0xff]
        %v4314 = vld [vmem:[%s4258 + $0x1b8] sm:$0xff]
        %v4315 = vld [vmem:[%s4258 + $0x1c0] sm:$0xff]
        %v4316 = vld [vmem:[%s4258 + $0x1c8] sm:$0xff]
        %v4317 = vld [vmem:[%s4258 + $0x1d0] sm:$0xff]
        %v4318 = vld [vmem:[%s4258 + $0x1d8] sm:$0xff]
        %v4319 = vld [vmem:[%s4258 + $0x1e0] sm:$0xff]
        %v4320 = vld [vmem:[%s4258 + $0x1e8] sm:$0xff]
        %v4321 = vld [vmem:[%s4258 + $0x1f0] sm:$0xff]
        %v4322 = vld [vmem:[%s4258 + $0x1f8] sm:$0xff]
        %v4323 = vld [vmem:[%s4258 + $0x200] sm:$0xff]
        %v4324 = vld [vmem:[%s4258 + $0x208] sm:$0xff]
        %v4325 = vld [vmem:[%s4258 + $0x210] sm:$0xff]
        %v4326 = vld [vmem:[%s4258 + $0x218] sm:$0xff]
        %v4327 = vld [vmem:[%s4258 + $0x220] sm:$0xff]
        %v4328 = vld [vmem:[%s4258 + $0x228] sm:$0xff]
        %v4329 = vld [vmem:[%s4258 + $0x230] sm:$0xff]
        %v4330 = vld [vmem:[%s4258 + $0x238] sm:$0xff]
        %v4331 = vld [vmem:[%s4258 + $0x240] sm:$0xff]
        %v4332 = vld [vmem:[%s4258 + $0x248] sm:$0xff]
        %v4333 = vld [vmem:[%s4258 + $0x250] sm:$0xff]
        %v4334 = vld [vmem:[%s4258 + $0x258] sm:$0xff]
        %v4335 = vld [vmem:[%s4258 + $0x260] sm:$0xff]
        %v4336 = vld [vmem:[%s4258 + $0x268] sm:$0xff]
        %v4337 = vld [vmem:[%s4258 + $0x270] sm:$0xff]
        %v4338 = vld [vmem:[%s4258 + $0x278] sm:$0xff]
        %v4339 = vld [vmem:[%s4258 + $0x280] sm:$0xff]
        %v4340 = vld [vmem:[%s4258 + $0x288] sm:$0xff]
        %v4341 = vld [vmem:[%s4258 + $0x290] sm:$0xff]
        %v4342 = vld [vmem:[%s4258 + $0x298] sm:$0xff]
        %v4343 = vld [vmem:[%s4258 + $0x2a0] sm:$0xff]
        %v4344 = vld [vmem:[%s4258 + $0x2a8] sm:$0xff]
        %v4345 = vld [vmem:[%s4258 + $0x2b0] sm:$0xff]
        %v4346 = vld [vmem:[%s4258 + $0x2b8] sm:$0xff]
        %v4347 = vld [vmem:[%s4258 + $0x2c0] sm:$0xff]
        %v4348 = vld [vmem:[%s4258 + $0x2c8] sm:$0xff]
        %v4349 = vld [vmem:[%s4258 + $0x2d0] sm:$0xff]
        %v4350 = vld [vmem:[%s4258 + $0x2d8] sm:$0xff]
        %v4351 = vld [vmem:[%s4258 + $0x2e0] sm:$0xff]
        %v4352 = vld [vmem:[%s4258 + $0x2e8] sm:$0xff]
        %v4353 = vld [vmem:[%s4258 + $0x2f0] sm:$0xff]
        %v4354 = vld [vmem:[%s4258 + $0x2f8] sm:$0xff]
        %s4355 = scalar_lea.vmem %s2, 8
        %v4356 = vld [vmem:[%s4355] sm:$0x3]
        %v4358 = vperm.slane %v4356, 0
        %v4359 = vperm.slane %v4356, 1
        %v4458 = vunpack.c.l.b16 %v4259
        %v4459 = vunpack.c.h.b16 %v4259
        %v4460 = vunpack.c.l.b16 %v4260
        %v4461 = vunpack.c.h.b16 %v4260
        %v4462 = vunpack.c.l.b16 %v4261
        %v4463 = vunpack.c.h.b16 %v4261
        %v4464 = vunpack.c.l.b16 %v4262
        %v4465 = vunpack.c.h.b16 %v4262
        %v4466 = vunpack.c.l.b16 %v4263
        %v4467 = vunpack.c.h.b16 %v4263
        %v4468 = vunpack.c.l.b16 %v4264
        %v4469 = vunpack.c.h.b16 %v4264
        %v4470 = vunpack.c.l.b16 %v4265
        %v4471 = vunpack.c.h.b16 %v4265
        %v4472 = vunpack.c.l.b16 %v4266
        %v4473 = vunpack.c.h.b16 %v4266
        %v4474 = vunpack.c.l.b16 %v4267
        %v4475 = vunpack.c.h.b16 %v4267
        %v4476 = vunpack.c.l.b16 %v4268
        %v4477 = vunpack.c.h.b16 %v4268
        %v4478 = vunpack.c.l.b16 %v4269
        %v4479 = vunpack.c.h.b16 %v4269
        %v4480 = vunpack.c.l.b16 %v4270
        %v4481 = vunpack.c.h.b16 %v4270
        %v4482 = vunpack.c.l.b16 %v4271
        %v4483 = vunpack.c.h.b16 %v4271
        %v4484 = vunpack.c.l.b16 %v4272
        %v4485 = vunpack.c.h.b16 %v4272
        %v4486 = vunpack.c.l.b16 %v4273
        %v4487 = vunpack.c.h.b16 %v4273
        %v4488 = vunpack.c.l.b16 %v4274
        %v4489 = vunpack.c.h.b16 %v4274
        %v4490 = vunpack.c.l.b16 %v4275
        %v4491 = vunpack.c.h.b16 %v4275
        %v4492 = vunpack.c.l.b16 %v4276
        %v4493 = vunpack.c.h.b16 %v4276
        %v4494 = vunpack.c.l.b16 %v4277
        %v4495 = vunpack.c.h.b16 %v4277
        %v4496 = vunpack.c.l.b16 %v4278
        %v4497 = vunpack.c.h.b16 %v4278
        %v4498 = vunpack.c.l.b16 %v4279
        %v4499 = vunpack.c.h.b16 %v4279
        %v4500 = vunpack.c.l.b16 %v4280
        %v4501 = vunpack.c.h.b16 %v4280
        %v4502 = vunpack.c.l.b16 %v4281
        %v4503 = vunpack.c.h.b16 %v4281
        %v4504 = vunpack.c.l.b16 %v4282
        %v4505 = vunpack.c.h.b16 %v4282
        %v4506 = vunpack.c.l.b16 %v4283
        %v4507 = vunpack.c.h.b16 %v4283
        %v4508 = vunpack.c.l.b16 %v4284
        %v4509 = vunpack.c.h.b16 %v4284
        %v4510 = vunpack.c.l.b16 %v4285
        %v4511 = vunpack.c.h.b16 %v4285
        %v4512 = vunpack.c.l.b16 %v4286
        %v4513 = vunpack.c.h.b16 %v4286
        %v4514 = vunpack.c.l.b16 %v4287
        %v4515 = vunpack.c.h.b16 %v4287
        %v4516 = vunpack.c.l.b16 %v4288
        %v4517 = vunpack.c.h.b16 %v4288
        %v4518 = vunpack.c.l.b16 %v4289
        %v4519 = vunpack.c.h.b16 %v4289
        %v4520 = vunpack.c.l.b16 %v4290
        %v4521 = vunpack.c.h.b16 %v4290
        %v4522 = vunpack.c.l.b16 %v4291
        %v4523 = vunpack.c.h.b16 %v4291
        %v4524 = vunpack.c.l.b16 %v4292
        %v4525 = vunpack.c.h.b16 %v4292
        %v4526 = vunpack.c.l.b16 %v4293
        %v4527 = vunpack.c.h.b16 %v4293
        %v4528 = vunpack.c.l.b16 %v4294
        %v4529 = vunpack.c.h.b16 %v4294
        %v4530 = vunpack.c.l.b16 %v4295
        %v4531 = vunpack.c.h.b16 %v4295
        %v4532 = vunpack.c.l.b16 %v4296
        %v4533 = vunpack.c.h.b16 %v4296
        %v4534 = vunpack.c.l.b16 %v4297
        %v4535 = vunpack.c.h.b16 %v4297
        %v4536 = vunpack.c.l.b16 %v4298
        %v4537 = vunpack.c.h.b16 %v4298
        %v4538 = vunpack.c.l.b16 %v4299
        %v4539 = vunpack.c.h.b16 %v4299
        %v4540 = vunpack.c.l.b16 %v4300
        %v4541 = vunpack.c.h.b16 %v4300
        %v4542 = vunpack.c.l.b16 %v4301
        %v4543 = vunpack.c.h.b16 %v4301
        %v4544 = vunpack.c.l.b16 %v4302
        %v4545 = vunpack.c.h.b16 %v4302
        %v4546 = vunpack.c.l.b16 %v4303
        %v4547 = vunpack.c.h.b16 %v4303
        %v4548 = vunpack.c.l.b16 %v4304
        %v4549 = vunpack.c.h.b16 %v4304
        %v4550 = vunpack.c.l.b16 %v4305
        %v4551 = vunpack.c.h.b16 %v4305
        %v4552 = vunpack.c.l.b16 %v4306
        %v4553 = vunpack.c.h.b16 %v4306
        %v4554 = vunpack.c.l.b16 %v4307
        %v4555 = vunpack.c.h.b16 %v4307
        %v4556 = vunpack.c.l.b16 %v4308
        %v4557 = vunpack.c.h.b16 %v4308
        %v4558 = vunpack.c.l.b16 %v4309
        %v4559 = vunpack.c.h.b16 %v4309
        %v4560 = vunpack.c.l.b16 %v4310
        %v4561 = vunpack.c.h.b16 %v4310
        %v4562 = vunpack.c.l.b16 %v4311
        %v4563 = vunpack.c.h.b16 %v4311
        %v4564 = vunpack.c.l.b16 %v4312
        %v4565 = vunpack.c.h.b16 %v4312
        %v4566 = vunpack.c.l.b16 %v4313
        %v4567 = vunpack.c.h.b16 %v4313
        %v4568 = vunpack.c.l.b16 %v4314
        %v4569 = vunpack.c.h.b16 %v4314
        %v4570 = vunpack.c.l.b16 %v4315
        %v4571 = vunpack.c.h.b16 %v4315
        %v4572 = vunpack.c.l.b16 %v4316
        %v4573 = vunpack.c.h.b16 %v4316
        %v4574 = vunpack.c.l.b16 %v4317
        %v4575 = vunpack.c.h.b16 %v4317
        %v4576 = vunpack.c.l.b16 %v4318
        %v4577 = vunpack.c.h.b16 %v4318
        %v4578 = vunpack.c.l.b16 %v4319
        %v4579 = vunpack.c.h.b16 %v4319
        %v4580 = vunpack.c.l.b16 %v4320
        %v4581 = vunpack.c.h.b16 %v4320
        %v4582 = vunpack.c.l.b16 %v4321
        %v4583 = vunpack.c.h.b16 %v4321
        %v4584 = vunpack.c.l.b16 %v4322
        %v4585 = vunpack.c.h.b16 %v4322
        %v4586 = vunpack.c.l.b16 %v4323
        %v4587 = vunpack.c.h.b16 %v4323
        %v4588 = vunpack.c.l.b16 %v4324
        %v4589 = vunpack.c.h.b16 %v4324
        %v4590 = vunpack.c.l.b16 %v4325
        %v4591 = vunpack.c.h.b16 %v4325
        %v4592 = vunpack.c.l.b16 %v4326
        %v4593 = vunpack.c.h.b16 %v4326
        %v4594 = vunpack.c.l.b16 %v4327
        %v4595 = vunpack.c.h.b16 %v4327
        %v4596 = vunpack.c.l.b16 %v4328
        %v4597 = vunpack.c.h.b16 %v4328
        %v4598 = vunpack.c.l.b16 %v4329
        %v4599 = vunpack.c.h.b16 %v4329
        %v4600 = vunpack.c.l.b16 %v4330
        %v4601 = vunpack.c.h.b16 %v4330
        %v4602 = vunpack.c.l.b16 %v4331
        %v4603 = vunpack.c.h.b16 %v4331
        %v4604 = vunpack.c.l.b16 %v4332
        %v4605 = vunpack.c.h.b16 %v4332
        %v4606 = vunpack.c.l.b16 %v4333
        %v4607 = vunpack.c.h.b16 %v4333
        %v4608 = vunpack.c.l.b16 %v4334
        %v4609 = vunpack.c.h.b16 %v4334
        %v4610 = vunpack.c.l.b16 %v4335
        %v4611 = vunpack.c.h.b16 %v4335
        %v4612 = vunpack.c.l.b16 %v4336
        %v4613 = vunpack.c.h.b16 %v4336
        %v4614 = vunpack.c.l.b16 %v4337
        %v4615 = vunpack.c.h.b16 %v4337
        %v4616 = vunpack.c.l.b16 %v4338
        %v4617 = vunpack.c.h.b16 %v4338
        %v4618 = vunpack.c.l.b16 %v4339
        %v4619 = vunpack.c.h.b16 %v4339
        %v4620 = vunpack.c.l.b16 %v4340
        %v4621 = vunpack.c.h.b16 %v4340
        %v4622 = vunpack.c.l.b16 %v4341
        %v4623 = vunpack.c.h.b16 %v4341
        %v4624 = vunpack.c.l.b16 %v4342
        %v4625 = vunpack.c.h.b16 %v4342
        %v4626 = vunpack.c.l.b16 %v4343
        %v4627 = vunpack.c.h.b16 %v4343
        %v4628 = vunpack.c.l.b16 %v4344
        %v4629 = vunpack.c.h.b16 %v4344
        %v4630 = vunpack.c.l.b16 %v4345
        %v4631 = vunpack.c.h.b16 %v4345
        %v4632 = vunpack.c.l.b16 %v4346
        %v4633 = vunpack.c.h.b16 %v4346
        %v4634 = vunpack.c.l.b16 %v4347
        %v4635 = vunpack.c.h.b16 %v4347
        %v4636 = vunpack.c.l.b16 %v4348
        %v4637 = vunpack.c.h.b16 %v4348
        %v4638 = vunpack.c.l.b16 %v4349
        %v4639 = vunpack.c.h.b16 %v4349
        %v4640 = vunpack.c.l.b16 %v4350
        %v4641 = vunpack.c.h.b16 %v4350
        %v4642 = vunpack.c.l.b16 %v4351
        %v4643 = vunpack.c.h.b16 %v4351
        %v4644 = vunpack.c.l.b16 %v4352
        %v4645 = vunpack.c.h.b16 %v4352
        %v4646 = vunpack.c.l.b16 %v4353
        %v4647 = vunpack.c.h.b16 %v4353
        %v4648 = vunpack.c.l.b16 %v4354
        %v4649 = vunpack.c.h.b16 %v4354
        %v4650 = vpack.c.b16 %v4460, %v4458
        %v4651 = vpack.c.b16 %v4461, %v4459
        %v4652 = vpack.c.b16 %v4464, %v4462
        %v4653 = vpack.c.b16 %v4465, %v4463
        %v4654 = vpack.c.b16 %v4468, %v4466
        %v4655 = vpack.c.b16 %v4469, %v4467
        %v4656 = vpack.c.b16 %v4472, %v4470
        %v4657 = vpack.c.b16 %v4473, %v4471
        %v4658 = vpack.c.b16 %v4476, %v4474
        %v4659 = vpack.c.b16 %v4477, %v4475
        %v4660 = vpack.c.b16 %v4480, %v4478
        %v4661 = vpack.c.b16 %v4481, %v4479
        %v4662 = vpack.c.b16 %v4484, %v4482
        %v4663 = vpack.c.b16 %v4485, %v4483
        %v4664 = vpack.c.b16 %v4488, %v4486
        %v4665 = vpack.c.b16 %v4489, %v4487
        %v4666 = vpack.c.b16 %v4492, %v4490
        %v4667 = vpack.c.b16 %v4493, %v4491
        %v4668 = vpack.c.b16 %v4496, %v4494
        %v4669 = vpack.c.b16 %v4497, %v4495
        %v4670 = vpack.c.b16 %v4500, %v4498
        %v4671 = vpack.c.b16 %v4501, %v4499
        %v4672 = vpack.c.b16 %v4504, %v4502
        %v4673 = vpack.c.b16 %v4505, %v4503
        %v4674 = vpack.c.b16 %v4508, %v4506
        %v4675 = vpack.c.b16 %v4509, %v4507
        %v4676 = vpack.c.b16 %v4512, %v4510
        %v4677 = vpack.c.b16 %v4513, %v4511
        %v4678 = vpack.c.b16 %v4516, %v4514
        %v4679 = vpack.c.b16 %v4517, %v4515
        %v4680 = vpack.c.b16 %v4520, %v4518
        %v4681 = vpack.c.b16 %v4521, %v4519
        %v4682 = vpack.c.b16 %v4524, %v4522
        %v4683 = vpack.c.b16 %v4525, %v4523
        %v4684 = vpack.c.b16 %v4528, %v4526
        %v4685 = vpack.c.b16 %v4529, %v4527
        %v4686 = vpack.c.b16 %v4532, %v4530
        %v4687 = vpack.c.b16 %v4533, %v4531
        %v4688 = vpack.c.b16 %v4536, %v4534
        %v4689 = vpack.c.b16 %v4537, %v4535
        %v4690 = vpack.c.b16 %v4540, %v4538
        %v4691 = vpack.c.b16 %v4541, %v4539
        %v4692 = vpack.c.b16 %v4544, %v4542
        %v4693 = vpack.c.b16 %v4545, %v4543
        %v4694 = vpack.c.b16 %v4548, %v4546
        %v4695 = vpack.c.b16 %v4549, %v4547
        %v4696 = vpack.c.b16 %v4552, %v4550
        %v4697 = vpack.c.b16 %v4553, %v4551
        %v4698 = vpack.c.b16 %v4556, %v4554
        %v4699 = vpack.c.b16 %v4557, %v4555
        %v4700 = vpack.c.b16 %v4560, %v4558
        %v4701 = vpack.c.b16 %v4561, %v4559
        %v4702 = vpack.c.b16 %v4564, %v4562
        %v4703 = vpack.c.b16 %v4565, %v4563
        %v4704 = vpack.c.b16 %v4568, %v4566
        %v4705 = vpack.c.b16 %v4569, %v4567
        %v4706 = vpack.c.b16 %v4572, %v4570
        %v4707 = vpack.c.b16 %v4573, %v4571
        %v4708 = vpack.c.b16 %v4576, %v4574
        %v4709 = vpack.c.b16 %v4577, %v4575
        %v4710 = vpack.c.b16 %v4580, %v4578
        %v4711 = vpack.c.b16 %v4581, %v4579
        %v4712 = vpack.c.b16 %v4584, %v4582
        %v4713 = vpack.c.b16 %v4585, %v4583
        %v4714 = vpack.c.b16 %v4588, %v4586
        %v4715 = vpack.c.b16 %v4589, %v4587
        %v4716 = vpack.c.b16 %v4592, %v4590
        %v4717 = vpack.c.b16 %v4593, %v4591
        %v4718 = vpack.c.b16 %v4596, %v4594
        %v4719 = vpack.c.b16 %v4597, %v4595
        %v4720 = vpack.c.b16 %v4600, %v4598
        %v4721 = vpack.c.b16 %v4601, %v4599
        %v4722 = vpack.c.b16 %v4604, %v4602
        %v4723 = vpack.c.b16 %v4605, %v4603
        %v4724 = vpack.c.b16 %v4608, %v4606
        %v4725 = vpack.c.b16 %v4609, %v4607
        %v4726 = vpack.c.b16 %v4612, %v4610
        %v4727 = vpack.c.b16 %v4613, %v4611
        %v4728 = vpack.c.b16 %v4616, %v4614
        %v4729 = vpack.c.b16 %v4617, %v4615
        %v4730 = vpack.c.b16 %v4620, %v4618
        %v4731 = vpack.c.b16 %v4621, %v4619
        %v4732 = vpack.c.b16 %v4624, %v4622
        %v4733 = vpack.c.b16 %v4625, %v4623
        %v4734 = vpack.c.b16 %v4628, %v4626
        %v4735 = vpack.c.b16 %v4629, %v4627
        %v4736 = vpack.c.b16 %v4632, %v4630
        %v4737 = vpack.c.b16 %v4633, %v4631
        %v4738 = vpack.c.b16 %v4636, %v4634
        %v4739 = vpack.c.b16 %v4637, %v4635
        %v4740 = vpack.c.b16 %v4640, %v4638
        %v4741 = vpack.c.b16 %v4641, %v4639
        %v4742 = vpack.c.b16 %v4644, %v4642
        %v4743 = vpack.c.b16 %v4645, %v4643
        %v4744 = vpack.c.b16 %v4648, %v4646
        %v4745 = vpack.c.b16 %v4649, %v4647
        %4842 = vmatpush.bf16.msra.mxu0 %v4664
        %4843 = vmatpush.bf16.msra.mxu0 %v4662
        %4844 = vmatpush.bf16.msra.mxu0 %v4660
        %4845 = vmatpush.bf16.msra.mxu0 %v4658
        %4846 = vmatpush.bf16.msra.mxu0 %v4656
        %4847 = vmatpush.bf16.msra.mxu0 %v4654
        %4848 = vmatpush.bf16.msra.mxu0 %v4652
        %4849 = vmatpush.bf16.msra.mxu0 %v4650
        %4850 = vmatmul.bf16.gmra.mxu0 %v4252
        %v4851 = vpop.f32.mrf.mxu0
        %v4852 = vadd.f32 %v4358, %v4851
        %v4853 = vpop.f32.mrf.mxu0
        %v4854 = vadd.f32 %v4358, %v4853
        %4855 = vdwg.mxu0
        %4856 = vmatpush.bf16.msra.mxu0 %v4680
        %4857 = vmatpush.bf16.msra.mxu0 %v4678
        %4858 = vmatpush.bf16.msra.mxu0 %v4676
        %4859 = vmatpush.bf16.msra.mxu0 %v4674
        %4860 = vmatpush.bf16.msra.mxu0 %v4672
        %4861 = vmatpush.bf16.msra.mxu0 %v4670
        %4862 = vmatpush.bf16.msra.mxu0 %v4668
        %4863 = vmatpush.bf16.msra.mxu0 %v4666
        %4864 = vmatmul.bf16.gmra.mxu0 %v4253
        %v4865 = vpop.f32.mrf.mxu0
        %v4866 = vadd.f32 %v4852, %v4865
        %v4867 = vpop.f32.mrf.mxu0
        %v4868 = vadd.f32 %v4854, %v4867
        %4869 = vdwg.mxu0
        %4870 = vmatpush.bf16.msra.mxu0 %v4696
        %4871 = vmatpush.bf16.msra.mxu0 %v4694
        %4872 = vmatpush.bf16.msra.mxu0 %v4692
        %4873 = vmatpush.bf16.msra.mxu0 %v4690
        %4874 = vmatpush.bf16.msra.mxu0 %v4688
        %4875 = vmatpush.bf16.msra.mxu0 %v4686
        %4876 = vmatpush.bf16.msra.mxu0 %v4684
        %4877 = vmatpush.bf16.msra.mxu0 %v4682
        %4878 = vmatmul.bf16.gmra.mxu0 %v4254
        %v4879 = vpop.f32.mrf.mxu0
        %v4880 = vadd.f32 %v4866, %v4879
        %v4881 = vpop.f32.mrf.mxu0
        %v4882 = vadd.f32 %v4868, %v4881
        %4883 = vdwg.mxu0
        %4884 = vmatpush.bf16.msra.mxu0 %v4712
        %4885 = vmatpush.bf16.msra.mxu0 %v4710
        %4886 = vmatpush.bf16.msra.mxu0 %v4708
        %4887 = vmatpush.bf16.msra.mxu0 %v4706
        %4888 = vmatpush.bf16.msra.mxu0 %v4704
        %4889 = vmatpush.bf16.msra.mxu0 %v4702
        %4890 = vmatpush.bf16.msra.mxu0 %v4700
        %4891 = vmatpush.bf16.msra.mxu0 %v4698
        %4892 = vmatmul.bf16.gmra.mxu0 %v4255
        %v4893 = vpop.f32.mrf.mxu0
        %v4894 = vadd.f32 %v4880, %v4893
        %v4895 = vpop.f32.mrf.mxu0
        %v4896 = vadd.f32 %v4882, %v4895
        %4897 = vdwg.mxu0
        %4898 = vmatpush.bf16.msra.mxu0 %v4728
        %4899 = vmatpush.bf16.msra.mxu0 %v4726
        %4900 = vmatpush.bf16.msra.mxu0 %v4724
        %4901 = vmatpush.bf16.msra.mxu0 %v4722
        %4902 = vmatpush.bf16.msra.mxu0 %v4720
        %4903 = vmatpush.bf16.msra.mxu0 %v4718
        %4904 = vmatpush.bf16.msra.mxu0 %v4716
        %4905 = vmatpush.bf16.msra.mxu0 %v4714
        %4906 = vmatmul.bf16.gmra.mxu0 %v4256
        %v4907 = vpop.f32.mrf.mxu0
        %v4908 = vadd.f32 %v4894, %v4907
        %v4909 = vpop.f32.mrf.mxu0
        %v4910 = vadd.f32 %v4896, %v4909
        %4911 = vdwg.mxu0
        %4912 = vmatpush.bf16.msra.mxu0 %v4744
        %4913 = vmatpush.bf16.msra.mxu0 %v4742
        %4914 = vmatpush.bf16.msra.mxu0 %v4740
        %4915 = vmatpush.bf16.msra.mxu0 %v4738
        %4916 = vmatpush.bf16.msra.mxu0 %v4736
        %4917 = vmatpush.bf16.msra.mxu0 %v4734
        %4918 = vmatpush.bf16.msra.mxu0 %v4732
        %4919 = vmatpush.bf16.msra.mxu0 %v4730
        %4920 = vmatmul.bf16.gmra.mxu0 %v4257
        %v4921 = vpop.f32.mrf.mxu0
        %v4922 = vadd.f32 %v4908, %v4921
        %v4923 = vpop.f32.mrf.mxu0
        %v4924 = vadd.f32 %v4910, %v4923
        %4925 = vdwg.mxu0
        %4926 = vmatpush.bf16.msra.mxu0 %v4665
        %4927 = vmatpush.bf16.msra.mxu0 %v4663
        %4928 = vmatpush.bf16.msra.mxu0 %v4661
        %4929 = vmatpush.bf16.msra.mxu0 %v4659
        %4930 = vmatpush.bf16.msra.mxu0 %v4657
        %4931 = vmatpush.bf16.msra.mxu0 %v4655
        %4932 = vmatpush.bf16.msra.mxu0 %v4653
        %4933 = vmatpush.bf16.msra.mxu0 %v4651
        %4934 = vmatmul.bf16.gmra.mxu0 %v4252
        %v4935 = vpop.f32.mrf.mxu0
        %v4936 = vadd.f32 %v4359, %v4935
        %v4937 = vpop.f32.mrf.mxu0
        %v4938 = vadd.f32 %v4359, %v4937
        %4939 = vdwg.mxu0
        %4940 = vmatpush.bf16.msra.mxu0 %v4681
        %4941 = vmatpush.bf16.msra.mxu0 %v4679
        %4942 = vmatpush.bf16.msra.mxu0 %v4677
        %4943 = vmatpush.bf16.msra.mxu0 %v4675
        %4944 = vmatpush.bf16.msra.mxu0 %v4673
        %4945 = vmatpush.bf16.msra.mxu0 %v4671
        %4946 = vmatpush.bf16.msra.mxu0 %v4669
        %4947 = vmatpush.bf16.msra.mxu0 %v4667
        %4948 = vmatmul.bf16.gmra.mxu0 %v4253
        %v4949 = vpop.f32.mrf.mxu0
        %v4950 = vadd.f32 %v4936, %v4949
        %v4951 = vpop.f32.mrf.mxu0
        %v4952 = vadd.f32 %v4938, %v4951
        %4953 = vdwg.mxu0
        %4954 = vmatpush.bf16.msra.mxu0 %v4697
        %4955 = vmatpush.bf16.msra.mxu0 %v4695
        %4956 = vmatpush.bf16.msra.mxu0 %v4693
        %4957 = vmatpush.bf16.msra.mxu0 %v4691
        %4958 = vmatpush.bf16.msra.mxu0 %v4689
        %4959 = vmatpush.bf16.msra.mxu0 %v4687
        %4960 = vmatpush.bf16.msra.mxu0 %v4685
        %4961 = vmatpush.bf16.msra.mxu0 %v4683
        %4962 = vmatmul.bf16.gmra.mxu0 %v4254
        %v4963 = vpop.f32.mrf.mxu0
        %v4964 = vadd.f32 %v4950, %v4963
        %v4965 = vpop.f32.mrf.mxu0
        %v4966 = vadd.f32 %v4952, %v4965
        %4967 = vdwg.mxu0
        %4968 = vmatpush.bf16.msra.mxu0 %v4713
        %4969 = vmatpush.bf16.msra.mxu0 %v4711
        %4970 = vmatpush.bf16.msra.mxu0 %v4709
        %4971 = vmatpush.bf16.msra.mxu0 %v4707
        %4972 = vmatpush.bf16.msra.mxu0 %v4705
        %4973 = vmatpush.bf16.msra.mxu0 %v4703
        %4974 = vmatpush.bf16.msra.mxu0 %v4701
        %4975 = vmatpush.bf16.msra.mxu0 %v4699
        %4976 = vmatmul.bf16.gmra.mxu0 %v4255
        %v4977 = vpop.f32.mrf.mxu0
        %v4978 = vadd.f32 %v4964, %v4977
        %v4979 = vpop.f32.mrf.mxu0
        %v4980 = vadd.f32 %v4966, %v4979
        %4981 = vdwg.mxu0
        %4982 = vmatpush.bf16.msra.mxu0 %v4729
        %4983 = vmatpush.bf16.msra.mxu0 %v4727
        %4984 = vmatpush.bf16.msra.mxu0 %v4725
        %4985 = vmatpush.bf16.msra.mxu0 %v4723
        %4986 = vmatpush.bf16.msra.mxu0 %v4721
        %4987 = vmatpush.bf16.msra.mxu0 %v4719
        %4988 = vmatpush.bf16.msra.mxu0 %v4717
        %4989 = vmatpush.bf16.msra.mxu0 %v4715
        %4990 = vmatmul.bf16.gmra.mxu0 %v4256
        %v4991 = vpop.f32.mrf.mxu0
        %v4992 = vadd.f32 %v4978, %v4991
        %v4993 = vpop.f32.mrf.mxu0
        %v4994 = vadd.f32 %v4980, %v4993
        %4995 = vdwg.mxu0
        %4996 = vmatpush.bf16.msra.mxu0 %v4745
        %4997 = vmatpush.bf16.msra.mxu0 %v4743
        %4998 = vmatpush.bf16.msra.mxu0 %v4741
        %4999 = vmatpush.bf16.msra.mxu0 %v4739
        %5000 = vmatpush.bf16.msra.mxu0 %v4737
        %5001 = vmatpush.bf16.msra.mxu0 %v4735
        %5002 = vmatpush.bf16.msra.mxu0 %v4733
        %5003 = vmatpush.bf16.msra.mxu0 %v4731
        %5004 = vmatmul.bf16.gmra.mxu0 %v4257
        %v5005 = vpop.f32.mrf.mxu0
        %v5006 = vadd.f32 %v4992, %v5005
        %v5007 = vpop.f32.mrf.mxu0
        %v5008 = vadd.f32 %v4994, %v5007
        %5009 = vdwg.mxu0
        %v5010 = vadd.f32 %v4922, %v341
        %v5011 = vadd.f32 %v5006, %v342
        %v5012 = vadd.f32 %v4924, %v343
        %v5013 = vadd.f32 %v5008, %v344
        %5014 = vst [vmem:[%s319] sm:$0xff] %v5010
        %5015 = vst [vmem:[%s319 + $0x8] sm:$0xff] %v5011
        %5016 = vst [vmem:[%s319 + $0x10] sm:$0xff] %v5012
        %5017 = vst [vmem:[%s319 + $0x18] sm:$0xff] %v5013
        %p5018 = scmp.lt.s32.totalorder %s20, 1
        %s5019 = scalar_select %p5018, %s20, 1
        %s5020 = smul.addr %s5019, 4
        %s5021 = smul.addr %s5020, 8
        %s5022 = scalar_lea.vmem %s8, %s5021
        // Predicated region
        $region57: #{residual_group_forward.1} parent=51 // pred_check
          %p5023 = pneg %p211
        $region58: #{residual_group_forward.1} parent=51 // pred_check_branch
          %5025 = sbr.rel (%p5023) target = $region60
        $region59: #{residual_group_forward.1} parent=51 // pred_region
          _
        $region60: #{residual_group_forward.1} parent=51 // pred_fallthru
          _
      $region52: #{residual_group_forward.1} parent=5 // pred_fallthru
        _
      %p5026 = scmp.le.s32.totalorder 2, %s15
      // Predicated region
      $region61: #{residual_group_forward.1} parent=5 // pred_check
        %p5027 = pneg %p5026
      $region62: #{residual_group_forward.1} parent=5 // pred_check_branch
        %5029 = sbr.rel (%p5027) target = $region64
      $region63: #{residual_group_forward.1} parent=5 // pred_region
        %s5030 = ssub.s32 %s15, 2
        // Predicated region
        $region65: #{residual_group_forward.1} parent=63 // pred_check
          %p5031 = pneg %p217
        $region66: #{residual_group_forward.1} parent=63 // pred_check_branch
          %5033 = sbr.rel (%p5031) target = $region68
        $region67: #{residual_group_forward.1} parent=63 // pred_region
          %p5034 = scmp.lt.s32.totalorder %s21, 1
          %s5035 = scalar_select %p5034, %s21, 1
          %s5036 = smul.addr %s5035, 4
          %s5037 = smul.addr %s5036, 8
          %s5038 = scalar_lea.vmem %s8, %s5037
        $region68: #{residual_group_forward.1} parent=63 // pred_fallthru
          _
      $region64: #{residual_group_forward.1} parent=5 // pred_fallthru
        _
    $region6: #{residual_group_forward.1} parent=1 // loop_footer
      %s19 = sadd.s32 1, %s15
    $region7: #{residual_group_forward.1} parent=1 // loop_footer_branch
      %14 = sbr.rel target = $region3
    $region8: #{residual_group_forward.1} parent=1 // loop_exit
      _
    %5039 = vsyncpa [#allocation3], 1
    %s5040 = scalar_lea.sflag [#allocation3], 1
    %5041 = vsyncpa %s5040, 1

</llo_original>
